<compile_context>
chip_gen: v7x
topology: tpu7x:2x2x1
jax: 0.10.0
libtpu: 0.0.40
codegen_flags: <defaults>
</compile_context>

<pallas_src>
import math

import jax
import jax.numpy as jnp
from jax import lax
from jax.experimental import pallas as pl
from jax.experimental.pallas import tpu as pltpu


_NEG = -3.0e38                       # maxpool padding value; never wins a max
_VMEM_LIMIT = 64 * 1024 * 1024       # v5e/v6e headroom; demo usage is tiny


def _pick_tile(n, target):
    """Largest divisor of n that is <= target (>= 1)."""
    target = max(1, min(n, target))
    for d in range(target, 0, -1):
        if n % d == 0:
            return d
    return 1


# ---------------------------------------------------------------------------
# Shared conv helper: 3x3 conv over `rows` output rows with the dx taps folded
# into the contraction (3 dots, K = 3*Cin) instead of 9 dots + 8 adds.
#   slab : (rows+2, W+2, Cin) bf16 value (zero-padded, already pre-activated)
#   w_ref: (3, 3*Cin, Cout) bf16 ref, layout (dy, dx*Cin+cin, cout)
#   b_ref: (1, Cout) f32 ref
# Returns (rows*W, Cout) f32.
# ---------------------------------------------------------------------------
def _conv_rows(slab, w_ref, b_ref, rows, W):
    cin = slab.shape[-1]
    acc = b_ref[...].astype(jnp.float32)                 # (1, Cout) broadcast
    for dy in range(3):                                   # static unroll
        r = slab[dy:dy + rows]                            # (rows, W+2, cin)
        op = jnp.concatenate(
            [r[:, 0:W, :], r[:, 1:W + 1, :], r[:, 2:W + 2, :]], axis=-1
        ).reshape(rows * W, 3 * cin)                      # (rows*W, 3*cin) bf16
        acc = acc + jnp.dot(op, w_ref[dy], preferred_element_type=jnp.float32)
    return acc


# ---------------------------------------------------------------------------
# Residual-path conv 3x3 (stride 1, 'same'), optional pre-ReLU and fused
# residual add.  Grid = (batch, output-row tile).
# ---------------------------------------------------------------------------
def _make_conv_kernel(apply_relu, has_residual, th, H, W):
    def kernel(x_ref, w_ref, b_ref, *rest):
        if has_residual:
            r_ref, o_ref, xpad = rest
        else:
            o_ref, xpad = rest
        t = pl.program_id(1)

        # Build the zero-padded, pre-activated, bf16 input slab once per batch
        # item; it persists in VMEM scratch across the (arbitrary) row axis.
        @pl.when(t == 0)
        def _():
            xin = x_ref[0]                                 # (H, W, C)
            if apply_relu:
                xin = jnp.maximum(xin, 0.0)                # ReLU once per element
            xpad[...] = jnp.zeros(xpad.shape, xpad.dtype)
            xpad[1:H + 1, 1:W + 1, :] = xin.astype(xpad.dtype)

        r0 = pl.multiple_of(t * th, th)
        slab = xpad[pl.ds(r0, th + 2), :, :]               # (th+2, W+2, C) bf16
        acc = _conv_rows(slab, w_ref, b_ref, th, W)        # (th*W, Cout) f32
        if has_residual:
            acc = acc + r_ref[...].reshape(th * W, -1).astype(jnp.float32)
        o_ref[...] = acc.reshape(1, th, W, -1).astype(o_ref.dtype)

    return kernel


def conv3x3_pallas(x, w9, b, *, apply_relu, residual=None,
                   out_dtype=jnp.bfloat16, rows_target=256):
    """3x3 stride-1 pad-1 conv.  x: (N,H,W,Cin).  w9: (3, 3*Cin, Cout) bf16.
    b: (1, Cout) f32.  Optionally fuses a pre-ReLU on x and a residual add."""
    N, H, W, Cin = x.shape
    Cout = w9.shape[-1]
    th = _pick_tile(H, max(1, rows_target // W))           # M = th*W per dot
    T = H // th

    inputs = [x, w9, b]
    in_specs = [
        pl.BlockSpec((1, H, W, Cin), lambda n, t: (n, 0, 0, 0)),
        pl.BlockSpec((3, 3 * Cin, Cout), lambda n, t: (0, 0, 0)),
        pl.BlockSpec((1, Cout), lambda n, t: (0, 0)),
    ]
    io_aliases = {}
    if residual is not None:
        inputs.append(residual)
        in_specs.append(pl.BlockSpec((1, th, W, Cout), lambda n, t: (n, t, 0, 0)))
        if residual.dtype == jnp.dtype(out_dtype):
            io_aliases = {3: 0}                            # reuse residual buffer

    flops = 2 * N * H * W * 9 * Cin * Cout
    bytes_accessed = int(sum(a.size * a.dtype.itemsize for a in inputs)
                         + N * H * W * Cout * jnp.dtype(out_dtype).itemsize)

    return pl.pallas_call(
        _make_conv_kernel(apply_relu, residual is not None, th, H, W),
        out_shape=jax.ShapeDtypeStruct((N, H, W, Cout), out_dtype),
        grid_spec=pltpu.PrefetchScalarGridSpec(
            num_scalar_prefetch=0,
            grid=(N, T),
            in_specs=in_specs,
            out_specs=pl.BlockSpec((1, th, W, Cout), lambda n, t: (n, t, 0, 0)),
            scratch_shapes=[pltpu.VMEM((H + 2, W + 2, Cin), jnp.bfloat16)],
        ),
        compiler_params=pltpu.CompilerParams(
            # row axis must stay "arbitrary": the padded slab is built at t==0.
            dimension_semantics=("parallel", "arbitrary"),
            vmem_limit_bytes=_VMEM_LIMIT,
        ),
        cost_estimate=pl.CostEstimate(flops=int(flops), transcendentals=0,
                                      bytes_accessed=bytes_accessed),
        input_output_aliases=io_aliases,
    )(*inputs)


# ---------------------------------------------------------------------------
# Fused first conv 3x3 + MaxPool2d(3, 2, padding=1).
# Each pooled-row tile recomputes a 1-row conv halo; the only invalid halo row
# (global conv row -1, the pool's top padding) is masked to -inf before the
# max.  Pooling is separable (W then H) with stride-2 reads from VMEM scratch.
# ---------------------------------------------------------------------------
def _make_conv_pool_kernel(tp, H, W):
    Wo = W // 2
    R = 2 * tp + 1                     # conv rows feeding tp pooled rows

    def kernel(x_ref, w_ref, b_ref, o_ref, xpad, cscr, pscr):
        t = pl.program_id(1)
        cout = o_ref.shape[-1]

        @pl.when(t == 0)
        def _():
            xpad[...] = jnp.zeros(xpad.shape, xpad.dtype)  # 2-row / 1-col zero halo
            xpad[2:H + 2, 1:W + 1, :] = x_ref[0].astype(xpad.dtype)

        r0 = pl.multiple_of(2 * tp * t, 2 * tp)
        slab = xpad[pl.ds(r0, R + 2), :, :]                # (R+2, W+2, Cin) bf16
        conv = _conv_rows(slab, w_ref, b_ref, R, W).reshape(R, W, cout)

        # Global conv-row index of each slab row; row -1 is pool padding.
        gidx = (2 * tp * t - 1) + lax.broadcasted_iota(jnp.int32, (R, 1, 1), 0)
        conv = jnp.where(gidx >= 0, conv, _NEG)

        # W-direction maxpool: -inf borders + stride-2 reads (no 9x stack).
        cscr[:, 0:1, :] = jnp.full((R, 1, cout), _NEG, cscr.dtype)
        cscr[:, W + 1:W + 2, :] = jnp.full((R, 1, cout), _NEG, cscr.dtype)
        cscr[:, 1:W + 1, :] = conv
        c0 = cscr[:, pl.ds(0, Wo, 2), :]
        c1 = cscr[:, pl.ds(1, Wo, 2), :]
        c2 = cscr[:, pl.ds(2, Wo, 2), :]
        pscr[...] = jnp.maximum(jnp.maximum(c0, c1), c2)   # (R, Wo, C) f32

        # H-direction maxpool: pooled row i <- conv rows 2i, 2i+1, 2i+2.
        p0 = pscr[pl.ds(0, tp, 2), :, :]
        p1 = pscr[pl.ds(1, tp, 2), :, :]
        p2 = pscr[pl.ds(2, tp, 2), :, :]
        o_ref[...] = (jnp.maximum(jnp.maximum(p0, p1), p2)
                      .reshape(1, tp, Wo, cout).astype(o_ref.dtype))

    return kernel


def conv3x3_maxpool_pallas(x, w9, b, *, rows_target=256):
    """Fused self.conv (3x3, s1, p1) + self.max_pool (3x3, s2, p1).
    x: (N,H,W,Cin) f32 network input.  Output: (N, H//2, W//2, Cout) bf16."""
    N, H, W, Cin = x.shape
    Cout = w9.shape[-1]
    assert H % 2 == 0 and W % 2 == 0, "even spatial dims assumed"
    Ho, Wo = H // 2, W // 2
    tp = _pick_tile(Ho, max(1, rows_target // (2 * W)))
    Tp = Ho // tp
    R = 2 * tp + 1

    flops = 2 * N * H * W * 9 * Cin * Cout + 8 * N * Ho * Wo * Cout
    bytes_accessed = int(x.size * x.dtype.itemsize
                         + w9.size * w9.dtype.itemsize + b.size * b.dtype.itemsize
                         + N * Ho * Wo * Cout * 2)

    return pl.pallas_call(
        _make_conv_pool_kernel(tp, H, W),
        out_shape=jax.ShapeDtypeStruct((N, Ho, Wo, Cout), jnp.bfloat16),
        grid_spec=pltpu.PrefetchScalarGridSpec(
            num_scalar_prefetch=0,
            grid=(N, Tp),
            in_specs=[
                pl.BlockSpec((1, H, W, Cin), lambda n, t: (n, 0, 0, 0)),
                pl.BlockSpec((3, 3 * Cin, Cout), lambda n, t: (0, 0, 0)),
                pl.BlockSpec((1, Cout), lambda n, t: (0, 0)),
            ],
            out_specs=pl.BlockSpec((1, tp, Wo, Cout), lambda n, t: (n, t, 0, 0)),
            scratch_shapes=[
                pltpu.VMEM((H + 4, W + 2, Cin), jnp.bfloat16),   # padded input slab
                pltpu.VMEM((R, W + 2, Cout), jnp.float32),       # W-pool source
                pltpu.VMEM((R, Wo, Cout), jnp.float32),          # H-pool source
            ],
        ),
        compiler_params=pltpu.CompilerParams(
            dimension_semantics=("parallel", "arbitrary"),
            vmem_limit_bytes=_VMEM_LIMIT,
        ),
        cost_estimate=pl.CostEstimate(flops=int(flops), transcendentals=0,
                                      bytes_accessed=bytes_accessed),
    )(x, w9, b)


# ---------------------------------------------------------------------------
# Parameter prep: HWIO weights -> (3, 3*Cin, Cout) bf16 (dx folded into K),
# bias -> (1, Cout) f32.
# ---------------------------------------------------------------------------
def _prep_conv_params(w_hwio, b):
    _, _, cin, cout = w_hwio.shape
    w = w_hwio.reshape(3, 3 * cin, cout).astype(jnp.bfloat16)
    bp = b.reshape(1, cout).astype(jnp.float32)
    return w, bp


# ---------------------------------------------------------------------------
# ImpalaCNNBlock forward (layer_norm=False, norm_func=identity)
# ---------------------------------------------------------------------------
def impala_cnn_block(x_nchw, params):
    x = jnp.transpose(x_nchw, (0, 2, 3, 1))                 # NCHW -> NHWC, f32
    w, b = _prep_conv_params(*params["conv"])
    x = conv3x3_maxpool_pallas(x, w, b)                      # conv + maxpool, bf16

    for r in ("r0", "r1"):                                   # residual_0, residual_1
        w0, b0 = _prep_conv_params(*params[r + "c0"])
        w1, b1 = _prep_conv_params(*params[r + "c1"])
        last = (r == "r1")
        h = conv3x3_pallas(x, w0, b0, apply_relu=True)       # conv_0(relu(x)), bf16
        x = conv3x3_pallas(h, w1, b1, apply_relu=True, residual=x,
                           out_dtype=jnp.float32 if last else jnp.bfloat16)
        # TODO(synk): fusing conv_0/conv_1 of a residual block into one kernel
        # (halo recompute of h) would remove one more HBM round trip.

    return jnp.transpose(x, (0, 3, 1, 2))                    # NHWC -> NCHW, f32


# ---------------------------------------------------------------------------
# Pure-JAX f32 reference (for correctness check)
# ---------------------------------------------------------------------------
def _ref_conv(x, w, b):
    y = lax.conv_general_dilated(
        x, w, window_strides=(1, 1), padding=((1, 1), (1, 1)),
        dimension_numbers=("NHWC", "HWIO", "NHWC"))
    return y + b


def _ref_maxpool(x):
    return lax.reduce_window(
        x, -jnp.inf, lax.max,
        window_dimensions=(1, 3, 3, 1), window_strides=(1, 2, 2, 1),
        padding=((0, 0), (1, 1), (1, 1), (0, 0)))


def impala_cnn_block_ref(x_nchw, params):
    x = jnp.transpose(x_nchw, (0, 2, 3, 1))
    w, b = params["conv"]
    x = _ref_conv(x, w, b)
    x = _ref_maxpool(x)
    for r in ("r0", "r1"):
        w0, b0 = params[r + "c0"]
        w1, b1 = params[r + "c1"]
        h = _ref_conv(jnp.maximum(x, 0.0), w0, b0)
        x = x + _ref_conv(jnp.maximum(h, 0.0), w1, b1)
    return jnp.transpose(x, (0, 3, 1, 2))


# ---------------------------------------------------------------------------
# Deterministic parameter init (PyTorch-style kaiming-uniform bounds)
# ---------------------------------------------------------------------------
def init_params(key, depth_in, depth_out):
    def conv_init(k, cin, cout):
        kw, kb = jax.random.split(k)
        bound = 1.0 / math.sqrt(cin * 9)
        w = jax.random.uniform(kw, (3, 3, cin, cout), jnp.float32, -bound, bound)
        b = jax.random.uniform(kb, (cout,), jnp.float32, -bound, bound)
        return w, b

    keys = jax.random.split(key, 5)
    return {
        "conv": conv_init(keys[0], depth_in, depth_out),
        "r0c0": conv_init(keys[1], depth_out, depth_out),
        "r0c1": conv_init(keys[2], depth_out, depth_out),
        "r1c0": conv_init(keys[3], depth_out, depth_out),
        "r1c1": conv_init(keys[4], depth_out, depth_out),
    }


if __name__ == "__main__":
    N, Cin, H, W = 2, 4, 16, 16
    Cout = 8

    key = jax.random.PRNGKey(0)
    kx, kp = jax.random.split(key)
    x = jax.random.normal(kx, (N, Cin, H, W), jnp.float32)
    params = init_params(kp, Cin, Cout)

    fwd = jax.jit(impala_cnn_block)
    out = jax.block_until_ready(fwd(x, params))
    ref = jax.block_until_ready(impala_cnn_block_ref(x, params))

    assert out.shape == (N, Cout, H // 2, W // 2), out.shape
    max_err = float(jnp.max(jnp.abs(out - ref)))
    # bf16 MXU operands AND bf16 intermediate activations vs pure-f32 reference.
    assert max_err < 1e-1, f"mismatch vs reference: max abs err = {max_err}"
    print("KERNEL_OK")
</pallas_src>

<mosaic_0001>
module attributes {stable_mosaic.version = 11 : i64} {
  func.func @kernel(%arg0: i32, %arg1: i32, %arg2: memref<1x16x16x4xf32, #tpu.memory_space<vmem>>, %arg3: memref<3x12x8xbf16, #tpu.memory_space<vmem>>, %arg4: memref<1x8xf32, #tpu.memory_space<vmem>>, %arg5: memref<1x8x8x8xbf16, #tpu.memory_space<vmem>>, %arg6: memref<20x18x4xbf16, #tpu.memory_space<vmem>>, %arg7: memref<17x18x8xf32, #tpu.memory_space<vmem>>, %arg8: memref<17x8x8xf32, #tpu.memory_space<vmem>>) attributes {dimension_semantics = [#tpu.dimension_semantics<parallel>, #tpu.dimension_semantics<arbitrary>], iteration_bounds = array<i64: 2, 1>, scalar_prefetch = 0 : i64, scratch_operands = 3 : i64, tpu.core_type = #tpu.core_type<tc>, window_params = [{transform_indices = @transform_0, window_bounds = array<i64: 1, 16, 16, 4>}, {pipeline_mode = #tpu.pipeline_mode<synchronous>, transform_indices = @transform_1, window_bounds = array<i64: 3, 12, 8>}, {pipeline_mode = #tpu.pipeline_mode<synchronous>, transform_indices = @transform_2, window_bounds = array<i64: 1, 8>}, {transform_indices = @transform_3, window_bounds = array<i64: 1, 8, 8, 8>}]} {
    %c0_i32 = arith.constant 0 : i32
    %0 = arith.cmpi eq, %arg1, %c0_i32 : i32
    %1 = arith.extui %0 : i1 to i32
    %c0_i32_0 = arith.constant 0 : i32
    %2 = arith.cmpi ne, %1, %c0_i32_0 : i32
    scf.if %2 {
      %cst_51 = arith.constant 0.000000e+00 : bf16
      %70 = vector.broadcast %cst_51 : bf16 to vector<20x18x4xbf16>
      %c0_52 = arith.constant 0 : index
      %c0_53 = arith.constant 0 : index
      %c0_54 = arith.constant 0 : index
      %71 = vector.load %arg6[%c0_52, %c0_53, %c0_54] : memref<20x18x4xbf16, #tpu.memory_space<vmem>>, vector<20x18x4xbf16>
      tpu.vector_store %arg6[%c0_52, %c0_53, %c0_54], %70 {strides = array<i32>} : memref<20x18x4xbf16, #tpu.memory_space<vmem>>, vector<20x18x4xbf16>,
      %c0_55 = arith.constant 0 : index
      %c0_56 = arith.constant 0 : index
      %c0_57 = arith.constant 0 : index
      %c0_58 = arith.constant 0 : index
      %72 = vector.load %arg2[%c0_55, %c0_56, %c0_57, %c0_58] : memref<1x16x16x4xf32, #tpu.memory_space<vmem>>, vector<1x16x16x4xf32>
      %73 = vector.shape_cast %72 : vector<1x16x16x4xf32> to vector<16x16x4xf32>
      %74 = arith.truncf %73 : vector<16x16x4xf32> to vector<16x16x4xbf16>
      %c2_59 = arith.constant 2 : index
      %c1_60 = arith.constant 1 : index
      %c0_61 = arith.constant 0 : index
      %75 = vector.load %arg6[%c2_59, %c1_60, %c0_61] : memref<20x18x4xbf16, #tpu.memory_space<vmem>>, vector<16x16x4xbf16>
      tpu.vector_store %arg6[%c2_59, %c1_60, %c0_61], %74 {strides = array<i32>} : memref<20x18x4xbf16, #tpu.memory_space<vmem>>, vector<16x16x4xbf16>,
    } else {
    }
    %c16_i32 = arith.constant 16 : i32
    %3 = arith.muli %c16_i32, %arg1 : i32
    %4 = tpu.assume_multiple %3, 16 : i32
    %5 = arith.index_cast %4 : i32 to index
    %c0 = arith.constant 0 : index
    %c0_1 = arith.constant 0 : index
    %6 = vector.load %arg6[%5, %c0, %c0_1] : memref<20x18x4xbf16, #tpu.memory_space<vmem>>, vector<19x18x4xbf16>
    %c0_2 = arith.constant 0 : index
    %c0_3 = arith.constant 0 : index
    %7 = vector.load %arg4[%c0_2, %c0_3] : memref<1x8xf32, #tpu.memory_space<vmem>>, vector<1x8xf32>
    %8 = vector.extract_strided_slice %6 {offsets = [0, 0, 0], sizes = [17, 18, 4], strides = [1, 1, 1]} : vector<19x18x4xbf16> to vector<17x18x4xbf16>
    %9 = vector.extract_strided_slice %8 {offsets = [0, 0, 0], sizes = [17, 16, 4], strides = [1, 1, 1]} : vector<17x18x4xbf16> to vector<17x16x4xbf16>
    %10 = vector.extract_strided_slice %8 {offsets = [0, 1, 0], sizes = [17, 16, 4], strides = [1, 1, 1]} : vector<17x18x4xbf16> to vector<17x16x4xbf16>
    %11 = vector.extract_strided_slice %8 {offsets = [0, 2, 0], sizes = [17, 16, 4], strides = [1, 1, 1]} : vector<17x18x4xbf16> to vector<17x16x4xbf16>
    %12 = tpu.concatenate %9, %10, %11 in 2 : vector<17x16x4xbf16>, vector<17x16x4xbf16>, vector<17x16x4xbf16> -> vector<17x16x12xbf16>
    %13 = vector.shape_cast %12 : vector<17x16x12xbf16> to vector<272x12xbf16>
    %c0_4 = arith.constant 0 : index
    %c0_5 = arith.constant 0 : index
    %c0_6 = arith.constant 0 : index
    %14 = vector.load %arg3[%c0_4, %c0_5, %c0_6] : memref<3x12x8xbf16, #tpu.memory_space<vmem>>, vector<1x12x8xbf16>
    %15 = vector.shape_cast %14 : vector<1x12x8xbf16> to vector<12x8xbf16>
    %cst = arith.constant dense<0.000000e+00> : vector<272x8xf32>
    %16 = tpu.matmul %13, %15, %cst {dimension_numbers = #tpu.dot_dimension_numbers<[1], [0], [0], [1], [0, 0, 1, 1], [], []>} : vector<272x12xbf16>, vector<12x8xbf16>, vector<272x8xf32> -> vector<272x8xf32>
    %17 = vector.broadcast %7 : vector<1x8xf32> to vector<272x8xf32>
    %18 = arith.addf %17, %16 : vector<272x8xf32>
    %19 = vector.extract_strided_slice %6 {offsets = [1, 0, 0], sizes = [17, 18, 4], strides = [1, 1, 1]} : vector<19x18x4xbf16> to vector<17x18x4xbf16>
    %20 = vector.extract_strided_slice %19 {offsets = [0, 0, 0], sizes = [17, 16, 4], strides = [1, 1, 1]} : vector<17x18x4xbf16> to vector<17x16x4xbf16>
    %21 = vector.extract_strided_slice %19 {offsets = [0, 1, 0], sizes = [17, 16, 4], strides = [1, 1, 1]} : vector<17x18x4xbf16> to vector<17x16x4xbf16>
    %22 = vector.extract_strided_slice %19 {offsets = [0, 2, 0], sizes = [17, 16, 4], strides = [1, 1, 1]} : vector<17x18x4xbf16> to vector<17x16x4xbf16>
    %23 = tpu.concatenate %20, %21, %22 in 2 : vector<17x16x4xbf16>, vector<17x16x4xbf16>, vector<17x16x4xbf16> -> vector<17x16x12xbf16>
    %24 = vector.shape_cast %23 : vector<17x16x12xbf16> to vector<272x12xbf16>
    %c1 = arith.constant 1 : index
    %c0_7 = arith.constant 0 : index
    %c0_8 = arith.constant 0 : index
    %25 = vector.load %arg3[%c1, %c0_7, %c0_8] : memref<3x12x8xbf16, #tpu.memory_space<vmem>>, vector<1x12x8xbf16>
    %26 = vector.shape_cast %25 : vector<1x12x8xbf16> to vector<12x8xbf16>
    %cst_9 = arith.constant dense<0.000000e+00> : vector<272x8xf32>
    %27 = tpu.matmul %24, %26, %cst_9 {dimension_numbers = #tpu.dot_dimension_numbers<[1], [0], [0], [1], [0, 0, 1, 1], [], []>} : vector<272x12xbf16>, vector<12x8xbf16>, vector<272x8xf32> -> vector<272x8xf32>
    %28 = arith.addf %18, %27 : vector<272x8xf32>
    %29 = vector.extract_strided_slice %6 {offsets = [2, 0, 0], sizes = [17, 18, 4], strides = [1, 1, 1]} : vector<19x18x4xbf16> to vector<17x18x4xbf16>
    %30 = vector.extract_strided_slice %29 {offsets = [0, 0, 0], sizes = [17, 16, 4], strides = [1, 1, 1]} : vector<17x18x4xbf16> to vector<17x16x4xbf16>
    %31 = vector.extract_strided_slice %29 {offsets = [0, 1, 0], sizes = [17, 16, 4], strides = [1, 1, 1]} : vector<17x18x4xbf16> to vector<17x16x4xbf16>
    %32 = vector.extract_strided_slice %29 {offsets = [0, 2, 0], sizes = [17, 16, 4], strides = [1, 1, 1]} : vector<17x18x4xbf16> to vector<17x16x4xbf16>
    %33 = tpu.concatenate %30, %31, %32 in 2 : vector<17x16x4xbf16>, vector<17x16x4xbf16>, vector<17x16x4xbf16> -> vector<17x16x12xbf16>
    %34 = vector.shape_cast %33 : vector<17x16x12xbf16> to vector<272x12xbf16>
    %c2 = arith.constant 2 : index
    %c0_10 = arith.constant 0 : index
    %c0_11 = arith.constant 0 : index
    %35 = vector.load %arg3[%c2, %c0_10, %c0_11] : memref<3x12x8xbf16, #tpu.memory_space<vmem>>, vector<1x12x8xbf16>
    %36 = vector.shape_cast %35 : vector<1x12x8xbf16> to vector<12x8xbf16>
    %cst_12 = arith.constant dense<0.000000e+00> : vector<272x8xf32>
    %37 = tpu.matmul %34, %36, %cst_12 {dimension_numbers = #tpu.dot_dimension_numbers<[1], [0], [0], [1], [0, 0, 1, 1], [], []>} : vector<272x12xbf16>, vector<12x8xbf16>, vector<272x8xf32> -> vector<272x8xf32>
    %38 = arith.addf %28, %37 : vector<272x8xf32>
    %39 = vector.shape_cast %38 : vector<272x8xf32> to vector<17x16x8xf32>
    %c16_i32_13 = arith.constant 16 : i32
    %40 = arith.muli %c16_i32_13, %arg1 : i32
    %c1_i32 = arith.constant 1 : i32
    %41 = arith.subi %40, %c1_i32 : i32
    %42 = tpu.iota {dimensions = array<i32: 0>} : vector<17x1x1xi32>
    %43 = vector.broadcast %41 : i32 to vector<17x1x1xi32>
    %44 = arith.addi %43, %42 : vector<17x1x1xi32>
    %c0_i32_14 = arith.constant 0 : i32
    %45 = vector.broadcast %c0_i32_14 : i32 to vector<17x1x1xi32>
    %46 = arith.cmpi sge, %44, %45 : vector<17x1x1xi32>
    %cst_15 = arith.constant -3.000000e+38 : f32
    %47 = vector.shape_cast %46 : vector<17x1x1xi1> to vector<17x1x1xi1>
    %48 = vector.broadcast %47 : vector<17x1x1xi1> to vector<17x16x8xi1>
    %49 = vector.broadcast %cst_15 : f32 to vector<17x16x8xf32>
    %50 = arith.select %48, %39, %49 : vector<17x16x8xi1>, vector<17x16x8xf32>
    %cst_16 = arith.constant -3.000000e+38 : f32
    %51 = vector.broadcast %cst_16 : f32 to vector<17x1x8xf32>
    %c0_17 = arith.constant 0 : index
    %c0_18 = arith.constant 0 : index
    %c0_19 = arith.constant 0 : index
    %52 = vector.load %arg7[%c0_17, %c0_18, %c0_19] : memref<17x18x8xf32, #tpu.memory_space<vmem>>, vector<17x1x8xf32>
    tpu.vector_store %arg7[%c0_17, %c0_18, %c0_19], %51 {strides = array<i32>} : memref<17x18x8xf32, #tpu.memory_space<vmem>>, vector<17x1x8xf32>,
    %cst_20 = arith.constant -3.000000e+38 : f32
    %53 = vector.broadcast %cst_20 : f32 to vector<17x1x8xf32>
    %c0_21 = arith.constant 0 : index
    %c17 = arith.constant 17 : index
    %c0_22 = arith.constant 0 : index
    %54 = vector.load %arg7[%c0_21, %c17, %c0_22] : memref<17x18x8xf32, #tpu.memory_space<vmem>>, vector<17x1x8xf32>
    tpu.vector_store %arg7[%c0_21, %c17, %c0_22], %53 {strides = array<i32>} : memref<17x18x8xf32, #tpu.memory_space<vmem>>, vector<17x1x8xf32>,
    %c0_23 = arith.constant 0 : index
    %c1_24 = arith.constant 1 : index
    %c0_25 = arith.constant 0 : index
    %55 = vector.load %arg7[%c0_23, %c1_24, %c0_25] : memref<17x18x8xf32, #tpu.memory_space<vmem>>, vector<17x16x8xf32>
    tpu.vector_store %arg7[%c0_23, %c1_24, %c0_25], %50 {strides = array<i32>} : memref<17x18x8xf32, #tpu.memory_space<vmem>>, vector<17x16x8xf32>,
    %c0_26 = arith.constant 0 : index
    %c0_27 = arith.constant 0 : index
    %c0_28 = arith.constant 0 : index
    %56 = tpu.strided_load %arg7[%c0_26, %c0_27, %c0_28] {strides = array<i32: 1, 2, 1>} : memref<17x18x8xf32, #tpu.memory_space<vmem>>, vector<17x8x8xf32>
    %c0_29 = arith.constant 0 : index
    %c1_30 = arith.constant 1 : index
    %c0_31 = arith.constant 0 : index
    %57 = tpu.strided_load %arg7[%c0_29, %c1_30, %c0_31] {strides = array<i32: 1, 2, 1>} : memref<17x18x8xf32, #tpu.memory_space<vmem>>, vector<17x8x8xf32>
    %c0_32 = arith.constant 0 : index
    %c2_33 = arith.constant 2 : index
    %c0_34 = arith.constant 0 : index
    %58 = tpu.strided_load %arg7[%c0_32, %c2_33, %c0_34] {strides = array<i32: 1, 2, 1>} : memref<17x18x8xf32, #tpu.memory_space<vmem>>, vector<17x8x8xf32>
    %59 = arith.maximumf %56, %57 : vector<17x8x8xf32>
    %60 = arith.maximumf %59, %58 : vector<17x8x8xf32>
    %c0_35 = arith.constant 0 : index
    %c0_36 = arith.constant 0 : index
    %c0_37 = arith.constant 0 : index
    %61 = vector.load %arg8[%c0_35, %c0_36, %c0_37] : memref<17x8x8xf32, #tpu.memory_space<vmem>>, vector<17x8x8xf32>
    tpu.vector_store %arg8[%c0_35, %c0_36, %c0_37], %60 {strides = array<i32>} : memref<17x8x8xf32, #tpu.memory_space<vmem>>, vector<17x8x8xf32>,
    %c0_38 = arith.constant 0 : index
    %c0_39 = arith.constant 0 : index
    %c0_40 = arith.constant 0 : index
    %62 = tpu.strided_load %arg8[%c0_38, %c0_39, %c0_40] {strides = array<i32: 2, 1, 1>} : memref<17x8x8xf32, #tpu.memory_space<vmem>>, vector<8x8x8xf32>
    %c1_41 = arith.constant 1 : index
    %c0_42 = arith.constant 0 : index
    %c0_43 = arith.constant 0 : index
    %63 = tpu.strided_load %arg8[%c1_41, %c0_42, %c0_43] {strides = array<i32: 2, 1, 1>} : memref<17x8x8xf32, #tpu.memory_space<vmem>>, vector<8x8x8xf32>
    %c2_44 = arith.constant 2 : index
    %c0_45 = arith.constant 0 : index
    %c0_46 = arith.constant 0 : index
    %64 = tpu.strided_load %arg8[%c2_44, %c0_45, %c0_46] {strides = array<i32: 2, 1, 1>} : memref<17x8x8xf32, #tpu.memory_space<vmem>>, vector<8x8x8xf32>
    %65 = arith.maximumf %62, %63 : vector<8x8x8xf32>
    %66 = arith.maximumf %65, %64 : vector<8x8x8xf32>
    %67 = vector.shape_cast %66 : vector<8x8x8xf32> to vector<1x8x8x8xf32>
    %68 = arith.truncf %67 : vector<1x8x8x8xf32> to vector<1x8x8x8xbf16>
    %c0_47 = arith.constant 0 : index
    %c0_48 = arith.constant 0 : index
    %c0_49 = arith.constant 0 : index
    %c0_50 = arith.constant 0 : index
    %69 = vector.load %arg5[%c0_47, %c0_48, %c0_49, %c0_50] : memref<1x8x8x8xbf16, #tpu.memory_space<vmem>>, vector<1x8x8x8xbf16>
    tpu.vector_store %arg5[%c0_47, %c0_48, %c0_49, %c0_50], %68 {strides = array<i32>} : memref<1x8x8x8xbf16, #tpu.memory_space<vmem>>, vector<1x8x8x8xbf16>,
    return
  }
  func.func @transform_0(%arg0: i32, %arg1: i32) -> (i32, i32, i32, i32) {
    %c0_i32 = arith.constant 0 : i32
    %c0_i32_0 = arith.constant 0 : i32
    %c0_i32_1 = arith.constant 0 : i32
    %c0_i32_2 = arith.constant 0 : i32
    return %arg0, %c0_i32, %c0_i32_0, %c0_i32_1 : i32, i32, i32, i32
  }
  func.func @transform_1(%arg0: i32, %arg1: i32) -> (i32, i32, i32) {
    %c0_i32 = arith.constant 0 : i32
    %c0_i32_0 = arith.constant 0 : i32
    %c0_i32_1 = arith.constant 0 : i32
    %c0_i32_2 = arith.constant 0 : i32
    return %c0_i32, %c0_i32_0, %c0_i32_1 : i32, i32, i32
  }
  func.func @transform_2(%arg0: i32, %arg1: i32) -> (i32, i32) {
    %c0_i32 = arith.constant 0 : i32
    %c0_i32_0 = arith.constant 0 : i32
    %c0_i32_1 = arith.constant 0 : i32
    return %c0_i32, %c0_i32_0 : i32, i32
  }
  func.func @transform_3(%arg0: i32, %arg1: i32) -> (i32, i32, i32, i32) {
    %c0_i32 = arith.constant 0 : i32
    %c0_i32_0 = arith.constant 0 : i32
    %c0_i32_1 = arith.constant 0 : i32
    return %arg0, %arg1, %c0_i32, %c0_i32_0 : i32, i32, i32, i32
  }
}

module attributes {stable_mosaic.version = 11 : i64} {
  func.func @kernel(%arg0: i32, %arg1: i32, %arg2: memref<1x8x8x8xbf16, #tpu.memory_space<vmem>>, %arg3: memref<3x24x8xbf16, #tpu.memory_space<vmem>>, %arg4: memref<1x8xf32, #tpu.memory_space<vmem>>, %arg5: memref<1x8x8x8xbf16, #tpu.memory_space<vmem>>, %arg6: memref<10x10x8xbf16, #tpu.memory_space<vmem>>) attributes {dimension_semantics = [#tpu.dimension_semantics<parallel>, #tpu.dimension_semantics<arbitrary>], iteration_bounds = array<i64: 2, 1>, scalar_prefetch = 0 : i64, scratch_operands = 1 : i64, tpu.core_type = #tpu.core_type<tc>, window_params = [{transform_indices = @transform_0, window_bounds = array<i64: 1, 8, 8, 8>}, {pipeline_mode = #tpu.pipeline_mode<synchronous>, transform_indices = @transform_1, window_bounds = array<i64: 3, 24, 8>}, {pipeline_mode = #tpu.pipeline_mode<synchronous>, transform_indices = @transform_2, window_bounds = array<i64: 1, 8>}, {transform_indices = @transform_3, window_bounds = array<i64: 1, 8, 8, 8>}]} {
    %c0_i32 = arith.constant 0 : i32
    %0 = arith.cmpi eq, %arg1, %c0_i32 : i32
    %1 = arith.extui %0 : i1 to i32
    %c0_i32_0 = arith.constant 0 : i32
    %2 = arith.cmpi ne, %1, %c0_i32_0 : i32
    scf.if %2 {
      %c0_17 = arith.constant 0 : index
      %c0_18 = arith.constant 0 : index
      %c0_19 = arith.constant 0 : index
      %c0_20 = arith.constant 0 : index
      %42 = vector.load %arg2[%c0_17, %c0_18, %c0_19, %c0_20] : memref<1x8x8x8xbf16, #tpu.memory_space<vmem>>, vector<1x8x8x8xbf16>
      %43 = vector.shape_cast %42 : vector<1x8x8x8xbf16> to vector<8x8x8xbf16>
      %cst_21 = arith.constant 0.000000e+00 : bf16
      %44 = vector.broadcast %cst_21 : bf16 to vector<8x8x8xbf16>
      %45 = arith.maximumf %43, %44 : vector<8x8x8xbf16>
      %cst_22 = arith.constant 0.000000e+00 : bf16
      %46 = vector.broadcast %cst_22 : bf16 to vector<10x10x8xbf16>
      %c0_23 = arith.constant 0 : index
      %c0_24 = arith.constant 0 : index
      %c0_25 = arith.constant 0 : index
      %47 = vector.load %arg6[%c0_23, %c0_24, %c0_25] : memref<10x10x8xbf16, #tpu.memory_space<vmem>>, vector<10x10x8xbf16>
      tpu.vector_store %arg6[%c0_23, %c0_24, %c0_25], %46 {strides = array<i32>} : memref<10x10x8xbf16, #tpu.memory_space<vmem>>, vector<10x10x8xbf16>,
      %c1_26 = arith.constant 1 : index
      %c1_27 = arith.constant 1 : index
      %c0_28 = arith.constant 0 : index
      %48 = vector.load %arg6[%c1_26, %c1_27, %c0_28] : memref<10x10x8xbf16, #tpu.memory_space<vmem>>, vector<8x8x8xbf16>
      tpu.vector_store %arg6[%c1_26, %c1_27, %c0_28], %45 {strides = array<i32>} : memref<10x10x8xbf16, #tpu.memory_space<vmem>>, vector<8x8x8xbf16>,
    } else {
    }
    %c8_i32 = arith.constant 8 : i32
    %3 = arith.muli %arg1, %c8_i32 : i32
    %4 = tpu.assume_multiple %3, 8 : i32
    %5 = arith.index_cast %4 : i32 to index
    %c0 = arith.constant 0 : index
    %c0_1 = arith.constant 0 : index
    %6 = vector.load %arg6[%5, %c0, %c0_1] : memref<10x10x8xbf16, #tpu.memory_space<vmem>>, vector<10x10x8xbf16>
    %c0_2 = arith.constant 0 : index
    %c0_3 = arith.constant 0 : index
    %7 = vector.load %arg4[%c0_2, %c0_3] : memref<1x8xf32, #tpu.memory_space<vmem>>, vector<1x8xf32>
    %8 = vector.extract_strided_slice %6 {offsets = [0, 0, 0], sizes = [8, 10, 8], strides = [1, 1, 1]} : vector<10x10x8xbf16> to vector<8x10x8xbf16>
    %9 = vector.extract_strided_slice %8 {offsets = [0, 0, 0], sizes = [8, 8, 8], strides = [1, 1, 1]} : vector<8x10x8xbf16> to vector<8x8x8xbf16>
    %10 = vector.extract_strided_slice %8 {offsets = [0, 1, 0], sizes = [8, 8, 8], strides = [1, 1, 1]} : vector<8x10x8xbf16> to vector<8x8x8xbf16>
    %11 = vector.extract_strided_slice %8 {offsets = [0, 2, 0], sizes = [8, 8, 8], strides = [1, 1, 1]} : vector<8x10x8xbf16> to vector<8x8x8xbf16>
    %12 = tpu.concatenate %9, %10, %11 in 2 : vector<8x8x8xbf16>, vector<8x8x8xbf16>, vector<8x8x8xbf16> -> vector<8x8x24xbf16>
    %13 = vector.shape_cast %12 : vector<8x8x24xbf16> to vector<64x24xbf16>
    %c0_4 = arith.constant 0 : index
    %c0_5 = arith.constant 0 : index
    %c0_6 = arith.constant 0 : index
    %14 = vector.load %arg3[%c0_4, %c0_5, %c0_6] : memref<3x24x8xbf16, #tpu.memory_space<vmem>>, vector<1x24x8xbf16>
    %15 = vector.shape_cast %14 : vector<1x24x8xbf16> to vector<24x8xbf16>
    %cst = arith.constant dense<0.000000e+00> : vector<64x8xf32>
    %16 = tpu.matmul %13, %15, %cst {dimension_numbers = #tpu.dot_dimension_numbers<[1], [0], [0], [1], [0, 0, 1, 1], [], []>} : vector<64x24xbf16>, vector<24x8xbf16>, vector<64x8xf32> -> vector<64x8xf32>
    %17 = vector.broadcast %7 : vector<1x8xf32> to vector<64x8xf32>
    %18 = arith.addf %17, %16 : vector<64x8xf32>
    %19 = vector.extract_strided_slice %6 {offsets = [1, 0, 0], sizes = [8, 10, 8], strides = [1, 1, 1]} : vector<10x10x8xbf16> to vector<8x10x8xbf16>
    %20 = vector.extract_strided_slice %19 {offsets = [0, 0, 0], sizes = [8, 8, 8], strides = [1, 1, 1]} : vector<8x10x8xbf16> to vector<8x8x8xbf16>
    %21 = vector.extract_strided_slice %19 {offsets = [0, 1, 0], sizes = [8, 8, 8], strides = [1, 1, 1]} : vector<8x10x8xbf16> to vector<8x8x8xbf16>
    %22 = vector.extract_strided_slice %19 {offsets = [0, 2, 0], sizes = [8, 8, 8], strides = [1, 1, 1]} : vector<8x10x8xbf16> to vector<8x8x8xbf16>
    %23 = tpu.concatenate %20, %21, %22 in 2 : vector<8x8x8xbf16>, vector<8x8x8xbf16>, vector<8x8x8xbf16> -> vector<8x8x24xbf16>
    %24 = vector.shape_cast %23 : vector<8x8x24xbf16> to vector<64x24xbf16>
    %c1 = arith.constant 1 : index
    %c0_7 = arith.constant 0 : index
    %c0_8 = arith.constant 0 : index
    %25 = vector.load %arg3[%c1, %c0_7, %c0_8] : memref<3x24x8xbf16, #tpu.memory_space<vmem>>, vector<1x24x8xbf16>
    %26 = vector.shape_cast %25 : vector<1x24x8xbf16> to vector<24x8xbf16>
    %cst_9 = arith.constant dense<0.000000e+00> : vector<64x8xf32>
    %27 = tpu.matmul %24, %26, %cst_9 {dimension_numbers = #tpu.dot_dimension_numbers<[1], [0], [0], [1], [0, 0, 1, 1], [], []>} : vector<64x24xbf16>, vector<24x8xbf16>, vector<64x8xf32> -> vector<64x8xf32>
    %28 = arith.addf %18, %27 : vector<64x8xf32>
    %29 = vector.extract_strided_slice %6 {offsets = [2, 0, 0], sizes = [8, 10, 8], strides = [1, 1, 1]} : vector<10x10x8xbf16> to vector<8x10x8xbf16>
    %30 = vector.extract_strided_slice %29 {offsets = [0, 0, 0], sizes = [8, 8, 8], strides = [1, 1, 1]} : vector<8x10x8xbf16> to vector<8x8x8xbf16>
    %31 = vector.extract_strided_slice %29 {offsets = [0, 1, 0], sizes = [8, 8, 8], strides = [1, 1, 1]} : vector<8x10x8xbf16> to vector<8x8x8xbf16>
    %32 = vector.extract_strided_slice %29 {offsets = [0, 2, 0], sizes = [8, 8, 8], strides = [1, 1, 1]} : vector<8x10x8xbf16> to vector<8x8x8xbf16>
    %33 = tpu.concatenate %30, %31, %32 in 2 : vector<8x8x8xbf16>, vector<8x8x8xbf16>, vector<8x8x8xbf16> -> vector<8x8x24xbf16>
    %34 = vector.shape_cast %33 : vector<8x8x24xbf16> to vector<64x24xbf16>
    %c2 = arith.constant 2 : index
    %c0_10 = arith.constant 0 : index
    %c0_11 = arith.constant 0 : index
    %35 = vector.load %arg3[%c2, %c0_10, %c0_11] : memref<3x24x8xbf16, #tpu.memory_space<vmem>>, vector<1x24x8xbf16>
    %36 = vector.shape_cast %35 : vector<1x24x8xbf16> to vector<24x8xbf16>
    %cst_12 = arith.constant dense<0.000000e+00> : vector<64x8xf32>
    %37 = tpu.matmul %34, %36, %cst_12 {dimension_numbers = #tpu.dot_dimension_numbers<[1], [0], [0], [1], [0, 0, 1, 1], [], []>} : vector<64x24xbf16>, vector<24x8xbf16>, vector<64x8xf32> -> vector<64x8xf32>
    %38 = arith.addf %28, %37 : vector<64x8xf32>
    %39 = vector.shape_cast %38 : vector<64x8xf32> to vector<1x8x8x8xf32>
    %40 = arith.truncf %39 : vector<1x8x8x8xf32> to vector<1x8x8x8xbf16>
    %c0_13 = arith.constant 0 : index
    %c0_14 = arith.constant 0 : index
    %c0_15 = arith.constant 0 : index
    %c0_16 = arith.constant 0 : index
    %41 = vector.load %arg5[%c0_13, %c0_14, %c0_15, %c0_16] : memref<1x8x8x8xbf16, #tpu.memory_space<vmem>>, vector<1x8x8x8xbf16>
    tpu.vector_store %arg5[%c0_13, %c0_14, %c0_15, %c0_16], %40 {strides = array<i32>} : memref<1x8x8x8xbf16, #tpu.memory_space<vmem>>, vector<1x8x8x8xbf16>,
    return
  }
  func.func @transform_0(%arg0: i32, %arg1: i32) -> (i32, i32, i32, i32) {
    %c0_i32 = arith.constant 0 : i32
    %c0_i32_0 = arith.constant 0 : i32
    %c0_i32_1 = arith.constant 0 : i32
    %c0_i32_2 = arith.constant 0 : i32
    return %arg0, %c0_i32, %c0_i32_0, %c0_i32_1 : i32, i32, i32, i32
  }
  func.func @transform_1(%arg0: i32, %arg1: i32) -> (i32, i32, i32) {
    %c0_i32 = arith.constant 0 : i32
    %c0_i32_0 = arith.constant 0 : i32
    %c0_i32_1 = arith.constant 0 : i32
    %c0_i32_2 = arith.constant 0 : i32
    return %c0_i32, %c0_i32_0, %c0_i32_1 : i32, i32, i32
  }
  func.func @transform_2(%arg0: i32, %arg1: i32) -> (i32, i32) {
    %c0_i32 = arith.constant 0 : i32
    %c0_i32_0 = arith.constant 0 : i32
    %c0_i32_1 = arith.constant 0 : i32
    return %c0_i32, %c0_i32_0 : i32, i32
  }
  func.func @transform_3(%arg0: i32, %arg1: i32) -> (i32, i32, i32, i32) {
    %c0_i32 = arith.constant 0 : i32
    %c0_i32_0 = arith.constant 0 : i32
    %c0_i32_1 = arith.constant 0 : i32
    return %arg0, %arg1, %c0_i32, %c0_i32_0 : i32, i32, i32, i32
  }
}

module attributes {stable_mosaic.version = 11 : i64} {
  func.func @kernel(%arg0: i32, %arg1: i32, %arg2: memref<1x8x8x8xbf16, #tpu.memory_space<vmem>>, %arg3: memref<3x24x8xbf16, #tpu.memory_space<vmem>>, %arg4: memref<1x8xf32, #tpu.memory_space<vmem>>, %arg5: memref<1x8x8x8xbf16, #tpu.memory_space<vmem>>, %arg6: memref<1x8x8x8xbf16, #tpu.memory_space<vmem>>, %arg7: memref<10x10x8xbf16, #tpu.memory_space<vmem>>) attributes {dimension_semantics = [#tpu.dimension_semantics<parallel>, #tpu.dimension_semantics<arbitrary>], iteration_bounds = array<i64: 2, 1>, scalar_prefetch = 0 : i64, scratch_operands = 1 : i64, tpu.core_type = #tpu.core_type<tc>, window_params = [{transform_indices = @transform_0, window_bounds = array<i64: 1, 8, 8, 8>}, {pipeline_mode = #tpu.pipeline_mode<synchronous>, transform_indices = @transform_1, window_bounds = array<i64: 3, 24, 8>}, {pipeline_mode = #tpu.pipeline_mode<synchronous>, transform_indices = @transform_2, window_bounds = array<i64: 1, 8>}, {transform_indices = @transform_3, window_bounds = array<i64: 1, 8, 8, 8>}, {transform_indices = @transform_4, window_bounds = array<i64: 1, 8, 8, 8>}]} {
    %c0_i32 = arith.constant 0 : i32
    %0 = arith.cmpi eq, %arg1, %c0_i32 : i32
    %1 = arith.extui %0 : i1 to i32
    %c0_i32_0 = arith.constant 0 : i32
    %2 = arith.cmpi ne, %1, %c0_i32_0 : i32
    scf.if %2 {
      %c0_21 = arith.constant 0 : index
      %c0_22 = arith.constant 0 : index
      %c0_23 = arith.constant 0 : index
      %c0_24 = arith.constant 0 : index
      %46 = vector.load %arg2[%c0_21, %c0_22, %c0_23, %c0_24] : memref<1x8x8x8xbf16, #tpu.memory_space<vmem>>, vector<1x8x8x8xbf16>
      %47 = vector.shape_cast %46 : vector<1x8x8x8xbf16> to vector<8x8x8xbf16>
      %cst_25 = arith.constant 0.000000e+00 : bf16
      %48 = vector.broadcast %cst_25 : bf16 to vector<8x8x8xbf16>
      %49 = arith.maximumf %47, %48 : vector<8x8x8xbf16>
      %cst_26 = arith.constant 0.000000e+00 : bf16
      %50 = vector.broadcast %cst_26 : bf16 to vector<10x10x8xbf16>
      %c0_27 = arith.constant 0 : index
      %c0_28 = arith.constant 0 : index
      %c0_29 = arith.constant 0 : index
      %51 = vector.load %arg7[%c0_27, %c0_28, %c0_29] : memref<10x10x8xbf16, #tpu.memory_space<vmem>>, vector<10x10x8xbf16>
      tpu.vector_store %arg7[%c0_27, %c0_28, %c0_29], %50 {strides = array<i32>} : memref<10x10x8xbf16, #tpu.memory_space<vmem>>, vector<10x10x8xbf16>,
      %c1_30 = arith.constant 1 : index
      %c1_31 = arith.constant 1 : index
      %c0_32 = arith.constant 0 : index
      %52 = vector.load %arg7[%c1_30, %c1_31, %c0_32] : memref<10x10x8xbf16, #tpu.memory_space<vmem>>, vector<8x8x8xbf16>
      tpu.vector_store %arg7[%c1_30, %c1_31, %c0_32], %49 {strides = array<i32>} : memref<10x10x8xbf16, #tpu.memory_space<vmem>>, vector<8x8x8xbf16>,
    } else {
    }
    %c8_i32 = arith.constant 8 : i32
    %3 = arith.muli %arg1, %c8_i32 : i32
    %4 = tpu.assume_multiple %3, 8 : i32
    %5 = arith.index_cast %4 : i32 to index
    %c0 = arith.constant 0 : index
    %c0_1 = arith.constant 0 : index
    %6 = vector.load %arg7[%5, %c0, %c0_1] : memref<10x10x8xbf16, #tpu.memory_space<vmem>>, vector<10x10x8xbf16>
    %c0_2 = arith.constant 0 : index
    %c0_3 = arith.constant 0 : index
    %7 = vector.load %arg4[%c0_2, %c0_3] : memref<1x8xf32, #tpu.memory_space<vmem>>, vector<1x8xf32>
    %8 = vector.extract_strided_slice %6 {offsets = [0, 0, 0], sizes = [8, 10, 8], strides = [1, 1, 1]} : vector<10x10x8xbf16> to vector<8x10x8xbf16>
    %9 = vector.extract_strided_slice %8 {offsets = [0, 0, 0], sizes = [8, 8, 8], strides = [1, 1, 1]} : vector<8x10x8xbf16> to vector<8x8x8xbf16>
    %10 = vector.extract_strided_slice %8 {offsets = [0, 1, 0], sizes = [8, 8, 8], strides = [1, 1, 1]} : vector<8x10x8xbf16> to vector<8x8x8xbf16>
    %11 = vector.extract_strided_slice %8 {offsets = [0, 2, 0], sizes = [8, 8, 8], strides = [1, 1, 1]} : vector<8x10x8xbf16> to vector<8x8x8xbf16>
    %12 = tpu.concatenate %9, %10, %11 in 2 : vector<8x8x8xbf16>, vector<8x8x8xbf16>, vector<8x8x8xbf16> -> vector<8x8x24xbf16>
    %13 = vector.shape_cast %12 : vector<8x8x24xbf16> to vector<64x24xbf16>
    %c0_4 = arith.constant 0 : index
    %c0_5 = arith.constant 0 : index
    %c0_6 = arith.constant 0 : index
    %14 = vector.load %arg3[%c0_4, %c0_5, %c0_6] : memref<3x24x8xbf16, #tpu.memory_space<vmem>>, vector<1x24x8xbf16>
    %15 = vector.shape_cast %14 : vector<1x24x8xbf16> to vector<24x8xbf16>
    %cst = arith.constant dense<0.000000e+00> : vector<64x8xf32>
    %16 = tpu.matmul %13, %15, %cst {dimension_numbers = #tpu.dot_dimension_numbers<[1], [0], [0], [1], [0, 0, 1, 1], [], []>} : vector<64x24xbf16>, vector<24x8xbf16>, vector<64x8xf32> -> vector<64x8xf32>
    %17 = vector.broadcast %7 : vector<1x8xf32> to vector<64x8xf32>
    %18 = arith.addf %17, %16 : vector<64x8xf32>
    %19 = vector.extract_strided_slice %6 {offsets = [1, 0, 0], sizes = [8, 10, 8], strides = [1, 1, 1]} : vector<10x10x8xbf16> to vector<8x10x8xbf16>
    %20 = vector.extract_strided_slice %19 {offsets = [0, 0, 0], sizes = [8, 8, 8], strides = [1, 1, 1]} : vector<8x10x8xbf16> to vector<8x8x8xbf16>
    %21 = vector.extract_strided_slice %19 {offsets = [0, 1, 0], sizes = [8, 8, 8], strides = [1, 1, 1]} : vector<8x10x8xbf16> to vector<8x8x8xbf16>
    %22 = vector.extract_strided_slice %19 {offsets = [0, 2, 0], sizes = [8, 8, 8], strides = [1, 1, 1]} : vector<8x10x8xbf16> to vector<8x8x8xbf16>
    %23 = tpu.concatenate %20, %21, %22 in 2 : vector<8x8x8xbf16>, vector<8x8x8xbf16>, vector<8x8x8xbf16> -> vector<8x8x24xbf16>
    %24 = vector.shape_cast %23 : vector<8x8x24xbf16> to vector<64x24xbf16>
    %c1 = arith.constant 1 : index
    %c0_7 = arith.constant 0 : index
    %c0_8 = arith.constant 0 : index
    %25 = vector.load %arg3[%c1, %c0_7, %c0_8] : memref<3x24x8xbf16, #tpu.memory_space<vmem>>, vector<1x24x8xbf16>
    %26 = vector.shape_cast %25 : vector<1x24x8xbf16> to vector<24x8xbf16>
    %cst_9 = arith.constant dense<0.000000e+00> : vector<64x8xf32>
    %27 = tpu.matmul %24, %26, %cst_9 {dimension_numbers = #tpu.dot_dimension_numbers<[1], [0], [0], [1], [0, 0, 1, 1], [], []>} : vector<64x24xbf16>, vector<24x8xbf16>, vector<64x8xf32> -> vector<64x8xf32>
    %28 = arith.addf %18, %27 : vector<64x8xf32>
    %29 = vector.extract_strided_slice %6 {offsets = [2, 0, 0], sizes = [8, 10, 8], strides = [1, 1, 1]} : vector<10x10x8xbf16> to vector<8x10x8xbf16>
    %30 = vector.extract_strided_slice %29 {offsets = [0, 0, 0], sizes = [8, 8, 8], strides = [1, 1, 1]} : vector<8x10x8xbf16> to vector<8x8x8xbf16>
    %31 = vector.extract_strided_slice %29 {offsets = [0, 1, 0], sizes = [8, 8, 8], strides = [1, 1, 1]} : vector<8x10x8xbf16> to vector<8x8x8xbf16>
    %32 = vector.extract_strided_slice %29 {offsets = [0, 2, 0], sizes = [8, 8, 8], strides = [1, 1, 1]} : vector<8x10x8xbf16> to vector<8x8x8xbf16>
    %33 = tpu.concatenate %30, %31, %32 in 2 : vector<8x8x8xbf16>, vector<8x8x8xbf16>, vector<8x8x8xbf16> -> vector<8x8x24xbf16>
    %34 = vector.shape_cast %33 : vector<8x8x24xbf16> to vector<64x24xbf16>
    %c2 = arith.constant 2 : index
    %c0_10 = arith.constant 0 : index
    %c0_11 = arith.constant 0 : index
    %35 = vector.load %arg3[%c2, %c0_10, %c0_11] : memref<3x24x8xbf16, #tpu.memory_space<vmem>>, vector<1x24x8xbf16>
    %36 = vector.shape_cast %35 : vector<1x24x8xbf16> to vector<24x8xbf16>
    %cst_12 = arith.constant dense<0.000000e+00> : vector<64x8xf32>
    %37 = tpu.matmul %34, %36, %cst_12 {dimension_numbers = #tpu.dot_dimension_numbers<[1], [0], [0], [1], [0, 0, 1, 1], [], []>} : vector<64x24xbf16>, vector<24x8xbf16>, vector<64x8xf32> -> vector<64x8xf32>
    %38 = arith.addf %28, %37 : vector<64x8xf32>
    %c0_13 = arith.constant 0 : index
    %c0_14 = arith.constant 0 : index
    %c0_15 = arith.constant 0 : index
    %c0_16 = arith.constant 0 : index
    %39 = vector.load %arg5[%c0_13, %c0_14, %c0_15, %c0_16] : memref<1x8x8x8xbf16, #tpu.memory_space<vmem>>, vector<1x8x8x8xbf16>
    %40 = vector.shape_cast %39 : vector<1x8x8x8xbf16> to vector<64x8xbf16>
    %41 = arith.extf %40 : vector<64x8xbf16> to vector<64x8xf32>
    %42 = arith.addf %38, %41 : vector<64x8xf32>
    %43 = vector.shape_cast %42 : vector<64x8xf32> to vector<1x8x8x8xf32>
    %44 = arith.truncf %43 : vector<1x8x8x8xf32> to vector<1x8x8x8xbf16>
    %c0_17 = arith.constant 0 : index
    %c0_18 = arith.constant 0 : index
    %c0_19 = arith.constant 0 : index
    %c0_20 = arith.constant 0 : index
    %45 = vector.load %arg6[%c0_17, %c0_18, %c0_19, %c0_20] : memref<1x8x8x8xbf16, #tpu.memory_space<vmem>>, vector<1x8x8x8xbf16>
    tpu.vector_store %arg6[%c0_17, %c0_18, %c0_19, %c0_20], %44 {strides = array<i32>} : memref<1x8x8x8xbf16, #tpu.memory_space<vmem>>, vector<1x8x8x8xbf16>,
    return
  }
  func.func @transform_0(%arg0: i32, %arg1: i32) -> (i32, i32, i32, i32) {
    %c0_i32 = arith.constant 0 : i32
    %c0_i32_0 = arith.constant 0 : i32
    %c0_i32_1 = arith.constant 0 : i32
    %c0_i32_2 = arith.constant 0 : i32
    return %arg0, %c0_i32, %c0_i32_0, %c0_i32_1 : i32, i32, i32, i32
  }
  func.func @transform_1(%arg0: i32, %arg1: i32) -> (i32, i32, i32) {
    %c0_i32 = arith.constant 0 : i32
    %c0_i32_0 = arith.constant 0 : i32
    %c0_i32_1 = arith.constant 0 : i32
    %c0_i32_2 = arith.constant 0 : i32
    return %c0_i32, %c0_i32_0, %c0_i32_1 : i32, i32, i32
  }
  func.func @transform_2(%arg0: i32, %arg1: i32) -> (i32, i32) {
    %c0_i32 = arith.constant 0 : i32
    %c0_i32_0 = arith.constant 0 : i32
    %c0_i32_1 = arith.constant 0 : i32
    return %c0_i32, %c0_i32_0 : i32, i32
  }
  func.func @transform_3(%arg0: i32, %arg1: i32) -> (i32, i32, i32, i32) {
    %c0_i32 = arith.constant 0 : i32
    %c0_i32_0 = arith.constant 0 : i32
    %c0_i32_1 = arith.constant 0 : i32
    return %arg0, %arg1, %c0_i32, %c0_i32_0 : i32, i32, i32, i32
  }
  func.func @transform_4(%arg0: i32, %arg1: i32) -> (i32, i32, i32, i32) {
    %c0_i32 = arith.constant 0 : i32
    %c0_i32_0 = arith.constant 0 : i32
    %c0_i32_1 = arith.constant 0 : i32
    return %arg0, %arg1, %c0_i32, %c0_i32_0 : i32, i32, i32, i32
  }
}

module attributes {stable_mosaic.version = 11 : i64} {
  func.func @kernel(%arg0: i32, %arg1: i32, %arg2: memref<1x8x8x8xbf16, #tpu.memory_space<vmem>>, %arg3: memref<3x24x8xbf16, #tpu.memory_space<vmem>>, %arg4: memref<1x8xf32, #tpu.memory_space<vmem>>, %arg5: memref<1x8x8x8xbf16, #tpu.memory_space<vmem>>, %arg6: memref<1x8x8x8xf32, #tpu.memory_space<vmem>>, %arg7: memref<10x10x8xbf16, #tpu.memory_space<vmem>>) attributes {dimension_semantics = [#tpu.dimension_semantics<parallel>, #tpu.dimension_semantics<arbitrary>], iteration_bounds = array<i64: 2, 1>, scalar_prefetch = 0 : i64, scratch_operands = 1 : i64, tpu.core_type = #tpu.core_type<tc>, window_params = [{transform_indices = @transform_0, window_bounds = array<i64: 1, 8, 8, 8>}, {pipeline_mode = #tpu.pipeline_mode<synchronous>, transform_indices = @transform_1, window_bounds = array<i64: 3, 24, 8>}, {pipeline_mode = #tpu.pipeline_mode<synchronous>, transform_indices = @transform_2, window_bounds = array<i64: 1, 8>}, {transform_indices = @transform_3, window_bounds = array<i64: 1, 8, 8, 8>}, {transform_indices = @transform_4, window_bounds = array<i64: 1, 8, 8, 8>}]} {
    %c0_i32 = arith.constant 0 : i32
    %0 = arith.cmpi eq, %arg1, %c0_i32 : i32
    %1 = arith.extui %0 : i1 to i32
    %c0_i32_0 = arith.constant 0 : i32
    %2 = arith.cmpi ne, %1, %c0_i32_0 : i32
    scf.if %2 {
      %c0_21 = arith.constant 0 : index
      %c0_22 = arith.constant 0 : index
      %c0_23 = arith.constant 0 : index
      %c0_24 = arith.constant 0 : index
      %45 = vector.load %arg2[%c0_21, %c0_22, %c0_23, %c0_24] : memref<1x8x8x8xbf16, #tpu.memory_space<vmem>>, vector<1x8x8x8xbf16>
      %46 = vector.shape_cast %45 : vector<1x8x8x8xbf16> to vector<8x8x8xbf16>
      %cst_25 = arith.constant 0.000000e+00 : bf16
      %47 = vector.broadcast %cst_25 : bf16 to vector<8x8x8xbf16>
      %48 = arith.maximumf %46, %47 : vector<8x8x8xbf16>
      %cst_26 = arith.constant 0.000000e+00 : bf16
      %49 = vector.broadcast %cst_26 : bf16 to vector<10x10x8xbf16>
      %c0_27 = arith.constant 0 : index
      %c0_28 = arith.constant 0 : index
      %c0_29 = arith.constant 0 : index
      %50 = vector.load %arg7[%c0_27, %c0_28, %c0_29] : memref<10x10x8xbf16, #tpu.memory_space<vmem>>, vector<10x10x8xbf16>
      tpu.vector_store %arg7[%c0_27, %c0_28, %c0_29], %49 {strides = array<i32>} : memref<10x10x8xbf16, #tpu.memory_space<vmem>>, vector<10x10x8xbf16>,
      %c1_30 = arith.constant 1 : index
      %c1_31 = arith.constant 1 : index
      %c0_32 = arith.constant 0 : index
      %51 = vector.load %arg7[%c1_30, %c1_31, %c0_32] : memref<10x10x8xbf16, #tpu.memory_space<vmem>>, vector<8x8x8xbf16>
      tpu.vector_store %arg7[%c1_30, %c1_31, %c0_32], %48 {strides = array<i32>} : memref<10x10x8xbf16, #tpu.memory_space<vmem>>, vector<8x8x8xbf16>,
    } else {
    }
    %c8_i32 = arith.constant 8 : i32
    %3 = arith.muli %arg1, %c8_i32 : i32
    %4 = tpu.assume_multiple %3, 8 : i32
    %5 = arith.index_cast %4 : i32 to index
    %c0 = arith.constant 0 : index
    %c0_1 = arith.constant 0 : index
    %6 = vector.load %arg7[%5, %c0, %c0_1] : memref<10x10x8xbf16, #tpu.memory_space<vmem>>, vector<10x10x8xbf16>
    %c0_2 = arith.constant 0 : index
    %c0_3 = arith.constant 0 : index
    %7 = vector.load %arg4[%c0_2, %c0_3] : memref<1x8xf32, #tpu.memory_space<vmem>>, vector<1x8xf32>
    %8 = vector.extract_strided_slice %6 {offsets = [0, 0, 0], sizes = [8, 10, 8], strides = [1, 1, 1]} : vector<10x10x8xbf16> to vector<8x10x8xbf16>
    %9 = vector.extract_strided_slice %8 {offsets = [0, 0, 0], sizes = [8, 8, 8], strides = [1, 1, 1]} : vector<8x10x8xbf16> to vector<8x8x8xbf16>
    %10 = vector.extract_strided_slice %8 {offsets = [0, 1, 0], sizes = [8, 8, 8], strides = [1, 1, 1]} : vector<8x10x8xbf16> to vector<8x8x8xbf16>
    %11 = vector.extract_strided_slice %8 {offsets = [0, 2, 0], sizes = [8, 8, 8], strides = [1, 1, 1]} : vector<8x10x8xbf16> to vector<8x8x8xbf16>
    %12 = tpu.concatenate %9, %10, %11 in 2 : vector<8x8x8xbf16>, vector<8x8x8xbf16>, vector<8x8x8xbf16> -> vector<8x8x24xbf16>
    %13 = vector.shape_cast %12 : vector<8x8x24xbf16> to vector<64x24xbf16>
    %c0_4 = arith.constant 0 : index
    %c0_5 = arith.constant 0 : index
    %c0_6 = arith.constant 0 : index
    %14 = vector.load %arg3[%c0_4, %c0_5, %c0_6] : memref<3x24x8xbf16, #tpu.memory_space<vmem>>, vector<1x24x8xbf16>
    %15 = vector.shape_cast %14 : vector<1x24x8xbf16> to vector<24x8xbf16>
    %cst = arith.constant dense<0.000000e+00> : vector<64x8xf32>
    %16 = tpu.matmul %13, %15, %cst {dimension_numbers = #tpu.dot_dimension_numbers<[1], [0], [0], [1], [0, 0, 1, 1], [], []>} : vector<64x24xbf16>, vector<24x8xbf16>, vector<64x8xf32> -> vector<64x8xf32>
    %17 = vector.broadcast %7 : vector<1x8xf32> to vector<64x8xf32>
    %18 = arith.addf %17, %16 : vector<64x8xf32>
    %19 = vector.extract_strided_slice %6 {offsets = [1, 0, 0], sizes = [8, 10, 8], strides = [1, 1, 1]} : vector<10x10x8xbf16> to vector<8x10x8xbf16>
    %20 = vector.extract_strided_slice %19 {offsets = [0, 0, 0], sizes = [8, 8, 8], strides = [1, 1, 1]} : vector<8x10x8xbf16> to vector<8x8x8xbf16>
    %21 = vector.extract_strided_slice %19 {offsets = [0, 1, 0], sizes = [8, 8, 8], strides = [1, 1, 1]} : vector<8x10x8xbf16> to vector<8x8x8xbf16>
    %22 = vector.extract_strided_slice %19 {offsets = [0, 2, 0], sizes = [8, 8, 8], strides = [1, 1, 1]} : vector<8x10x8xbf16> to vector<8x8x8xbf16>
    %23 = tpu.concatenate %20, %21, %22 in 2 : vector<8x8x8xbf16>, vector<8x8x8xbf16>, vector<8x8x8xbf16> -> vector<8x8x24xbf16>
    %24 = vector.shape_cast %23 : vector<8x8x24xbf16> to vector<64x24xbf16>
    %c1 = arith.constant 1 : index
    %c0_7 = arith.constant 0 : index
    %c0_8 = arith.constant 0 : index
    %25 = vector.load %arg3[%c1, %c0_7, %c0_8] : memref<3x24x8xbf16, #tpu.memory_space<vmem>>, vector<1x24x8xbf16>
    %26 = vector.shape_cast %25 : vector<1x24x8xbf16> to vector<24x8xbf16>
    %cst_9 = arith.constant dense<0.000000e+00> : vector<64x8xf32>
    %27 = tpu.matmul %24, %26, %cst_9 {dimension_numbers = #tpu.dot_dimension_numbers<[1], [0], [0], [1], [0, 0, 1, 1], [], []>} : vector<64x24xbf16>, vector<24x8xbf16>, vector<64x8xf32> -> vector<64x8xf32>
    %28 = arith.addf %18, %27 : vector<64x8xf32>
    %29 = vector.extract_strided_slice %6 {offsets = [2, 0, 0], sizes = [8, 10, 8], strides = [1, 1, 1]} : vector<10x10x8xbf16> to vector<8x10x8xbf16>
    %30 = vector.extract_strided_slice %29 {offsets = [0, 0, 0], sizes = [8, 8, 8], strides = [1, 1, 1]} : vector<8x10x8xbf16> to vector<8x8x8xbf16>
    %31 = vector.extract_strided_slice %29 {offsets = [0, 1, 0], sizes = [8, 8, 8], strides = [1, 1, 1]} : vector<8x10x8xbf16> to vector<8x8x8xbf16>
    %32 = vector.extract_strided_slice %29 {offsets = [0, 2, 0], sizes = [8, 8, 8], strides = [1, 1, 1]} : vector<8x10x8xbf16> to vector<8x8x8xbf16>
    %33 = tpu.concatenate %30, %31, %32 in 2 : vector<8x8x8xbf16>, vector<8x8x8xbf16>, vector<8x8x8xbf16> -> vector<8x8x24xbf16>
    %34 = vector.shape_cast %33 : vector<8x8x24xbf16> to vector<64x24xbf16>
    %c2 = arith.constant 2 : index
    %c0_10 = arith.constant 0 : index
    %c0_11 = arith.constant 0 : index
    %35 = vector.load %arg3[%c2, %c0_10, %c0_11] : memref<3x24x8xbf16, #tpu.memory_space<vmem>>, vector<1x24x8xbf16>
    %36 = vector.shape_cast %35 : vector<1x24x8xbf16> to vector<24x8xbf16>
    %cst_12 = arith.constant dense<0.000000e+00> : vector<64x8xf32>
    %37 = tpu.matmul %34, %36, %cst_12 {dimension_numbers = #tpu.dot_dimension_numbers<[1], [0], [0], [1], [0, 0, 1, 1], [], []>} : vector<64x24xbf16>, vector<24x8xbf16>, vector<64x8xf32> -> vector<64x8xf32>
    %38 = arith.addf %28, %37 : vector<64x8xf32>
    %c0_13 = arith.constant 0 : index
    %c0_14 = arith.constant 0 : index
    %c0_15 = arith.constant 0 : index
    %c0_16 = arith.constant 0 : index
    %39 = vector.load %arg5[%c0_13, %c0_14, %c0_15, %c0_16] : memref<1x8x8x8xbf16, #tpu.memory_space<vmem>>, vector<1x8x8x8xbf16>
    %40 = vector.shape_cast %39 : vector<1x8x8x8xbf16> to vector<64x8xbf16>
    %41 = arith.extf %40 : vector<64x8xbf16> to vector<64x8xf32>
    %42 = arith.addf %38, %41 : vector<64x8xf32>
    %43 = vector.shape_cast %42 : vector<64x8xf32> to vector<1x8x8x8xf32>
    %c0_17 = arith.constant 0 : index
    %c0_18 = arith.constant 0 : index
    %c0_19 = arith.constant 0 : index
    %c0_20 = arith.constant 0 : index
    %44 = vector.load %arg6[%c0_17, %c0_18, %c0_19, %c0_20] : memref<1x8x8x8xf32, #tpu.memory_space<vmem>>, vector<1x8x8x8xf32>
    tpu.vector_store %arg6[%c0_17, %c0_18, %c0_19, %c0_20], %43 {strides = array<i32>} : memref<1x8x8x8xf32, #tpu.memory_space<vmem>>, vector<1x8x8x8xf32>,
    return
  }
  func.func @transform_0(%arg0: i32, %arg1: i32) -> (i32, i32, i32, i32) {
    %c0_i32 = arith.constant 0 : i32
    %c0_i32_0 = arith.constant 0 : i32
    %c0_i32_1 = arith.constant 0 : i32
    %c0_i32_2 = arith.constant 0 : i32
    return %arg0, %c0_i32, %c0_i32_0, %c0_i32_1 : i32, i32, i32, i32
  }
  func.func @transform_1(%arg0: i32, %arg1: i32) -> (i32, i32, i32) {
    %c0_i32 = arith.constant 0 : i32
    %c0_i32_0 = arith.constant 0 : i32
    %c0_i32_1 = arith.constant 0 : i32
    %c0_i32_2 = arith.constant 0 : i32
    return %c0_i32, %c0_i32_0, %c0_i32_1 : i32, i32, i32
  }
  func.func @transform_2(%arg0: i32, %arg1: i32) -> (i32, i32) {
    %c0_i32 = arith.constant 0 : i32
    %c0_i32_0 = arith.constant 0 : i32
    %c0_i32_1 = arith.constant 0 : i32
    return %c0_i32, %c0_i32_0 : i32, i32
  }
  func.func @transform_3(%arg0: i32, %arg1: i32) -> (i32, i32, i32, i32) {
    %c0_i32 = arith.constant 0 : i32
    %c0_i32_0 = arith.constant 0 : i32
    %c0_i32_1 = arith.constant 0 : i32
    return %arg0, %arg1, %c0_i32, %c0_i32_0 : i32, i32, i32, i32
  }
  func.func @transform_4(%arg0: i32, %arg1: i32) -> (i32, i32, i32, i32) {
    %c0_i32 = arith.constant 0 : i32
    %c0_i32_0 = arith.constant 0 : i32
    %c0_i32_1 = arith.constant 0 : i32
    return %arg0, %arg1, %c0_i32, %c0_i32_0 : i32, i32, i32, i32
  }
}

</mosaic_0001>

<llo_original>
// kernel: impala_cnn_block.6
$region0: #{impala_cnn_block.6}
  #allocation0 [shape = 'u32[]', space=smem, size = 0x4, offset = 0x4, fixed_abs, tag = 'smem constant byte address 0x4 - core index']
  #allocation1 [shape = 'u32[144,128]{1,0:T(1,128)}', space=vmem, size = 0x12000, scoped, tag = 'internal scratch']
  #allocation2 [shape = 'bf16[10,10,8]{2,1,0:T(8,128)(2,1)}', space=vmem, size = 0xa000, scoped, tag = 'scratch operand']
  %s0 = inlined_call_operand.hbm [shape: bf16[2,8,8,8], index: 0, kind: input, shape index: {}]
  %s1 = inlined_call_operand.hbm [shape: bf16[3,24,8], index: 1, kind: input, shape index: {}]
  %s2 = inlined_call_operand.hbm [shape: f32[1,8], index: 2, kind: input, shape index: {}]
  %s3 = inlined_call_operand.hbm [shape: bf16[2,8,8,8], index: 3, kind: output, shape index: {}]
  %s4 = sld [smem:[#allocation0]]
  $region61: #{impala_cnn_block.6} parent=0
    _
  %s6 = ssub.s32 1, %s4
  %s7 = scalar_select 0, %s6, %s4
  $region1: #{impala_cnn_block.6} parent=0
    #allocation3 [shape = 'u8[32768]{0}', space=vmem, size = 0x8000, scoped, tag = 'input window, operand 0']
    #allocation4 [shape = 's32[2]{0}', space=sflag, size = 0x8, scoped, tag = 'scoped memory for impala_cnn_block.6']
    #allocation5 [shape = 's32[2]{0}', space=sflag, size = 0x8, scoped, tag = 'scoped memory for impala_cnn_block.6']
    #allocation6 [shape = 'u8[18432]{0}', space=vmem, size = 0x4800, scoped, tag = 'input window, operand 1, single buffered']
    #allocation7 [shape = 's32[1]{0}', space=sflag, size = 0x4, scoped, tag = 'scoped memory for impala_cnn_block.6']
    #allocation8 [shape = 'u8[512]{0}', space=vmem, size = 0x400, scoped, tag = 'input window, operand 2, single buffered']
    #allocation9 [shape = 'u8[32768]{0}', space=vmem, size = 0x8000, scoped, tag = 'output window, operand 0']
    %8 = vsyncpa [#allocation4], 0
    %s9 = scalar_lea.sflag [#allocation4], 1
    %10 = vsyncpa %s9, 0
    %11 = vsyncpa [#allocation7], 0
    %12 = vsyncpa [#allocation5], 0
    %s13 = scalar_lea.sflag [#allocation5], 1
    %14 = vsyncpa %s13, 0
    loop: start=0, step=1, limit=4
    $region2: #{impala_cnn_block.6} parent=1 // loop_pre_header
      _
    $region3: #{impala_cnn_block.6} parent=1 // loop_header
      %s16 = sphi 0, %s20
      %p17 = scmp.ge.s32.totalorder %s16, 4
      %s23 = sphi 0, %s35
      %s24 = sphi 0, %s31
      %s25 = sphi 0, %s23
      %s26 = sphi 0, %s24
      %s27 = sphi 0, %s25
      %s28 = sphi 0, %s26
      %s38 = sphi 0, %s40
      %s41 = sphi 0, %s38
      %s42 = sphi 0, %s41
      %s58 = sphi 0, %s42
      %s62 = sphi 0, %s62
      %s64 = sphi 0, %s62
      %s65 = sphi 0, %s64
      %s79 = sphi 0, %s65
      %s83 = sphi 0, %s83
      %s85 = sphi 0, %s83
      %s86 = sphi 0, %s85
      %s100 = sphi 0, %s86
      %s108 = sphi 0, %s110
      %s111 = sphi 0, %s108
      %s112 = sphi 0, %s111
      %s128 = sphi 0, %s112
    $region4: #{impala_cnn_block.6} parent=1 // loop_header_branch
      %19 = sbr.rel (%p17) target = $region8
    $region5: #{impala_cnn_block.6} parent=1 // loop_body
      %s21 = ssub.s32 %s16, 1
      %s22 = ssub.s32 %s16, 2
      %s29 = sadd.s32 1, %s24
      %p30 = scmp.ge.s32.totalorder %s29, 1
      %s31 = scalar_select %p30, 0, %s29
      %s32 = sadd.s32 1, %s23
      %s33 = scalar_select %p30, %s32, %s23
      %p34 = scmp.ge.s32.totalorder %s33, 2
      %s35 = scalar_select %p34, 0, %s33
      %s36 = ssub.s32 %s23, %s35
      %p37 = scmp.eq.s32.totalorder %s36, 0
      %s39 = sadd.s32 %s38, 1
      %s40 = scalar_select %p37, %s38, %s39
      %p43 = pneg %p37
      %p44 = scmp.eq.s32.totalorder %s16, 1
      %p45 = por %p43, %p44
      %p46 = scmp.ne.s32.totalorder %s38, %s41
      %p47 = scmp.eq.s32.totalorder %s16, 0
      %p48 = por %p46, %p47
      %p49 = scmp.ne.s32.totalorder %s38, %s41
      %p50 = scmp.eq.s32.totalorder %s21, 1
      %p51 = por %p49, %p50
      %p52 = scmp.ne.s32.totalorder %s41, %s42
      %p53 = scmp.eq.s32.totalorder %s21, 0
      %p54 = por %p52, %p53
      %p55 = scmp.ne.s32.totalorder %s41, %s42
      %p56 = scmp.eq.s32.totalorder %s22, 1
      %p57 = por %p55, %p56
      %p59 = scmp.ne.s32.totalorder %s42, %s58
      %p60 = scmp.eq.s32.totalorder %s22, 0
      %p61 = por %p59, %p60
      %s63 = sadd.s32 %s62, 1
      %p66 = scmp.eq.s32.totalorder %s16, 1
      %p67 = scmp.ne.s32.totalorder %s62, %s64
      %p68 = scmp.eq.s32.totalorder %s16, 0
      %p69 = por %p67, %p68
      %p70 = scmp.ne.s32.totalorder %s62, %s64
      %p71 = scmp.eq.s32.totalorder %s21, 1
      %p72 = por %p70, %p71
      %p73 = scmp.ne.s32.totalorder %s64, %s65
      %p74 = scmp.eq.s32.totalorder %s21, 0
      %p75 = por %p73, %p74
      %p76 = scmp.ne.s32.totalorder %s64, %s65
      %p77 = scmp.eq.s32.totalorder %s22, 1
      %p78 = por %p76, %p77
      %p80 = scmp.ne.s32.totalorder %s65, %s79
      %p81 = scmp.eq.s32.totalorder %s22, 0
      %p82 = por %p80, %p81
      %s84 = sadd.s32 %s83, 1
      %p87 = scmp.eq.s32.totalorder %s16, 1
      %p88 = scmp.ne.s32.totalorder %s83, %s85
      %p89 = scmp.eq.s32.totalorder %s16, 0
      %p90 = por %p88, %p89
      %p91 = scmp.ne.s32.totalorder %s83, %s85
      %p92 = scmp.eq.s32.totalorder %s21, 1
      %p93 = por %p91, %p92
      %p94 = scmp.ne.s32.totalorder %s85, %s86
      %p95 = scmp.eq.s32.totalorder %s21, 0
      %p96 = por %p94, %p95
      %p97 = scmp.ne.s32.totalorder %s85, %s86
      %p98 = scmp.eq.s32.totalorder %s22, 1
      %p99 = por %p97, %p98
      %p101 = scmp.ne.s32.totalorder %s86, %s100
      %p102 = scmp.eq.s32.totalorder %s22, 0
      %p103 = por %p101, %p102
      %s104 = ssub.s32 %s23, %s35
      %s105 = ssub.s32 %s24, %s31
      %s106 = sor.u32 %s104, %s105
      %p107 = scmp.eq.s32.totalorder %s106, 0
      %s109 = sadd.s32 %s108, 1
      %s110 = scalar_select %p107, %s108, %s109
      %p113 = pneg %p107
      %p114 = scmp.eq.s32.totalorder %s16, 1
      %p115 = por %p113, %p114
      %p116 = scmp.ne.s32.totalorder %s108, %s111
      %p117 = scmp.eq.s32.totalorder %s16, 0
      %p118 = por %p116, %p117
      %p119 = scmp.ne.s32.totalorder %s108, %s111
      %p120 = scmp.eq.s32.totalorder %s21, 1
      %p121 = por %p119, %p120
      %p122 = scmp.ne.s32.totalorder %s111, %s112
      %p123 = scmp.eq.s32.totalorder %s21, 0
      %p124 = por %p122, %p123
      %p125 = scmp.ne.s32.totalorder %s111, %s112
      %p126 = scmp.eq.s32.totalorder %s22, 1
      %p127 = por %p125, %p126
      %p129 = scmp.ne.s32.totalorder %s112, %s128
      %p130 = scmp.eq.s32.totalorder %s22, 0
      %p131 = por %p129, %p130
      %p132 = scmp.le.s32.totalorder 1, %s16
      %p133 = scmp.lt.s32.totalorder %s16, 3
      %p134 = pnand %p132, %p133
      %p135 = pneg %p134
      // Predicated region
      $region9: #{impala_cnn_block.6} parent=5 // pred_check
        _
      $region10: #{impala_cnn_block.6} parent=5 // pred_check_branch
        %137 = sbr.rel (%p134) target = $region12
      $region11: #{impala_cnn_block.6} parent=5 // pred_region
        %s138 = ssub.s32 %s16, 1
        // Predicated region
        $region13: #{impala_cnn_block.6} parent=11 // pred_check
          %p139 = pneg %p75
        $region14: #{impala_cnn_block.6} parent=11 // pred_check_branch
          %141 = sbr.rel (%p139) target = $region16
        $region15: #{impala_cnn_block.6} parent=11 // pred_region
          %s143 = ssub.s32 576, 576
          %144 = vsyncadd [#allocation7], %s143
          %s145 = sshll.u32 [#allocation6], 4
          %s146 = int_to_ptr.vmem [resolvable:$true] %s145
          %151 = dma.hbm_to_vmem [thread:$0]  %s1, 576, %s146, [#allocation7], 64, 64, 4
        $region16: #{impala_cnn_block.6} parent=11 // pred_fallthru
          _
        // Predicated region
        $region17: #{impala_cnn_block.6} parent=11 // pred_check
          %p152 = pneg %p96
        $region18: #{impala_cnn_block.6} parent=11 // pred_check_branch
          %154 = sbr.rel (%p152) target = $region20
        $region19: #{impala_cnn_block.6} parent=11 // pred_region
          %s156 = ssub.s32 16, 16
          %157 = vsyncadd [#allocation7], %s156
          %s159 = sshll.u32 [#allocation8], 4
          %s160 = int_to_ptr.vmem [resolvable:$true] %s159
          %162 = dma.hbm_to_vmem [thread:$0]  %s2, 16, %s160, [#allocation7]
        $region20: #{impala_cnn_block.6} parent=11 // pred_fallthru
          _
      $region12: #{impala_cnn_block.6} parent=5 // pred_fallthru
        _
      %p163 = scmp.lt.s32.totalorder %s16, 2
      // Predicated region
      $region21: #{impala_cnn_block.6} parent=5 // pred_check
        %p164 = pneg %p163
      $region22: #{impala_cnn_block.6} parent=5 // pred_check_branch
        %166 = sbr.rel (%p164) target = $region24
      $region23: #{impala_cnn_block.6} parent=5 // pred_region
        // Predicated region
        $region25: #{impala_cnn_block.6} parent=23 // pred_check
          %p167 = pneg %p48
        $region26: #{impala_cnn_block.6} parent=23 // pred_check_branch
          %169 = sbr.rel (%p167) target = $region28
        $region27: #{impala_cnn_block.6} parent=23 // pred_region
          %s170 = sand.u32 %s38, 1
          %s171 = scalar_lea.sflag [#allocation4], %s170
          %s172 = sand.u32 %s38, 1
          %s173 = smul.addr %s172, 32
          %s174 = scalar_lea.vmem [#allocation3], %s173
          %s176 = ssub.s32 512, 512
          %177 = vsyncadd %s171, %s176
          %s178 = smul.addr %s23, 8
          %s179 = smul.addr %s178, 64
          %s180 = scalar_lea.hbm %s0, %s179
          %s181 = sshll.u32 %s174, 4
          %s182 = int_to_ptr.vmem [resolvable:$true] %s181
          %187 = dma.hbm_to_vmem [thread:$0]  %s180, 512, %s182, %s171, 64, 64, 4
        $region28: #{impala_cnn_block.6} parent=23 // pred_fallthru
          _
      $region24: #{impala_cnn_block.6} parent=5 // pred_fallthru
        _
      %p188 = scmp.le.s32.totalorder 1, %s16
      %p189 = scmp.lt.s32.totalorder %s16, 3
      %p190 = pnand %p188, %p189
      %p191 = pneg %p190
      // Predicated region
      $region29: #{impala_cnn_block.6} parent=5 // pred_check
        _
      $region30: #{impala_cnn_block.6} parent=5 // pred_check_branch
        %193 = sbr.rel (%p190) target = $region32
      $region31: #{impala_cnn_block.6} parent=5 // pred_region
        %s194 = ssub.s32 %s16, 1
        %s195 = sand.u32 %s41, 1
        %s196 = scalar_lea.sflag [#allocation4], %s195
        %s197 = sand.u32 %s41, 1
        %s198 = smul.addr %s197, 32
        %s199 = scalar_lea.vmem [#allocation3], %s198
        // Predicated region
        $region33: #{impala_cnn_block.6} parent=31 // pred_check
          %p200 = pneg %p54
        $region34: #{impala_cnn_block.6} parent=31 // pred_check_branch
          %202 = sbr.rel (%p200) target = $region36
        $region35: #{impala_cnn_block.6} parent=31 // pred_region
          %203 = dma.done %s196, 512
        $region36: #{impala_cnn_block.6} parent=31 // pred_fallthru
          _
        // Predicated region
        $region37: #{impala_cnn_block.6} parent=31 // pred_check
          %p204 = pneg %p75
        $region38: #{impala_cnn_block.6} parent=31 // pred_check_branch
          %206 = sbr.rel (%p204) target = $region40
        $region39: #{impala_cnn_block.6} parent=31 // pred_region
          %207 = dma.done [#allocation7], 576
        $region40: #{impala_cnn_block.6} parent=31 // pred_fallthru
          _
        // Predicated region
        $region41: #{impala_cnn_block.6} parent=31 // pred_check
          %p208 = pneg %p96
        $region42: #{impala_cnn_block.6} parent=31 // pred_check_branch
          %210 = sbr.rel (%p208) target = $region44
        $region43: #{impala_cnn_block.6} parent=31 // pred_region
          %211 = dma.done [#allocation7], 16
        $region44: #{impala_cnn_block.6} parent=31 // pred_fallthru
          _
        %s212 = sand.u32 %s41, 1
        %s213 = scalar_lea.sflag [#allocation4], %s212
        %s214 = sand.u32 %s41, 1
        %s215 = smul.addr %s214, 32
        %s216 = scalar_lea.vmem [#allocation3], %s215
        %p217 = pneg %p54
        %p218 = pneg %p51
        %p219 = pneg %p75
        %p220 = pneg %p72
        %p221 = pneg %p96
        %p222 = pneg %p93
        %p223 = pneg %p124
        %p224 = pneg %p121
        %s225 = sand.u32 %s111, 1
        %s226 = scalar_lea.sflag [#allocation5], %s225
        %s227 = sand.u32 %s111, 1
        %s228 = smul.addr %s227, 32
        %s229 = scalar_lea.vmem [#allocation9], %s228
        %s230 = smul.u32 8, %s26
        %p232 = scmp.eq.s32.totalorder %s26, 0
        // Predicated region
        $region45: #{impala_cnn_block.6} parent=31 // pred_check
          %p233 = pneg %p232
        $region46: #{impala_cnn_block.6} parent=31 // pred_check_branch
          %235 = sbr.rel (%p233) target = $region48
        $region47: #{impala_cnn_block.6} parent=31 // pred_region
          %v236 = vld [vmem:[%s199] sm:$0xf]
          %v237 = vld [vmem:[%s199 + $0x4] sm:$0xf]
          %v238 = vld [vmem:[%s199 + $0x8] sm:$0xf]
          %v239 = vld [vmem:[%s199 + $0xc] sm:$0xf]
          %v240 = vld [vmem:[%s199 + $0x10] sm:$0xf]
          %v241 = vld [vmem:[%s199 + $0x14] sm:$0xf]
          %v242 = vld [vmem:[%s199 + $0x18] sm:$0xf]
          %v243 = vld [vmem:[%s199 + $0x1c] sm:$0xf]
          %v244 = vmax.bf16 %v236, 0
          %v245 = vmax.bf16 %v237, 0
          %v246 = vmax.bf16 %v238, 0
          %v247 = vmax.bf16 %v239, 0
          %v248 = vmax.bf16 %v240, 0
          %v249 = vmax.bf16 %v241, 0
          %v250 = vmax.bf16 %v242, 0
          %v251 = vmax.bf16 %v243, 0
          %vm252 = vcmask 60416
          %253 = vst.msk [vmem:[#allocation2] sm:$0xf] %vm252, 0
          %vm254 = vcmask 57344
          %255 = vst.msk [vmem:[#allocation2 + $0x4] sm:$0x1] %vm254, 0
          %256 = vst.msk [vmem:[#allocation2 + $0x8] sm:$0xf] %vm252, 0
          %257 = vst.msk [vmem:[#allocation2 + $0xc] sm:$0x1] %vm254, 0
          %258 = vst.msk [vmem:[#allocation2 + $0x10] sm:$0xf] %vm252, 0
          %259 = vst.msk [vmem:[#allocation2 + $0x14] sm:$0x1] %vm254, 0
          %260 = vst.msk [vmem:[#allocation2 + $0x18] sm:$0xf] %vm252, 0
          %261 = vst.msk [vmem:[#allocation2 + $0x1c] sm:$0x1] %vm254, 0
          %262 = vst.msk [vmem:[#allocation2 + $0x20] sm:$0xf] %vm252, 0
          %263 = vst.msk [vmem:[#allocation2 + $0x24] sm:$0x1] %vm254, 0
          %264 = vst.msk [vmem:[#allocation2 + $0x28] sm:$0xf] %vm252, 0
          %265 = vst.msk [vmem:[#allocation2 + $0x2c] sm:$0x1] %vm254, 0
          %266 = vst.msk [vmem:[#allocation2 + $0x30] sm:$0xf] %vm252, 0
          %267 = vst.msk [vmem:[#allocation2 + $0x34] sm:$0x1] %vm254, 0
          %268 = vst.msk [vmem:[#allocation2 + $0x38] sm:$0xf] %vm252, 0
          %269 = vst.msk [vmem:[#allocation2 + $0x3c] sm:$0x1] %vm254, 0
          %270 = vst.msk [vmem:[#allocation2 + $0x40] sm:$0xf] %vm252, 0
          %271 = vst.msk [vmem:[#allocation2 + $0x44] sm:$0x1] %vm254, 0
          %272 = vst.msk [vmem:[#allocation2 + $0x48] sm:$0xf] %vm252, 0
          %273 = vst.msk [vmem:[#allocation2 + $0x4c] sm:$0x1] %vm254, 0
          %v275 = vshrl.u32 %v244, 16
          %v277 = vrot.slane %v275, 7
          %v278 = vshll.u32 %v244, 16
          %v280 = vor.u32 %v277, %v278
          %v281 = vrot.slane %v277, 4
          %v283 = vshrl.u32 %v245, 16
          %v285 = vrot.slane %v283, 7
          %v286 = vshll.u32 %v245, 16
          %v288 = vor.u32 %v285, %v286
          %v289 = vrot.slane %v285, 4
          %v291 = vshrl.u32 %v246, 16
          %v293 = vrot.slane %v291, 7
          %v294 = vshll.u32 %v246, 16
          %v296 = vor.u32 %v293, %v294
          %v297 = vrot.slane %v293, 4
          %v299 = vshrl.u32 %v247, 16
          %v301 = vrot.slane %v299, 7
          %v302 = vshll.u32 %v247, 16
          %v304 = vor.u32 %v301, %v302
          %v305 = vrot.slane %v301, 4
          %v307 = vshrl.u32 %v248, 16
          %v309 = vrot.slane %v307, 7
          %v310 = vshll.u32 %v248, 16
          %v312 = vor.u32 %v309, %v310
          %v313 = vrot.slane %v309, 4
          %v315 = vshrl.u32 %v249, 16
          %v317 = vrot.slane %v315, 7
          %v318 = vshll.u32 %v249, 16
          %v320 = vor.u32 %v317, %v318
          %v321 = vrot.slane %v317, 4
          %v323 = vshrl.u32 %v250, 16
          %v325 = vrot.slane %v323, 7
          %v326 = vshll.u32 %v250, 16
          %v328 = vor.u32 %v325, %v326
          %v329 = vrot.slane %v325, 4
          %v331 = vshrl.u32 %v251, 16
          %v333 = vrot.slane %v331, 7
          %v334 = vshll.u32 %v251, 16
          %v336 = vor.u32 %v333, %v334
          %v337 = vrot.slane %v333, 4
          %s354 = scalar_lea.vmem [#allocation2], 8
          %vm355 = vcmask 60416
          %vm356 = vsmask.f32 7938
          %vm357 = vmand %vm355, %vm356
          %v358 = vld [vmem:[%s354] sm:$0xf]
          %v359 = vsel %vm357, %v280, %v358
          %360 = vst [vmem:[%s354] sm:$0xf] %v359
          %vm361 = vcmask 57344
          %vm362 = vsmask.f32 256
          %vm363 = vmand %vm361, %vm362
          %v364 = vld [vmem:[%s354 + $0x4] sm:$0x1]
          %v365 = vsel %vm363, %v281, %v364
          %366 = vst [vmem:[%s354 + $0x4] sm:$0x1] %v365
          %v367 = vld [vmem:[%s354 + $0x8] sm:$0xf]
          %v368 = vsel %vm357, %v288, %v367
          %369 = vst [vmem:[%s354 + $0x8] sm:$0xf] %v368
          %v370 = vld [vmem:[%s354 + $0xc] sm:$0x1]
          %v371 = vsel %vm363, %v289, %v370
          %372 = vst [vmem:[%s354 + $0xc] sm:$0x1] %v371
          %v373 = vld [vmem:[%s354 + $0x10] sm:$0xf]
          %v374 = vsel %vm357, %v296, %v373
          %375 = vst [vmem:[%s354 + $0x10] sm:$0xf] %v374
          %v376 = vld [vmem:[%s354 + $0x14] sm:$0x1]
          %v377 = vsel %vm363, %v297, %v376
          %378 = vst [vmem:[%s354 + $0x14] sm:$0x1] %v377
          %v379 = vld [vmem:[%s354 + $0x18] sm:$0xf]
          %v380 = vsel %vm357, %v304, %v379
          %381 = vst [vmem:[%s354 + $0x18] sm:$0xf] %v380
          %v382 = vld [vmem:[%s354 + $0x1c] sm:$0x1]
          %v383 = vsel %vm363, %v305, %v382
          %384 = vst [vmem:[%s354 + $0x1c] sm:$0x1] %v383
          %v385 = vld [vmem:[%s354 + $0x20] sm:$0xf]
          %v386 = vsel %vm357, %v312, %v385
          %387 = vst [vmem:[%s354 + $0x20] sm:$0xf] %v386
          %v388 = vld [vmem:[%s354 + $0x24] sm:$0x1]
          %v389 = vsel %vm363, %v313, %v388
          %390 = vst [vmem:[%s354 + $0x24] sm:$0x1] %v389
          %v391 = vld [vmem:[%s354 + $0x28] sm:$0xf]
          %v392 = vsel %vm357, %v320, %v391
          %393 = vst [vmem:[%s354 + $0x28] sm:$0xf] %v392
          %v394 = vld [vmem:[%s354 + $0x2c] sm:$0x1]
          %v395 = vsel %vm363, %v321, %v394
          %396 = vst [vmem:[%s354 + $0x2c] sm:$0x1] %v395
          %v397 = vld [vmem:[%s354 + $0x30] sm:$0xf]
          %v398 = vsel %vm357, %v328, %v397
          %399 = vst [vmem:[%s354 + $0x30] sm:$0xf] %v398
          %v400 = vld [vmem:[%s354 + $0x34] sm:$0x1]
          %v401 = vsel %vm363, %v329, %v400
          %402 = vst [vmem:[%s354 + $0x34] sm:$0x1] %v401
          %v403 = vld [vmem:[%s354 + $0x38] sm:$0xf]
          %v404 = vsel %vm357, %v336, %v403
          %405 = vst [vmem:[%s354 + $0x38] sm:$0xf] %v404
          %v406 = vld [vmem:[%s354 + $0x3c] sm:$0x1]
          %v407 = vsel %vm363, %v337, %v406
          %408 = vst [vmem:[%s354 + $0x3c] sm:$0x1] %v407
        $region48: #{impala_cnn_block.6} parent=31 // pred_fallthru
          _
        %s409 = smul.u32 %s26, 8
        %s410 = smul.u32 %s409, 2
        %s411 = smul.addr %s410, 4
        %s412 = scalar_lea.vmem [#allocation2], %s411
        %v413 = vld [vmem:[%s412] sm:$0xf]
        %v414 = vld [vmem:[%s412 + $0x4] sm:$0x1]
        %v415 = vld [vmem:[%s412 + $0x8] sm:$0xf]
        %v416 = vld [vmem:[%s412 + $0xc] sm:$0x1]
        %v417 = vld [vmem:[%s412 + $0x10] sm:$0xf]
        %v418 = vld [vmem:[%s412 + $0x14] sm:$0x1]
        %v419 = vld [vmem:[%s412 + $0x18] sm:$0xf]
        %v420 = vld [vmem:[%s412 + $0x1c] sm:$0x1]
        %v421 = vld [vmem:[%s412 + $0x20] sm:$0xf]
        %v422 = vld [vmem:[%s412 + $0x24] sm:$0x1]
        %v423 = vld [vmem:[%s412 + $0x28] sm:$0xf]
        %v424 = vld [vmem:[%s412 + $0x2c] sm:$0x1]
        %v425 = vld [vmem:[%s412 + $0x30] sm:$0xf]
        %v426 = vld [vmem:[%s412 + $0x34] sm:$0x1]
        %v427 = vld [vmem:[%s412 + $0x38] sm:$0xf]
        %v428 = vld [vmem:[%s412 + $0x3c] sm:$0x1]
        %v429 = vld [vmem:[%s412 + $0x40] sm:$0xf]
        %v430 = vld [vmem:[%s412 + $0x44] sm:$0x1]
        %v431 = vld [vmem:[%s412 + $0x48] sm:$0xf]
        %v432 = vld [vmem:[%s412 + $0x4c] sm:$0x1]
        %v433 = vld [vmem:[#allocation8] sm:$0x1]
        %v450 = vunpack.c.l.b16 %v413
        %v451 = vunpack.c.l.b16 %v414
        %v452 = vunpack.c.l.b16 %v415
        %v453 = vunpack.c.l.b16 %v416
        %v454 = vunpack.c.l.b16 %v417
        %v455 = vunpack.c.l.b16 %v418
        %v456 = vunpack.c.l.b16 %v419
        %v457 = vunpack.c.l.b16 %v420
        %v458 = vunpack.c.l.b16 %v421
        %v459 = vunpack.c.l.b16 %v422
        %v460 = vunpack.c.l.b16 %v423
        %v461 = vunpack.c.l.b16 %v424
        %v462 = vunpack.c.l.b16 %v425
        %v463 = vunpack.c.l.b16 %v426
        %v464 = vunpack.c.l.b16 %v427
        %v465 = vunpack.c.l.b16 %v428
        %v466 = vpack.c.b16 %v451, %v450
        %v467 = vpack.c.b16 %v453, %v452
        %v468 = vpack.c.b16 %v455, %v454
        %v469 = vpack.c.b16 %v457, %v456
        %v470 = vpack.c.b16 %v459, %v458
        %v471 = vpack.c.b16 %v461, %v460
        %v472 = vpack.c.b16 %v463, %v462
        %v473 = vpack.c.b16 %v465, %v464
        %v475 = vshrl.u32 %v466, 16
        %v477 = vshll.u32 %v466, 16
        %v479 = vrot.slane %v477, 1
        %v480 = vor.u32 %v475, %v479
        %v482 = vshrl.u32 %v467, 16
        %v484 = vshll.u32 %v467, 16
        %v486 = vrot.slane %v484, 1
        %v487 = vor.u32 %v482, %v486
        %v489 = vshrl.u32 %v468, 16
        %v491 = vshll.u32 %v468, 16
        %v493 = vrot.slane %v491, 1
        %v494 = vor.u32 %v489, %v493
        %v496 = vshrl.u32 %v469, 16
        %v498 = vshll.u32 %v469, 16
        %v500 = vrot.slane %v498, 1
        %v501 = vor.u32 %v496, %v500
        %v503 = vshrl.u32 %v470, 16
        %v505 = vshll.u32 %v470, 16
        %v507 = vrot.slane %v505, 1
        %v508 = vor.u32 %v503, %v507
        %v510 = vshrl.u32 %v471, 16
        %v512 = vshll.u32 %v471, 16
        %v514 = vrot.slane %v512, 1
        %v515 = vor.u32 %v510, %v514
        %v517 = vshrl.u32 %v472, 16
        %v519 = vshll.u32 %v472, 16
        %v521 = vrot.slane %v519, 1
        %v522 = vor.u32 %v517, %v521
        %v524 = vshrl.u32 %v473, 16
        %v526 = vshll.u32 %v473, 16
        %v528 = vrot.slane %v526, 1
        %v529 = vor.u32 %v524, %v528
        %530 = vrot.lane.b32.xlu0 %v480, 8
        %v531 = vpop.permute.xlu0 %530
        %532 = vrot.lane.b32.xlu0 %v487, 8
        %v533 = vpop.permute.xlu0 %532
        %534 = vrot.lane.b32.xlu0 %v494, 8
        %v535 = vpop.permute.xlu0 %534
        %536 = vrot.lane.b32.xlu0 %v501, 8
        %v537 = vpop.permute.xlu0 %536
        %538 = vrot.lane.b32.xlu0 %v508, 8
        %v539 = vpop.permute.xlu0 %538
        %540 = vrot.lane.b32.xlu0 %v515, 8
        %v541 = vpop.permute.xlu0 %540
        %542 = vrot.lane.b32.xlu0 %v522, 8
        %v543 = vpop.permute.xlu0 %542
        %544 = vrot.lane.b32.xlu0 %v529, 8
        %v545 = vpop.permute.xlu0 %544
        %v546 = vrot.slane %v466, 1
        %v547 = vrot.slane %v467, 1
        %v548 = vrot.slane %v468, 1
        %v549 = vrot.slane %v469, 1
        %v550 = vrot.slane %v470, 1
        %v551 = vrot.slane %v471, 1
        %v552 = vrot.slane %v472, 1
        %v553 = vrot.slane %v473, 1
        %554 = vrot.lane.b32.xlu0 %v546, 16
        %v555 = vpop.permute.xlu0 %554
        %556 = vrot.lane.b32.xlu0 %v547, 16
        %v557 = vpop.permute.xlu0 %556
        %558 = vrot.lane.b32.xlu0 %v548, 16
        %v559 = vpop.permute.xlu0 %558
        %560 = vrot.lane.b32.xlu0 %v549, 16
        %v561 = vpop.permute.xlu0 %560
        %562 = vrot.lane.b32.xlu0 %v550, 16
        %v563 = vpop.permute.xlu0 %562
        %564 = vrot.lane.b32.xlu0 %v551, 16
        %v565 = vpop.permute.xlu0 %564
        %566 = vrot.lane.b32.xlu0 %v552, 16
        %v567 = vpop.permute.xlu0 %566
        %568 = vrot.lane.b32.xlu0 %v553, 16
        %v569 = vpop.permute.xlu0 %568
        %vm570 = vcmask 64512
        %v573 = vsel %vm570, %v413, %v531
        %v576 = vsel %vm570, %v415, %v533
        %v579 = vsel %vm570, %v417, %v535
        %v582 = vsel %vm570, %v419, %v537
        %v585 = vsel %vm570, %v421, %v539
        %v588 = vsel %vm570, %v423, %v541
        %v591 = vsel %vm570, %v425, %v543
        %v594 = vsel %vm570, %v427, %v545
        %vm595 = vcmask 130048
        %v597 = vsel %vm595, %v573, %v555
        %v599 = vsel %vm595, %v576, %v557
        %v601 = vsel %vm595, %v579, %v559
        %v603 = vsel %vm595, %v582, %v561
        %v605 = vsel %vm595, %v585, %v563
        %v607 = vsel %vm595, %v588, %v565
        %v609 = vsel %vm595, %v591, %v567
        %v611 = vsel %vm595, %v594, %v569
        %v612 = vld [vmem:[#allocation6] sm:$0xf]
        %v613 = vld [vmem:[#allocation6 + $0x4] sm:$0xf]
        %v614 = vld [vmem:[#allocation6 + $0x8] sm:$0xf]
        %v623 = vunpack.c.l.b16 %v597
        %v624 = vunpack.c.l.b16 %v599
        %v625 = vunpack.c.l.b16 %v601
        %v626 = vunpack.c.l.b16 %v603
        %v627 = vunpack.c.l.b16 %v605
        %v628 = vunpack.c.l.b16 %v607
        %v629 = vunpack.c.l.b16 %v609
        %v630 = vunpack.c.l.b16 %v611
        %v631 = vpack.c.b16 %v624, %v623
        %v632 = vpack.c.b16 %v626, %v625
        %v633 = vpack.c.b16 %v628, %v627
        %v634 = vpack.c.b16 %v630, %v629
        %v638 = vunpack.c.l.b16 %v612
        %v639 = vunpack.c.l.b16 %v613
        %v640 = vunpack.c.l.b16 %v614
        %v641 = vpack.c.b16 %v639, %v638
        %v642 = vpack.c.b16 %v640, %v640
        %vm644 = vcmask 195584
        %v646 = vsel %vm644, %v631, 0
        %v649 = vsel %vm644, %v632, 0
        %v652 = vsel %vm644, %v633, 0
        %v655 = vsel %vm644, %v634, 0
        %vm657 = vcmask 1043456
        %v659 = vsel %vm657, %v642, 0
        %661 = vmatprep.subr.bf16.mxu0 0
        %662 = vmatpush1.bf16.msra.mxu0 %v641
        %663 = vmatprep.subr.bf16.mxu0 0
        %664 = vmatpush1.bf16.msra.mxu0 %v659
        %665 = vmatprep.subr.bf16.mxu0 0
        %666 = vmatpush1.bf16.msra.mxu0 0
        %667 = vmatprep.subr.bf16.mxu0 0
        %668 = vmatpush1.bf16.msra.mxu0 0
        %669 = vmatprep.subr.bf16.mxu0 0
        %670 = vmatpush1.bf16.msra.mxu0 0
        %671 = vmatprep.subr.bf16.mxu0 0
        %672 = vmatpush1.bf16.msra.mxu0 0
        %673 = vmatprep.subr.bf16.mxu0 0
        %674 = vmatpush1.bf16.msra.mxu0 0
        %675 = vmatprep.subr.bf16.mxu0 0
        %676 = vmatpush1.bf16.msra.mxu0 0
        %677 = vmatprep.subr.bf16.mxu0 0
        %678 = vmatpush1.bf16.msra.mxu0 0
        %679 = vmatprep.subr.bf16.mxu0 0
        %680 = vmatpush1.bf16.msra.mxu0 0
        %681 = vmatprep.subr.bf16.mxu0 0
        %682 = vmatpush1.bf16.msra.mxu0 0
        %683 = vmatprep.subr.bf16.mxu0 0
        %684 = vmatpush1.bf16.msra.mxu0 0
        %685 = vmatprep.subr.bf16.mxu0 0
        %686 = vmatpush1.bf16.msra.mxu0 0
        %687 = vmatprep.subr.bf16.mxu0 0
        %688 = vmatpush1.bf16.msra.mxu0 0
        %689 = vmatprep.subr.bf16.mxu0 0
        %690 = vmatpush1.bf16.msra.mxu0 0
        %691 = vmatprep.subr.bf16.mxu0 0
        %692 = vmatpush1.bf16.msra.mxu0 0
        %693 = vmatprep.mubr.bf16.mxu0 0
        %694 = vmatmul.mubr.bf16.gmra.mrb[0].mxu0 %v646
        %v695 = vpop.f32.mrb[0].mxu0
        %v696 = vadd.f32 0.0, %v695
        %v697 = vpop.f32.mrb[0].mxu0
        %v698 = vpop.f32.mrb[0].mxu0
        %v699 = vadd.f32 0.0, %v698
        %v700 = vpop.f32.mrb[0].mxu0
        %701 = vmatprep.mubr.bf16.mxu0 0
        %702 = vmatmul.mubr.bf16.gmra.mrb[0].mxu0 %v649
        %v703 = vpop.f32.mrb[0].mxu0
        %v704 = vadd.f32 0.0, %v703
        %v705 = vpop.f32.mrb[0].mxu0
        %v706 = vpop.f32.mrb[0].mxu0
        %v707 = vadd.f32 0.0, %v706
        %v708 = vpop.f32.mrb[0].mxu0
        %709 = vmatprep.mubr.bf16.mxu0 0
        %710 = vmatmul.mubr.bf16.gmra.mrb[0].mxu0 %v652
        %v711 = vpop.f32.mrb[0].mxu0
        %v712 = vadd.f32 0.0, %v711
        %v713 = vpop.f32.mrb[0].mxu0
        %v714 = vpop.f32.mrb[0].mxu0
        %v715 = vadd.f32 0.0, %v714
        %v716 = vpop.f32.mrb[0].mxu0
        %717 = vmatprep.mubr.bf16.mxu0 0
        %718 = vmatmul.mubr.bf16.gmra.mrb[0].mxu0 %v655
        %v719 = vpop.f32.mrb[0].mxu0
        %v720 = vadd.f32 0.0, %v719
        %v721 = vpop.f32.mrb[0].mxu0
        %v722 = vpop.f32.mrb[0].mxu0
        %v723 = vadd.f32 0.0, %v722
        %v724 = vpop.f32.mrb[0].mxu0
        %725 = vdwg.mxu0
        %v727 = vlaneseq
        %v728 = vshrl.u32 %v727, 7
        %v729 = vsub.s32 0, %v728
        %v730 = vrot.slane %v433, %v729
        %v732 = vadd.f32 %v730, %v696
        %v733 = vadd.f32 %v730, %v699
        %v734 = vadd.f32 %v730, %v704
        %v735 = vadd.f32 %v730, %v707
        %v736 = vadd.f32 %v730, %v712
        %v737 = vadd.f32 %v730, %v715
        %v738 = vadd.f32 %v730, %v720
        %v739 = vadd.f32 %v730, %v723
        %v742 = vunpack.c.l.b16 %v429
        %v743 = vunpack.c.l.b16 %v430
        %v744 = vpack.c.b16 %v743, %v742
        %v746 = vshrl.u32 %v744, 16
        %v748 = vshll.u32 %v744, 16
        %v750 = vrot.slane %v748, 1
        %v751 = vor.u32 %v746, %v750
        %752 = vrot.lane.b32.xlu0 %v751, 8
        %v753 = vpop.permute.xlu0 %752
        %v754 = vrot.slane %v744, 1
        %755 = vrot.lane.b32.xlu0 %v754, 16
        %v756 = vpop.permute.xlu0 %755
        %v759 = vsel %vm570, %v429, %v753
        %v761 = vsel %vm595, %v759, %v756
        %s762 = scalar_lea.vmem [#allocation6], 12
        %v763 = vld [vmem:[%s762] sm:$0xf]
        %v764 = vld [vmem:[%s762 + $0x4] sm:$0xf]
        %v765 = vld [vmem:[%s762 + $0x8] sm:$0xf]
        %v767 = vunpack.c.l.b16 %v761
        %v768 = vpack.c.b16 %v625, %v624
        %v769 = vpack.c.b16 %v627, %v626
        %v770 = vpack.c.b16 %v629, %v628
        %v771 = vpack.c.b16 %v767, %v630
        %v775 = vunpack.c.l.b16 %v763
        %v776 = vunpack.c.l.b16 %v764
        %v777 = vunpack.c.l.b16 %v765
        %v778 = vpack.c.b16 %v776, %v775
        %v779 = vpack.c.b16 %v777, %v777
        %v782 = vsel %vm644, %v768, 0
        %v785 = vsel %vm644, %v769, 0
        %v788 = vsel %vm644, %v770, 0
        %v791 = vsel %vm644, %v771, 0
        %v794 = vsel %vm657, %v779, 0
        %796 = vmatprep.subr.bf16.mxu0 0
        %797 = vmatpush1.bf16.msra.mxu0 %v778
        %798 = vmatprep.subr.bf16.mxu0 0
        %799 = vmatpush1.bf16.msra.mxu0 %v794
        %800 = vmatprep.subr.bf16.mxu0 0
        %801 = vmatpush1.bf16.msra.mxu0 0
        %802 = vmatprep.subr.bf16.mxu0 0
        %803 = vmatpush1.bf16.msra.mxu0 0
        %804 = vmatprep.subr.bf16.mxu0 0
        %805 = vmatpush1.bf16.msra.mxu0 0
        %806 = vmatprep.subr.bf16.mxu0 0
        %807 = vmatpush1.bf16.msra.mxu0 0
        %808 = vmatprep.subr.bf16.mxu0 0
        %809 = vmatpush1.bf16.msra.mxu0 0
        %810 = vmatprep.subr.bf16.mxu0 0
        %811 = vmatpush1.bf16.msra.mxu0 0
        %812 = vmatprep.subr.bf16.mxu0 0
        %813 = vmatpush1.bf16.msra.mxu0 0
        %814 = vmatprep.subr.bf16.mxu0 0
        %815 = vmatpush1.bf16.msra.mxu0 0
        %816 = vmatprep.subr.bf16.mxu0 0
        %817 = vmatpush1.bf16.msra.mxu0 0
        %818 = vmatprep.subr.bf16.mxu0 0
        %819 = vmatpush1.bf16.msra.mxu0 0
        %820 = vmatprep.subr.bf16.mxu0 0
        %821 = vmatpush1.bf16.msra.mxu0 0
        %822 = vmatprep.subr.bf16.mxu0 0
        %823 = vmatpush1.bf16.msra.mxu0 0
        %824 = vmatprep.subr.bf16.mxu0 0
        %825 = vmatpush1.bf16.msra.mxu0 0
        %826 = vmatprep.subr.bf16.mxu0 0
        %827 = vmatpush1.bf16.msra.mxu0 0
        %828 = vmatprep.mubr.bf16.mxu0 0
        %829 = vmatmul.mubr.bf16.gmra.mrb[0].mxu0 %v782
        %v830 = vpop.f32.mrb[0].mxu0
        %v831 = vadd.f32 0.0, %v830
        %v832 = vpop.f32.mrb[0].mxu0
        %v833 = vpop.f32.mrb[0].mxu0
        %v834 = vadd.f32 0.0, %v833
        %v835 = vpop.f32.mrb[0].mxu0
        %836 = vmatprep.mubr.bf16.mxu0 0
        %837 = vmatmul.mubr.bf16.gmra.mrb[0].mxu0 %v785
        %v838 = vpop.f32.mrb[0].mxu0
        %v839 = vadd.f32 0.0, %v838
        %v840 = vpop.f32.mrb[0].mxu0
        %v841 = vpop.f32.mrb[0].mxu0
        %v842 = vadd.f32 0.0, %v841
        %v843 = vpop.f32.mrb[0].mxu0
        %844 = vmatprep.mubr.bf16.mxu0 0
        %845 = vmatmul.mubr.bf16.gmra.mrb[0].mxu0 %v788
        %v846 = vpop.f32.mrb[0].mxu0
        %v847 = vadd.f32 0.0, %v846
        %v848 = vpop.f32.mrb[0].mxu0
        %v849 = vpop.f32.mrb[0].mxu0
        %v850 = vadd.f32 0.0, %v849
        %v851 = vpop.f32.mrb[0].mxu0
        %852 = vmatprep.mubr.bf16.mxu0 0
        %853 = vmatmul.mubr.bf16.gmra.mrb[0].mxu0 %v791
        %v854 = vpop.f32.mrb[0].mxu0
        %v855 = vadd.f32 0.0, %v854
        %v856 = vpop.f32.mrb[0].mxu0
        %v857 = vpop.f32.mrb[0].mxu0
        %v858 = vadd.f32 0.0, %v857
        %v859 = vpop.f32.mrb[0].mxu0
        %860 = vdwg.mxu0
        %v861 = vadd.f32 %v732, %v831
        %v862 = vadd.f32 %v733, %v834
        %v863 = vadd.f32 %v734, %v839
        %v864 = vadd.f32 %v735, %v842
        %v865 = vadd.f32 %v736, %v847
        %v866 = vadd.f32 %v737, %v850
        %v867 = vadd.f32 %v738, %v855
        %v868 = vadd.f32 %v739, %v858
        %v871 = vunpack.c.l.b16 %v431
        %v872 = vunpack.c.l.b16 %v432
        %v873 = vpack.c.b16 %v872, %v871
        %v875 = vshrl.u32 %v873, 16
        %v877 = vshll.u32 %v873, 16
        %v879 = vrot.slane %v877, 1
        %v880 = vor.u32 %v875, %v879
        %881 = vrot.lane.b32.xlu0 %v880, 8
        %v882 = vpop.permute.xlu0 %881
        %v883 = vrot.slane %v873, 1
        %884 = vrot.lane.b32.xlu0 %v883, 16
        %v885 = vpop.permute.xlu0 %884
        %v888 = vsel %vm570, %v431, %v882
        %v890 = vsel %vm595, %v888, %v885
        %s891 = scalar_lea.vmem [#allocation6], 24
        %v892 = vld [vmem:[%s891] sm:$0xf]
        %v893 = vld [vmem:[%s891 + $0x4] sm:$0xf]
        %v894 = vld [vmem:[%s891 + $0x8] sm:$0xf]
        %v896 = vunpack.c.l.b16 %v890
        %v897 = vpack.c.b16 %v896, %v767
        %v901 = vunpack.c.l.b16 %v892
        %v902 = vunpack.c.l.b16 %v893
        %v903 = vunpack.c.l.b16 %v894
        %v904 = vpack.c.b16 %v902, %v901
        %v905 = vpack.c.b16 %v903, %v903
        %v908 = vsel %vm644, %v897, 0
        %v911 = vsel %vm657, %v905, 0
        %913 = vmatprep.subr.bf16.mxu0 0
        %914 = vmatpush1.bf16.msra.mxu0 %v904
        %915 = vmatprep.subr.bf16.mxu0 0
        %916 = vmatpush1.bf16.msra.mxu0 %v911
        %917 = vmatprep.subr.bf16.mxu0 0
        %918 = vmatpush1.bf16.msra.mxu0 0
        %919 = vmatprep.subr.bf16.mxu0 0
        %920 = vmatpush1.bf16.msra.mxu0 0
        %921 = vmatprep.subr.bf16.mxu0 0
        %922 = vmatpush1.bf16.msra.mxu0 0
        %923 = vmatprep.subr.bf16.mxu0 0
        %924 = vmatpush1.bf16.msra.mxu0 0
        %925 = vmatprep.subr.bf16.mxu0 0
        %926 = vmatpush1.bf16.msra.mxu0 0
        %927 = vmatprep.subr.bf16.mxu0 0
        %928 = vmatpush1.bf16.msra.mxu0 0
        %929 = vmatprep.subr.bf16.mxu0 0
        %930 = vmatpush1.bf16.msra.mxu0 0
        %931 = vmatprep.subr.bf16.mxu0 0
        %932 = vmatpush1.bf16.msra.mxu0 0
        %933 = vmatprep.subr.bf16.mxu0 0
        %934 = vmatpush1.bf16.msra.mxu0 0
        %935 = vmatprep.subr.bf16.mxu0 0
        %936 = vmatpush1.bf16.msra.mxu0 0
        %937 = vmatprep.subr.bf16.mxu0 0
        %938 = vmatpush1.bf16.msra.mxu0 0
        %939 = vmatprep.subr.bf16.mxu0 0
        %940 = vmatpush1.bf16.msra.mxu0 0
        %941 = vmatprep.subr.bf16.mxu0 0
        %942 = vmatpush1.bf16.msra.mxu0 0
        %943 = vmatprep.subr.bf16.mxu0 0
        %944 = vmatpush1.bf16.msra.mxu0 0
        %945 = vmatprep.mubr.bf16.mxu0 0
        %946 = vmatmul.mubr.bf16.gmra.mrb[0].mxu0 %v649
        %v947 = vpop.f32.mrb[0].mxu0
        %v948 = vadd.f32 0.0, %v947
        %v949 = vpop.f32.mrb[0].mxu0
        %v950 = vpop.f32.mrb[0].mxu0
        %v951 = vadd.f32 0.0, %v950
        %v952 = vpop.f32.mrb[0].mxu0
        %953 = vmatprep.mubr.bf16.mxu0 0
        %954 = vmatmul.mubr.bf16.gmra.mrb[0].mxu0 %v652
        %v955 = vpop.f32.mrb[0].mxu0
        %v956 = vadd.f32 0.0, %v955
        %v957 = vpop.f32.mrb[0].mxu0
        %v958 = vpop.f32.mrb[0].mxu0
        %v959 = vadd.f32 0.0, %v958
        %v960 = vpop.f32.mrb[0].mxu0
        %961 = vmatprep.mubr.bf16.mxu0 0
        %962 = vmatmul.mubr.bf16.gmra.mrb[0].mxu0 %v655
        %v963 = vpop.f32.mrb[0].mxu0
        %v964 = vadd.f32 0.0, %v963
        %v965 = vpop.f32.mrb[0].mxu0
        %v966 = vpop.f32.mrb[0].mxu0
        %v967 = vadd.f32 0.0, %v966
        %v968 = vpop.f32.mrb[0].mxu0
        %969 = vmatprep.mubr.bf16.mxu0 0
        %970 = vmatmul.mubr.bf16.gmra.mrb[0].mxu0 %v908
        %v971 = vpop.f32.mrb[0].mxu0
        %v972 = vadd.f32 0.0, %v971
        %v973 = vpop.f32.mrb[0].mxu0
        %v974 = vpop.f32.mrb[0].mxu0
        %v975 = vadd.f32 0.0, %v974
        %v976 = vpop.f32.mrb[0].mxu0
        %977 = vdwg.mxu0
        %v978 = vadd.f32 %v861, %v948
        %v979 = vadd.f32 %v862, %v951
        %v980 = vadd.f32 %v863, %v956
        %v981 = vadd.f32 %v864, %v959
        %v982 = vadd.f32 %v865, %v964
        %v983 = vadd.f32 %v866, %v967
        %v984 = vadd.f32 %v867, %v972
        %v985 = vadd.f32 %v868, %v975
        %v986 = vpack.c.bf16 %v978, %v978
        %v987 = vpack.c.bf16 %v979, %v979
        %v988 = vpack.c.bf16 %v980, %v980
        %v989 = vpack.c.bf16 %v981, %v981
        %v990 = vpack.c.bf16 %v982, %v982
        %v991 = vpack.c.bf16 %v983, %v983
        %v992 = vpack.c.bf16 %v984, %v984
        %v993 = vpack.c.bf16 %v985, %v985
        %vm994 = vcmask 60416
        %995 = vst.msk [vmem:[%s229] sm:$0xf] %vm994, %v986
        %996 = vst.msk [vmem:[%s229 + $0x4] sm:$0xf] %vm994, %v987
        %997 = vst.msk [vmem:[%s229 + $0x8] sm:$0xf] %vm994, %v988
        %998 = vst.msk [vmem:[%s229 + $0xc] sm:$0xf] %vm994, %v989
        %999 = vst.msk [vmem:[%s229 + $0x10] sm:$0xf] %vm994, %v990
        %1000 = vst.msk [vmem:[%s229 + $0x14] sm:$0xf] %vm994, %v991
        %1001 = vst.msk [vmem:[%s229 + $0x18] sm:$0xf] %vm994, %v992
        %1002 = vst.msk [vmem:[%s229 + $0x1c] sm:$0xf] %vm994, %v993
        %s1003 = sand.u32 %s111, 1
        %s1004 = scalar_lea.sflag [#allocation5], %s1003
        %s1005 = sand.u32 %s111, 1
        %s1006 = smul.addr %s1005, 32
        %s1007 = scalar_lea.vmem [#allocation9], %s1006
        // Predicated region
        $region49: #{impala_cnn_block.6} parent=31 // pred_check
          %p1008 = pneg %p121
        $region50: #{impala_cnn_block.6} parent=31 // pred_check_branch
          %1010 = sbr.rel (%p1008) target = $region52
        $region51: #{impala_cnn_block.6} parent=31 // pred_region
          %s1011 = smul.u32 8, %s26
          %s1013 = ssub.s32 512, 512
          %1014 = vsyncadd %s1004, %s1013
          %s1015 = smul.addr %s25, 8
          %s1016 = sadd.s32 %s1011, %s1015
          %s1017 = smul.addr %s1016, 64
          %s1018 = scalar_lea.hbm %s3, %s1017
          %s1019 = sshll.u32 %s1007, 4
          %s1020 = int_to_ptr.vmem [resolvable:$true] %s1019
          %1025 = dma.vmem_to_hbm [thread:$0]  %s1020, 512, %s1018, %s1004, 64, 64, 4
        $region52: #{impala_cnn_block.6} parent=31 // pred_fallthru
          _
      $region32: #{impala_cnn_block.6} parent=5 // pred_fallthru
        _
      %p1026 = scmp.le.s32.totalorder 2, %s16
      // Predicated region
      $region53: #{impala_cnn_block.6} parent=5 // pred_check
        %p1027 = pneg %p1026
      $region54: #{impala_cnn_block.6} parent=5 // pred_check_branch
        %1029 = sbr.rel (%p1027) target = $region56
      $region55: #{impala_cnn_block.6} parent=5 // pred_region
        %s1030 = ssub.s32 %s16, 2
        // Predicated region
        $region57: #{impala_cnn_block.6} parent=55 // pred_check
          %p1031 = pneg %p127
        $region58: #{impala_cnn_block.6} parent=55 // pred_check_branch
          %1033 = sbr.rel (%p1031) target = $region60
        $region59: #{impala_cnn_block.6} parent=55 // pred_region
          %s1034 = sand.u32 %s112, 1
          %s1035 = scalar_lea.sflag [#allocation5], %s1034
          %s1036 = sand.u32 %s112, 1
          %s1037 = smul.addr %s1036, 32
          %s1038 = scalar_lea.vmem [#allocation9], %s1037
          %1039 = dma.done %s1035, 512
        $region60: #{impala_cnn_block.6} parent=55 // pred_fallthru
          _
      $region56: #{impala_cnn_block.6} parent=5 // pred_fallthru
        _
    $region6: #{impala_cnn_block.6} parent=1 // loop_footer
      %s20 = sadd.s32 1, %s16
    $region7: #{impala_cnn_block.6} parent=1 // loop_footer_branch
      %15 = sbr.rel target = $region3
    $region8: #{impala_cnn_block.6} parent=1 // loop_exit
      _
    %1040 = vsyncpa [#allocation4], 1
    %s1041 = scalar_lea.sflag [#allocation4], 1
    %1042 = vsyncpa %s1041, 1
    %1043 = vsyncpa [#allocation7], 1
    %1044 = vsyncpa [#allocation5], 1
    %s1045 = scalar_lea.sflag [#allocation5], 1
    %1046 = vsyncpa %s1045, 1

// kernel: impala_cnn_block.7
$region0: #{impala_cnn_block.7}
  #allocation0 [shape = 'u32[]', space=smem, size = 0x4, offset = 0x4, fixed_abs, tag = 'smem constant byte address 0x4 - core index']
  #allocation1 [shape = 'u32[144,128]{1,0:T(1,128)}', space=vmem, size = 0x12000, scoped, tag = 'internal scratch']
  #allocation2 [shape = 'bf16[10,10,8]{2,1,0:T(8,128)(2,1)}', space=vmem, size = 0xa000, scoped, tag = 'scratch operand']
  %s0 = inlined_call_operand.hbm [shape: bf16[2,8,8,8], index: 0, kind: input, shape index: {}]
  %s1 = inlined_call_operand.hbm [shape: bf16[3,24,8], index: 1, kind: input, shape index: {}]
  %s2 = inlined_call_operand.hbm [shape: f32[1,8], index: 2, kind: input, shape index: {}]
  %s3 = inlined_call_operand.hbm [shape: bf16[2,8,8,8], index: 3, kind: input, shape index: {}, may-alias: {3,4}]
  %s4 = inlined_call_operand.hbm [shape: bf16[2,8,8,8], index: 4, kind: output, shape index: {}, may-alias: {3,4}]
  %s5 = sld [smem:[#allocation0]]
  $region69: #{impala_cnn_block.7} parent=0
    _
  %s7 = ssub.s32 1, %s5
  %s8 = scalar_select 0, %s7, %s5
  $region1: #{impala_cnn_block.7} parent=0
    #allocation3 [shape = 'u8[32768]{0}', space=vmem, size = 0x8000, scoped, tag = 'input window, operand 0']
    #allocation4 [shape = 's32[2]{0}', space=sflag, size = 0x8, scoped, tag = 'scoped memory for impala_cnn_block.7']
    #allocation5 [shape = 's32[2]{0}', space=sflag, size = 0x8, scoped, tag = 'scoped memory for impala_cnn_block.7']
    #allocation6 [shape = 'u8[18432]{0}', space=vmem, size = 0x4800, scoped, tag = 'input window, operand 1, single buffered']
    #allocation7 [shape = 's32[1]{0}', space=sflag, size = 0x4, scoped, tag = 'scoped memory for impala_cnn_block.7']
    #allocation8 [shape = 'u8[512]{0}', space=vmem, size = 0x400, scoped, tag = 'input window, operand 2, single buffered']
    #allocation9 [shape = 'u8[32768]{0}', space=vmem, size = 0x8000, scoped, tag = 'input window, operand 3']
    #allocation10 [shape = 's32[2]{0}', space=sflag, size = 0x8, scoped, tag = 'scoped memory for impala_cnn_block.7']
    #allocation11 [shape = 'u8[32768]{0}', space=vmem, size = 0x8000, scoped, tag = 'output window, operand 0']
    %9 = vsyncpa [#allocation4], 0
    %s10 = scalar_lea.sflag [#allocation4], 1
    %11 = vsyncpa %s10, 0
    %12 = vsyncpa [#allocation7], 0
    %13 = vsyncpa [#allocation10], 0
    %s14 = scalar_lea.sflag [#allocation10], 1
    %15 = vsyncpa %s14, 0
    %16 = vsyncpa [#allocation5], 0
    %s17 = scalar_lea.sflag [#allocation5], 1
    %18 = vsyncpa %s17, 0
    loop: start=0, step=1, limit=4
    $region2: #{impala_cnn_block.7} parent=1 // loop_pre_header
      _
    $region3: #{impala_cnn_block.7} parent=1 // loop_header
      %s20 = sphi 0, %s24
      %p21 = scmp.ge.s32.totalorder %s20, 4
      %s27 = sphi 0, %s39
      %s28 = sphi 0, %s35
      %s29 = sphi 0, %s27
      %s30 = sphi 0, %s28
      %s31 = sphi 0, %s29
      %s32 = sphi 0, %s30
      %s42 = sphi 0, %s44
      %s45 = sphi 0, %s42
      %s46 = sphi 0, %s45
      %s62 = sphi 0, %s46
      %s66 = sphi 0, %s66
      %s68 = sphi 0, %s66
      %s69 = sphi 0, %s68
      %s83 = sphi 0, %s69
      %s87 = sphi 0, %s87
      %s89 = sphi 0, %s87
      %s90 = sphi 0, %s89
      %s104 = sphi 0, %s90
      %s112 = sphi 0, %s114
      %s115 = sphi 0, %s112
      %s116 = sphi 0, %s115
      %s132 = sphi 0, %s116
      %s140 = sphi 0, %s142
      %s143 = sphi 0, %s140
      %s144 = sphi 0, %s143
      %s160 = sphi 0, %s144
    $region4: #{impala_cnn_block.7} parent=1 // loop_header_branch
      %23 = sbr.rel (%p21) target = $region8
    $region5: #{impala_cnn_block.7} parent=1 // loop_body
      %s25 = ssub.s32 %s20, 1
      %s26 = ssub.s32 %s20, 2
      %s33 = sadd.s32 1, %s28
      %p34 = scmp.ge.s32.totalorder %s33, 1
      %s35 = scalar_select %p34, 0, %s33
      %s36 = sadd.s32 1, %s27
      %s37 = scalar_select %p34, %s36, %s27
      %p38 = scmp.ge.s32.totalorder %s37, 2
      %s39 = scalar_select %p38, 0, %s37
      %s40 = ssub.s32 %s27, %s39
      %p41 = scmp.eq.s32.totalorder %s40, 0
      %s43 = sadd.s32 %s42, 1
      %s44 = scalar_select %p41, %s42, %s43
      %p47 = pneg %p41
      %p48 = scmp.eq.s32.totalorder %s20, 1
      %p49 = por %p47, %p48
      %p50 = scmp.ne.s32.totalorder %s42, %s45
      %p51 = scmp.eq.s32.totalorder %s20, 0
      %p52 = por %p50, %p51
      %p53 = scmp.ne.s32.totalorder %s42, %s45
      %p54 = scmp.eq.s32.totalorder %s25, 1
      %p55 = por %p53, %p54
      %p56 = scmp.ne.s32.totalorder %s45, %s46
      %p57 = scmp.eq.s32.totalorder %s25, 0
      %p58 = por %p56, %p57
      %p59 = scmp.ne.s32.totalorder %s45, %s46
      %p60 = scmp.eq.s32.totalorder %s26, 1
      %p61 = por %p59, %p60
      %p63 = scmp.ne.s32.totalorder %s46, %s62
      %p64 = scmp.eq.s32.totalorder %s26, 0
      %p65 = por %p63, %p64
      %s67 = sadd.s32 %s66, 1
      %p70 = scmp.eq.s32.totalorder %s20, 1
      %p71 = scmp.ne.s32.totalorder %s66, %s68
      %p72 = scmp.eq.s32.totalorder %s20, 0
      %p73 = por %p71, %p72
      %p74 = scmp.ne.s32.totalorder %s66, %s68
      %p75 = scmp.eq.s32.totalorder %s25, 1
      %p76 = por %p74, %p75
      %p77 = scmp.ne.s32.totalorder %s68, %s69
      %p78 = scmp.eq.s32.totalorder %s25, 0
      %p79 = por %p77, %p78
      %p80 = scmp.ne.s32.totalorder %s68, %s69
      %p81 = scmp.eq.s32.totalorder %s26, 1
      %p82 = por %p80, %p81
      %p84 = scmp.ne.s32.totalorder %s69, %s83
      %p85 = scmp.eq.s32.totalorder %s26, 0
      %p86 = por %p84, %p85
      %s88 = sadd.s32 %s87, 1
      %p91 = scmp.eq.s32.totalorder %s20, 1
      %p92 = scmp.ne.s32.totalorder %s87, %s89
      %p93 = scmp.eq.s32.totalorder %s20, 0
      %p94 = por %p92, %p93
      %p95 = scmp.ne.s32.totalorder %s87, %s89
      %p96 = scmp.eq.s32.totalorder %s25, 1
      %p97 = por %p95, %p96
      %p98 = scmp.ne.s32.totalorder %s89, %s90
      %p99 = scmp.eq.s32.totalorder %s25, 0
      %p100 = por %p98, %p99
      %p101 = scmp.ne.s32.totalorder %s89, %s90
      %p102 = scmp.eq.s32.totalorder %s26, 1
      %p103 = por %p101, %p102
      %p105 = scmp.ne.s32.totalorder %s90, %s104
      %p106 = scmp.eq.s32.totalorder %s26, 0
      %p107 = por %p105, %p106
      %s108 = ssub.s32 %s27, %s39
      %s109 = ssub.s32 %s28, %s35
      %s110 = sor.u32 %s108, %s109
      %p111 = scmp.eq.s32.totalorder %s110, 0
      %s113 = sadd.s32 %s112, 1
      %s114 = scalar_select %p111, %s112, %s113
      %p117 = pneg %p111
      %p118 = scmp.eq.s32.totalorder %s20, 1
      %p119 = por %p117, %p118
      %p120 = scmp.ne.s32.totalorder %s112, %s115
      %p121 = scmp.eq.s32.totalorder %s20, 0
      %p122 = por %p120, %p121
      %p123 = scmp.ne.s32.totalorder %s112, %s115
      %p124 = scmp.eq.s32.totalorder %s25, 1
      %p125 = por %p123, %p124
      %p126 = scmp.ne.s32.totalorder %s115, %s116
      %p127 = scmp.eq.s32.totalorder %s25, 0
      %p128 = por %p126, %p127
      %p129 = scmp.ne.s32.totalorder %s115, %s116
      %p130 = scmp.eq.s32.totalorder %s26, 1
      %p131 = por %p129, %p130
      %p133 = scmp.ne.s32.totalorder %s116, %s132
      %p134 = scmp.eq.s32.totalorder %s26, 0
      %p135 = por %p133, %p134
      %s136 = ssub.s32 %s27, %s39
      %s137 = ssub.s32 %s28, %s35
      %s138 = sor.u32 %s136, %s137
      %p139 = scmp.eq.s32.totalorder %s138, 0
      %s141 = sadd.s32 %s140, 1
      %s142 = scalar_select %p139, %s140, %s141
      %p145 = pneg %p139
      %p146 = scmp.eq.s32.totalorder %s20, 1
      %p147 = por %p145, %p146
      %p148 = scmp.ne.s32.totalorder %s140, %s143
      %p149 = scmp.eq.s32.totalorder %s20, 0
      %p150 = por %p148, %p149
      %p151 = scmp.ne.s32.totalorder %s140, %s143
      %p152 = scmp.eq.s32.totalorder %s25, 1
      %p153 = por %p151, %p152
      %p154 = scmp.ne.s32.totalorder %s143, %s144
      %p155 = scmp.eq.s32.totalorder %s25, 0
      %p156 = por %p154, %p155
      %p157 = scmp.ne.s32.totalorder %s143, %s144
      %p158 = scmp.eq.s32.totalorder %s26, 1
      %p159 = por %p157, %p158
      %p161 = scmp.ne.s32.totalorder %s144, %s160
      %p162 = scmp.eq.s32.totalorder %s26, 0
      %p163 = por %p161, %p162
      %p164 = scmp.le.s32.totalorder 1, %s20
      %p165 = scmp.lt.s32.totalorder %s20, 3
      %p166 = pnand %p164, %p165
      %p167 = pneg %p166
      // Predicated region
      $region9: #{impala_cnn_block.7} parent=5 // pred_check
        _
      $region10: #{impala_cnn_block.7} parent=5 // pred_check_branch
        %169 = sbr.rel (%p166) target = $region12
      $region11: #{impala_cnn_block.7} parent=5 // pred_region
        %s170 = ssub.s32 %s20, 1
        // Predicated region
        $region13: #{impala_cnn_block.7} parent=11 // pred_check
          %p171 = pneg %p79
        $region14: #{impala_cnn_block.7} parent=11 // pred_check_branch
          %173 = sbr.rel (%p171) target = $region16
        $region15: #{impala_cnn_block.7} parent=11 // pred_region
          %s175 = ssub.s32 576, 576
          %176 = vsyncadd [#allocation7], %s175
          %s177 = sshll.u32 [#allocation6], 4
          %s178 = int_to_ptr.vmem [resolvable:$true] %s177
          %183 = dma.hbm_to_vmem [thread:$0]  %s1, 576, %s178, [#allocation7], 64, 64, 4
        $region16: #{impala_cnn_block.7} parent=11 // pred_fallthru
          _
        // Predicated region
        $region17: #{impala_cnn_block.7} parent=11 // pred_check
          %p184 = pneg %p100
        $region18: #{impala_cnn_block.7} parent=11 // pred_check_branch
          %186 = sbr.rel (%p184) target = $region20
        $region19: #{impala_cnn_block.7} parent=11 // pred_region
          %s188 = ssub.s32 16, 16
          %189 = vsyncadd [#allocation7], %s188
          %s191 = sshll.u32 [#allocation8], 4
          %s192 = int_to_ptr.vmem [resolvable:$true] %s191
          %194 = dma.hbm_to_vmem [thread:$0]  %s2, 16, %s192, [#allocation7]
        $region20: #{impala_cnn_block.7} parent=11 // pred_fallthru
          _
      $region12: #{impala_cnn_block.7} parent=5 // pred_fallthru
        _
      %p195 = scmp.lt.s32.totalorder %s20, 2
      // Predicated region
      $region21: #{impala_cnn_block.7} parent=5 // pred_check
        %p196 = pneg %p195
      $region22: #{impala_cnn_block.7} parent=5 // pred_check_branch
        %198 = sbr.rel (%p196) target = $region24
      $region23: #{impala_cnn_block.7} parent=5 // pred_region
        // Predicated region
        $region25: #{impala_cnn_block.7} parent=23 // pred_check
          %p199 = pneg %p52
        $region26: #{impala_cnn_block.7} parent=23 // pred_check_branch
          %201 = sbr.rel (%p199) target = $region28
        $region27: #{impala_cnn_block.7} parent=23 // pred_region
          %s202 = sand.u32 %s42, 1
          %s203 = scalar_lea.sflag [#allocation4], %s202
          %s204 = sand.u32 %s42, 1
          %s205 = smul.addr %s204, 32
          %s206 = scalar_lea.vmem [#allocation3], %s205
          %s208 = ssub.s32 512, 512
          %209 = vsyncadd %s203, %s208
          %s210 = smul.addr %s27, 8
          %s211 = smul.addr %s210, 64
          %s212 = scalar_lea.hbm %s0, %s211
          %s213 = sshll.u32 %s206, 4
          %s214 = int_to_ptr.vmem [resolvable:$true] %s213
          %219 = dma.hbm_to_vmem [thread:$0]  %s212, 512, %s214, %s203, 64, 64, 4
        $region28: #{impala_cnn_block.7} parent=23 // pred_fallthru
          _
        // Predicated region
        $region29: #{impala_cnn_block.7} parent=23 // pred_check
          %p220 = pneg %p122
        $region30: #{impala_cnn_block.7} parent=23 // pred_check_branch
          %222 = sbr.rel (%p220) target = $region32
        $region31: #{impala_cnn_block.7} parent=23 // pred_region
          %s223 = sand.u32 %s112, 1
          %s224 = scalar_lea.sflag [#allocation10], %s223
          %s225 = sand.u32 %s112, 1
          %s226 = smul.addr %s225, 32
          %s227 = scalar_lea.vmem [#allocation9], %s226
          %s228 = smul.u32 8, %s28
          %s230 = ssub.s32 512, 512
          %231 = vsyncadd %s224, %s230
          %s232 = smul.addr %s27, 8
          %s233 = sadd.s32 %s228, %s232
          %s234 = smul.addr %s233, 64
          %s235 = scalar_lea.hbm %s3, %s234
          %s236 = sshll.u32 %s227, 4
          %s237 = int_to_ptr.vmem [resolvable:$true] %s236
          %242 = dma.hbm_to_vmem [thread:$0]  %s235, 512, %s237, %s224, 64, 64, 4
        $region32: #{impala_cnn_block.7} parent=23 // pred_fallthru
          _
      $region24: #{impala_cnn_block.7} parent=5 // pred_fallthru
        _
      %p243 = scmp.le.s32.totalorder 1, %s20
      %p244 = scmp.lt.s32.totalorder %s20, 3
      %p245 = pnand %p243, %p244
      %p246 = pneg %p245
      // Predicated region
      $region33: #{impala_cnn_block.7} parent=5 // pred_check
        _
      $region34: #{impala_cnn_block.7} parent=5 // pred_check_branch
        %248 = sbr.rel (%p245) target = $region36
      $region35: #{impala_cnn_block.7} parent=5 // pred_region
        %s249 = ssub.s32 %s20, 1
        %s250 = sand.u32 %s45, 1
        %s251 = scalar_lea.sflag [#allocation4], %s250
        %s252 = sand.u32 %s45, 1
        %s253 = smul.addr %s252, 32
        %s254 = scalar_lea.vmem [#allocation3], %s253
        // Predicated region
        $region37: #{impala_cnn_block.7} parent=35 // pred_check
          %p255 = pneg %p58
        $region38: #{impala_cnn_block.7} parent=35 // pred_check_branch
          %257 = sbr.rel (%p255) target = $region40
        $region39: #{impala_cnn_block.7} parent=35 // pred_region
          %258 = dma.done %s251, 512
        $region40: #{impala_cnn_block.7} parent=35 // pred_fallthru
          _
        // Predicated region
        $region41: #{impala_cnn_block.7} parent=35 // pred_check
          %p259 = pneg %p79
        $region42: #{impala_cnn_block.7} parent=35 // pred_check_branch
          %261 = sbr.rel (%p259) target = $region44
        $region43: #{impala_cnn_block.7} parent=35 // pred_region
          %262 = dma.done [#allocation7], 576
        $region44: #{impala_cnn_block.7} parent=35 // pred_fallthru
          _
        // Predicated region
        $region45: #{impala_cnn_block.7} parent=35 // pred_check
          %p263 = pneg %p100
        $region46: #{impala_cnn_block.7} parent=35 // pred_check_branch
          %265 = sbr.rel (%p263) target = $region48
        $region47: #{impala_cnn_block.7} parent=35 // pred_region
          %266 = dma.done [#allocation7], 16
        $region48: #{impala_cnn_block.7} parent=35 // pred_fallthru
          _
        %s267 = sand.u32 %s115, 1
        %s268 = scalar_lea.sflag [#allocation10], %s267
        %s269 = sand.u32 %s115, 1
        %s270 = smul.addr %s269, 32
        %s271 = scalar_lea.vmem [#allocation9], %s270
        // Predicated region
        $region49: #{impala_cnn_block.7} parent=35 // pred_check
          %p272 = pneg %p128
        $region50: #{impala_cnn_block.7} parent=35 // pred_check_branch
          %274 = sbr.rel (%p272) target = $region52
        $region51: #{impala_cnn_block.7} parent=35 // pred_region
          %275 = dma.done %s268, 512
        $region52: #{impala_cnn_block.7} parent=35 // pred_fallthru
          _
        %s276 = sand.u32 %s45, 1
        %s277 = scalar_lea.sflag [#allocation4], %s276
        %s278 = sand.u32 %s45, 1
        %s279 = smul.addr %s278, 32
        %s280 = scalar_lea.vmem [#allocation3], %s279
        %p281 = pneg %p58
        %p282 = pneg %p55
        %p283 = pneg %p79
        %p284 = pneg %p76
        %p285 = pneg %p100
        %p286 = pneg %p97
        %s287 = sand.u32 %s115, 1
        %s288 = scalar_lea.sflag [#allocation10], %s287
        %s289 = sand.u32 %s115, 1
        %s290 = smul.addr %s289, 32
        %s291 = scalar_lea.vmem [#allocation9], %s290
        %p292 = pneg %p128
        %p293 = pneg %p125
        %p294 = pneg %p156
        %p295 = pneg %p153
        %s296 = sand.u32 %s143, 1
        %s297 = scalar_lea.sflag [#allocation5], %s296
        %s298 = sand.u32 %s143, 1
        %s299 = smul.addr %s298, 32
        %s300 = scalar_lea.vmem [#allocation11], %s299
        %s301 = smul.u32 8, %s30
        %s302 = smul.u32 8, %s30
        %p304 = scmp.eq.s32.totalorder %s30, 0
        // Predicated region
        $region53: #{impala_cnn_block.7} parent=35 // pred_check
          %p305 = pneg %p304
        $region54: #{impala_cnn_block.7} parent=35 // pred_check_branch
          %307 = sbr.rel (%p305) target = $region56
        $region55: #{impala_cnn_block.7} parent=35 // pred_region
          %v308 = vld [vmem:[%s254] sm:$0xf]
          %v309 = vld [vmem:[%s254 + $0x4] sm:$0xf]
          %v310 = vld [vmem:[%s254 + $0x8] sm:$0xf]
          %v311 = vld [vmem:[%s254 + $0xc] sm:$0xf]
          %v312 = vld [vmem:[%s254 + $0x10] sm:$0xf]
          %v313 = vld [vmem:[%s254 + $0x14] sm:$0xf]
          %v314 = vld [vmem:[%s254 + $0x18] sm:$0xf]
          %v315 = vld [vmem:[%s254 + $0x1c] sm:$0xf]
          %v316 = vmax.bf16 %v308, 0
          %v317 = vmax.bf16 %v309, 0
          %v318 = vmax.bf16 %v310, 0
          %v319 = vmax.bf16 %v311, 0
          %v320 = vmax.bf16 %v312, 0
          %v321 = vmax.bf16 %v313, 0
          %v322 = vmax.bf16 %v314, 0
          %v323 = vmax.bf16 %v315, 0
          %vm324 = vcmask 60416
          %325 = vst.msk [vmem:[#allocation2] sm:$0xf] %vm324, 0
          %vm326 = vcmask 57344
          %327 = vst.msk [vmem:[#allocation2 + $0x4] sm:$0x1] %vm326, 0
          %328 = vst.msk [vmem:[#allocation2 + $0x8] sm:$0xf] %vm324, 0
          %329 = vst.msk [vmem:[#allocation2 + $0xc] sm:$0x1] %vm326, 0
          %330 = vst.msk [vmem:[#allocation2 + $0x10] sm:$0xf] %vm324, 0
          %331 = vst.msk [vmem:[#allocation2 + $0x14] sm:$0x1] %vm326, 0
          %332 = vst.msk [vmem:[#allocation2 + $0x18] sm:$0xf] %vm324, 0
          %333 = vst.msk [vmem:[#allocation2 + $0x1c] sm:$0x1] %vm326, 0
          %334 = vst.msk [vmem:[#allocation2 + $0x20] sm:$0xf] %vm324, 0
          %335 = vst.msk [vmem:[#allocation2 + $0x24] sm:$0x1] %vm326, 0
          %336 = vst.msk [vmem:[#allocation2 + $0x28] sm:$0xf] %vm324, 0
          %337 = vst.msk [vmem:[#allocation2 + $0x2c] sm:$0x1] %vm326, 0
          %338 = vst.msk [vmem:[#allocation2 + $0x30] sm:$0xf] %vm324, 0
          %339 = vst.msk [vmem:[#allocation2 + $0x34] sm:$0x1] %vm326, 0
          %340 = vst.msk [vmem:[#allocation2 + $0x38] sm:$0xf] %vm324, 0
          %341 = vst.msk [vmem:[#allocation2 + $0x3c] sm:$0x1] %vm326, 0
          %342 = vst.msk [vmem:[#allocation2 + $0x40] sm:$0xf] %vm324, 0
          %343 = vst.msk [vmem:[#allocation2 + $0x44] sm:$0x1] %vm326, 0
          %344 = vst.msk [vmem:[#allocation2 + $0x48] sm:$0xf] %vm324, 0
          %345 = vst.msk [vmem:[#allocation2 + $0x4c] sm:$0x1] %vm326, 0
          %v347 = vshrl.u32 %v316, 16
          %v349 = vrot.slane %v347, 7
          %v350 = vshll.u32 %v316, 16
          %v352 = vor.u32 %v349, %v350
          %v353 = vrot.slane %v349, 4
          %v355 = vshrl.u32 %v317, 16
          %v357 = vrot.slane %v355, 7
          %v358 = vshll.u32 %v317, 16
          %v360 = vor.u32 %v357, %v358
          %v361 = vrot.slane %v357, 4
          %v363 = vshrl.u32 %v318, 16
          %v365 = vrot.slane %v363, 7
          %v366 = vshll.u32 %v318, 16
          %v368 = vor.u32 %v365, %v366
          %v369 = vrot.slane %v365, 4
          %v371 = vshrl.u32 %v319, 16
          %v373 = vrot.slane %v371, 7
          %v374 = vshll.u32 %v319, 16
          %v376 = vor.u32 %v373, %v374
          %v377 = vrot.slane %v373, 4
          %v379 = vshrl.u32 %v320, 16
          %v381 = vrot.slane %v379, 7
          %v382 = vshll.u32 %v320, 16
          %v384 = vor.u32 %v381, %v382
          %v385 = vrot.slane %v381, 4
          %v387 = vshrl.u32 %v321, 16
          %v389 = vrot.slane %v387, 7
          %v390 = vshll.u32 %v321, 16
          %v392 = vor.u32 %v389, %v390
          %v393 = vrot.slane %v389, 4
          %v395 = vshrl.u32 %v322, 16
          %v397 = vrot.slane %v395, 7
          %v398 = vshll.u32 %v322, 16
          %v400 = vor.u32 %v397, %v398
          %v401 = vrot.slane %v397, 4
          %v403 = vshrl.u32 %v323, 16
          %v405 = vrot.slane %v403, 7
          %v406 = vshll.u32 %v323, 16
          %v408 = vor.u32 %v405, %v406
          %v409 = vrot.slane %v405, 4
          %s426 = scalar_lea.vmem [#allocation2], 8
          %vm427 = vcmask 60416
          %vm428 = vsmask.f32 7938
          %vm429 = vmand %vm427, %vm428
          %v430 = vld [vmem:[%s426] sm:$0xf]
          %v431 = vsel %vm429, %v352, %v430
          %432 = vst [vmem:[%s426] sm:$0xf] %v431
          %vm433 = vcmask 57344
          %vm434 = vsmask.f32 256
          %vm435 = vmand %vm433, %vm434
          %v436 = vld [vmem:[%s426 + $0x4] sm:$0x1]
          %v437 = vsel %vm435, %v353, %v436
          %438 = vst [vmem:[%s426 + $0x4] sm:$0x1] %v437
          %v439 = vld [vmem:[%s426 + $0x8] sm:$0xf]
          %v440 = vsel %vm429, %v360, %v439
          %441 = vst [vmem:[%s426 + $0x8] sm:$0xf] %v440
          %v442 = vld [vmem:[%s426 + $0xc] sm:$0x1]
          %v443 = vsel %vm435, %v361, %v442
          %444 = vst [vmem:[%s426 + $0xc] sm:$0x1] %v443
          %v445 = vld [vmem:[%s426 + $0x10] sm:$0xf]
          %v446 = vsel %vm429, %v368, %v445
          %447 = vst [vmem:[%s426 + $0x10] sm:$0xf] %v446
          %v448 = vld [vmem:[%s426 + $0x14] sm:$0x1]
          %v449 = vsel %vm435, %v369, %v448
          %450 = vst [vmem:[%s426 + $0x14] sm:$0x1] %v449
          %v451 = vld [vmem:[%s426 + $0x18] sm:$0xf]
          %v452 = vsel %vm429, %v376, %v451
          %453 = vst [vmem:[%s426 + $0x18] sm:$0xf] %v452
          %v454 = vld [vmem:[%s426 + $0x1c] sm:$0x1]
          %v455 = vsel %vm435, %v377, %v454
          %456 = vst [vmem:[%s426 + $0x1c] sm:$0x1] %v455
          %v457 = vld [vmem:[%s426 + $0x20] sm:$0xf]
          %v458 = vsel %vm429, %v384, %v457
          %459 = vst [vmem:[%s426 + $0x20] sm:$0xf] %v458
          %v460 = vld [vmem:[%s426 + $0x24] sm:$0x1]
          %v461 = vsel %vm435, %v385, %v460
          %462 = vst [vmem:[%s426 + $0x24] sm:$0x1] %v461
          %v463 = vld [vmem:[%s426 + $0x28] sm:$0xf]
          %v464 = vsel %vm429, %v392, %v463
          %465 = vst [vmem:[%s426 + $0x28] sm:$0xf] %v464
          %v466 = vld [vmem:[%s426 + $0x2c] sm:$0x1]
          %v467 = vsel %vm435, %v393, %v466
          %468 = vst [vmem:[%s426 + $0x2c] sm:$0x1] %v467
          %v469 = vld [vmem:[%s426 + $0x30] sm:$0xf]
          %v470 = vsel %vm429, %v400, %v469
          %471 = vst [vmem:[%s426 + $0x30] sm:$0xf] %v470
          %v472 = vld [vmem:[%s426 + $0x34] sm:$0x1]
          %v473 = vsel %vm435, %v401, %v472
          %474 = vst [vmem:[%s426 + $0x34] sm:$0x1] %v473
          %v475 = vld [vmem:[%s426 + $0x38] sm:$0xf]
          %v476 = vsel %vm429, %v408, %v475
          %477 = vst [vmem:[%s426 + $0x38] sm:$0xf] %v476
          %v478 = vld [vmem:[%s426 + $0x3c] sm:$0x1]
          %v479 = vsel %vm435, %v409, %v478
          %480 = vst [vmem:[%s426 + $0x3c] sm:$0x1] %v479
        $region56: #{impala_cnn_block.7} parent=35 // pred_fallthru
          _
        %s481 = smul.u32 %s30, 8
        %s482 = smul.u32 %s481, 2
        %s483 = smul.addr %s482, 4
        %s484 = scalar_lea.vmem [#allocation2], %s483
        %v485 = vld [vmem:[%s484] sm:$0xf]
        %v486 = vld [vmem:[%s484 + $0x4] sm:$0x1]
        %v487 = vld [vmem:[%s484 + $0x8] sm:$0xf]
        %v488 = vld [vmem:[%s484 + $0xc] sm:$0x1]
        %v489 = vld [vmem:[%s484 + $0x10] sm:$0xf]
        %v490 = vld [vmem:[%s484 + $0x14] sm:$0x1]
        %v491 = vld [vmem:[%s484 + $0x18] sm:$0xf]
        %v492 = vld [vmem:[%s484 + $0x1c] sm:$0x1]
        %v493 = vld [vmem:[%s484 + $0x20] sm:$0xf]
        %v494 = vld [vmem:[%s484 + $0x24] sm:$0x1]
        %v495 = vld [vmem:[%s484 + $0x28] sm:$0xf]
        %v496 = vld [vmem:[%s484 + $0x2c] sm:$0x1]
        %v497 = vld [vmem:[%s484 + $0x30] sm:$0xf]
        %v498 = vld [vmem:[%s484 + $0x34] sm:$0x1]
        %v499 = vld [vmem:[%s484 + $0x38] sm:$0xf]
        %v500 = vld [vmem:[%s484 + $0x3c] sm:$0x1]
        %v501 = vld [vmem:[%s484 + $0x40] sm:$0xf]
        %v502 = vld [vmem:[%s484 + $0x44] sm:$0x1]
        %v503 = vld [vmem:[%s484 + $0x48] sm:$0xf]
        %v504 = vld [vmem:[%s484 + $0x4c] sm:$0x1]
        %v505 = vld [vmem:[#allocation8] sm:$0x1]
        %v522 = vunpack.c.l.b16 %v485
        %v523 = vunpack.c.l.b16 %v486
        %v524 = vunpack.c.l.b16 %v487
        %v525 = vunpack.c.l.b16 %v488
        %v526 = vunpack.c.l.b16 %v489
        %v527 = vunpack.c.l.b16 %v490
        %v528 = vunpack.c.l.b16 %v491
        %v529 = vunpack.c.l.b16 %v492
        %v530 = vunpack.c.l.b16 %v493
        %v531 = vunpack.c.l.b16 %v494
        %v532 = vunpack.c.l.b16 %v495
        %v533 = vunpack.c.l.b16 %v496
        %v534 = vunpack.c.l.b16 %v497
        %v535 = vunpack.c.l.b16 %v498
        %v536 = vunpack.c.l.b16 %v499
        %v537 = vunpack.c.l.b16 %v500
        %v538 = vpack.c.b16 %v523, %v522
        %v539 = vpack.c.b16 %v525, %v524
        %v540 = vpack.c.b16 %v527, %v526
        %v541 = vpack.c.b16 %v529, %v528
        %v542 = vpack.c.b16 %v531, %v530
        %v543 = vpack.c.b16 %v533, %v532
        %v544 = vpack.c.b16 %v535, %v534
        %v545 = vpack.c.b16 %v537, %v536
        %v547 = vshrl.u32 %v538, 16
        %v549 = vshll.u32 %v538, 16
        %v551 = vrot.slane %v549, 1
        %v552 = vor.u32 %v547, %v551
        %v554 = vshrl.u32 %v539, 16
        %v556 = vshll.u32 %v539, 16
        %v558 = vrot.slane %v556, 1
        %v559 = vor.u32 %v554, %v558
        %v561 = vshrl.u32 %v540, 16
        %v563 = vshll.u32 %v540, 16
        %v565 = vrot.slane %v563, 1
        %v566 = vor.u32 %v561, %v565
        %v568 = vshrl.u32 %v541, 16
        %v570 = vshll.u32 %v541, 16
        %v572 = vrot.slane %v570, 1
        %v573 = vor.u32 %v568, %v572
        %v575 = vshrl.u32 %v542, 16
        %v577 = vshll.u32 %v542, 16
        %v579 = vrot.slane %v577, 1
        %v580 = vor.u32 %v575, %v579
        %v582 = vshrl.u32 %v543, 16
        %v584 = vshll.u32 %v543, 16
        %v586 = vrot.slane %v584, 1
        %v587 = vor.u32 %v582, %v586
        %v589 = vshrl.u32 %v544, 16
        %v591 = vshll.u32 %v544, 16
        %v593 = vrot.slane %v591, 1
        %v594 = vor.u32 %v589, %v593
        %v596 = vshrl.u32 %v545, 16
        %v598 = vshll.u32 %v545, 16
        %v600 = vrot.slane %v598, 1
        %v601 = vor.u32 %v596, %v600
        %602 = vrot.lane.b32.xlu0 %v552, 8
        %v603 = vpop.permute.xlu0 %602
        %604 = vrot.lane.b32.xlu0 %v559, 8
        %v605 = vpop.permute.xlu0 %604
        %606 = vrot.lane.b32.xlu0 %v566, 8
        %v607 = vpop.permute.xlu0 %606
        %608 = vrot.lane.b32.xlu0 %v573, 8
        %v609 = vpop.permute.xlu0 %608
        %610 = vrot.lane.b32.xlu0 %v580, 8
        %v611 = vpop.permute.xlu0 %610
        %612 = vrot.lane.b32.xlu0 %v587, 8
        %v613 = vpop.permute.xlu0 %612
        %614 = vrot.lane.b32.xlu0 %v594, 8
        %v615 = vpop.permute.xlu0 %614
        %616 = vrot.lane.b32.xlu0 %v601, 8
        %v617 = vpop.permute.xlu0 %616
        %v618 = vrot.slane %v538, 1
        %v619 = vrot.slane %v539, 1
        %v620 = vrot.slane %v540, 1
        %v621 = vrot.slane %v541, 1
        %v622 = vrot.slane %v542, 1
        %v623 = vrot.slane %v543, 1
        %v624 = vrot.slane %v544, 1
        %v625 = vrot.slane %v545, 1
        %626 = vrot.lane.b32.xlu0 %v618, 16
        %v627 = vpop.permute.xlu0 %626
        %628 = vrot.lane.b32.xlu0 %v619, 16
        %v629 = vpop.permute.xlu0 %628
        %630 = vrot.lane.b32.xlu0 %v620, 16
        %v631 = vpop.permute.xlu0 %630
        %632 = vrot.lane.b32.xlu0 %v621, 16
        %v633 = vpop.permute.xlu0 %632
        %634 = vrot.lane.b32.xlu0 %v622, 16
        %v635 = vpop.permute.xlu0 %634
        %636 = vrot.lane.b32.xlu0 %v623, 16
        %v637 = vpop.permute.xlu0 %636
        %638 = vrot.lane.b32.xlu0 %v624, 16
        %v639 = vpop.permute.xlu0 %638
        %640 = vrot.lane.b32.xlu0 %v625, 16
        %v641 = vpop.permute.xlu0 %640
        %vm642 = vcmask 64512
        %v645 = vsel %vm642, %v485, %v603
        %v648 = vsel %vm642, %v487, %v605
        %v651 = vsel %vm642, %v489, %v607
        %v654 = vsel %vm642, %v491, %v609
        %v657 = vsel %vm642, %v493, %v611
        %v660 = vsel %vm642, %v495, %v613
        %v663 = vsel %vm642, %v497, %v615
        %v666 = vsel %vm642, %v499, %v617
        %vm667 = vcmask 130048
        %v669 = vsel %vm667, %v645, %v627
        %v671 = vsel %vm667, %v648, %v629
        %v673 = vsel %vm667, %v651, %v631
        %v675 = vsel %vm667, %v654, %v633
        %v677 = vsel %vm667, %v657, %v635
        %v679 = vsel %vm667, %v660, %v637
        %v681 = vsel %vm667, %v663, %v639
        %v683 = vsel %vm667, %v666, %v641
        %v684 = vld [vmem:[#allocation6] sm:$0xf]
        %v685 = vld [vmem:[#allocation6 + $0x4] sm:$0xf]
        %v686 = vld [vmem:[#allocation6 + $0x8] sm:$0xf]
        %v695 = vunpack.c.l.b16 %v669
        %v696 = vunpack.c.l.b16 %v671
        %v697 = vunpack.c.l.b16 %v673
        %v698 = vunpack.c.l.b16 %v675
        %v699 = vunpack.c.l.b16 %v677
        %v700 = vunpack.c.l.b16 %v679
        %v701 = vunpack.c.l.b16 %v681
        %v702 = vunpack.c.l.b16 %v683
        %v703 = vpack.c.b16 %v696, %v695
        %v704 = vpack.c.b16 %v698, %v697
        %v705 = vpack.c.b16 %v700, %v699
        %v706 = vpack.c.b16 %v702, %v701
        %v710 = vunpack.c.l.b16 %v684
        %v711 = vunpack.c.l.b16 %v685
        %v712 = vunpack.c.l.b16 %v686
        %v713 = vpack.c.b16 %v711, %v710
        %v714 = vpack.c.b16 %v712, %v712
        %vm716 = vcmask 195584
        %v718 = vsel %vm716, %v703, 0
        %v721 = vsel %vm716, %v704, 0
        %v724 = vsel %vm716, %v705, 0
        %v727 = vsel %vm716, %v706, 0
        %vm729 = vcmask 1043456
        %v731 = vsel %vm729, %v714, 0
        %733 = vmatprep.subr.bf16.mxu0 0
        %734 = vmatpush1.bf16.msra.mxu0 %v713
        %735 = vmatprep.subr.bf16.mxu0 0
        %736 = vmatpush1.bf16.msra.mxu0 %v731
        %737 = vmatprep.subr.bf16.mxu0 0
        %738 = vmatpush1.bf16.msra.mxu0 0
        %739 = vmatprep.subr.bf16.mxu0 0
        %740 = vmatpush1.bf16.msra.mxu0 0
        %741 = vmatprep.subr.bf16.mxu0 0
        %742 = vmatpush1.bf16.msra.mxu0 0
        %743 = vmatprep.subr.bf16.mxu0 0
        %744 = vmatpush1.bf16.msra.mxu0 0
        %745 = vmatprep.subr.bf16.mxu0 0
        %746 = vmatpush1.bf16.msra.mxu0 0
        %747 = vmatprep.subr.bf16.mxu0 0
        %748 = vmatpush1.bf16.msra.mxu0 0
        %749 = vmatprep.subr.bf16.mxu0 0
        %750 = vmatpush1.bf16.msra.mxu0 0
        %751 = vmatprep.subr.bf16.mxu0 0
        %752 = vmatpush1.bf16.msra.mxu0 0
        %753 = vmatprep.subr.bf16.mxu0 0
        %754 = vmatpush1.bf16.msra.mxu0 0
        %755 = vmatprep.subr.bf16.mxu0 0
        %756 = vmatpush1.bf16.msra.mxu0 0
        %757 = vmatprep.subr.bf16.mxu0 0
        %758 = vmatpush1.bf16.msra.mxu0 0
        %759 = vmatprep.subr.bf16.mxu0 0
        %760 = vmatpush1.bf16.msra.mxu0 0
        %761 = vmatprep.subr.bf16.mxu0 0
        %762 = vmatpush1.bf16.msra.mxu0 0
        %763 = vmatprep.subr.bf16.mxu0 0
        %764 = vmatpush1.bf16.msra.mxu0 0
        %765 = vmatprep.mubr.bf16.mxu0 0
        %766 = vmatmul.mubr.bf16.gmra.mrb[0].mxu0 %v718
        %v767 = vpop.f32.mrb[0].mxu0
        %v768 = vadd.f32 0.0, %v767
        %v769 = vpop.f32.mrb[0].mxu0
        %v770 = vpop.f32.mrb[0].mxu0
        %v771 = vadd.f32 0.0, %v770
        %v772 = vpop.f32.mrb[0].mxu0
        %773 = vmatprep.mubr.bf16.mxu0 0
        %774 = vmatmul.mubr.bf16.gmra.mrb[0].mxu0 %v721
        %v775 = vpop.f32.mrb[0].mxu0
        %v776 = vadd.f32 0.0, %v775
        %v777 = vpop.f32.mrb[0].mxu0
        %v778 = vpop.f32.mrb[0].mxu0
        %v779 = vadd.f32 0.0, %v778
        %v780 = vpop.f32.mrb[0].mxu0
        %781 = vmatprep.mubr.bf16.mxu0 0
        %782 = vmatmul.mubr.bf16.gmra.mrb[0].mxu0 %v724
        %v783 = vpop.f32.mrb[0].mxu0
        %v784 = vadd.f32 0.0, %v783
        %v785 = vpop.f32.mrb[0].mxu0
        %v786 = vpop.f32.mrb[0].mxu0
        %v787 = vadd.f32 0.0, %v786
        %v788 = vpop.f32.mrb[0].mxu0
        %789 = vmatprep.mubr.bf16.mxu0 0
        %790 = vmatmul.mubr.bf16.gmra.mrb[0].mxu0 %v727
        %v791 = vpop.f32.mrb[0].mxu0
        %v792 = vadd.f32 0.0, %v791
        %v793 = vpop.f32.mrb[0].mxu0
        %v794 = vpop.f32.mrb[0].mxu0
        %v795 = vadd.f32 0.0, %v794
        %v796 = vpop.f32.mrb[0].mxu0
        %797 = vdwg.mxu0
        %v799 = vlaneseq
        %v800 = vshrl.u32 %v799, 7
        %v801 = vsub.s32 0, %v800
        %v802 = vrot.slane %v505, %v801
        %v804 = vadd.f32 %v802, %v768
        %v805 = vadd.f32 %v802, %v771
        %v806 = vadd.f32 %v802, %v776
        %v807 = vadd.f32 %v802, %v779
        %v808 = vadd.f32 %v802, %v784
        %v809 = vadd.f32 %v802, %v787
        %v810 = vadd.f32 %v802, %v792
        %v811 = vadd.f32 %v802, %v795
        %v814 = vunpack.c.l.b16 %v501
        %v815 = vunpack.c.l.b16 %v502
        %v816 = vpack.c.b16 %v815, %v814
        %v818 = vshrl.u32 %v816, 16
        %v820 = vshll.u32 %v816, 16
        %v822 = vrot.slane %v820, 1
        %v823 = vor.u32 %v818, %v822
        %824 = vrot.lane.b32.xlu0 %v823, 8
        %v825 = vpop.permute.xlu0 %824
        %v826 = vrot.slane %v816, 1
        %827 = vrot.lane.b32.xlu0 %v826, 16
        %v828 = vpop.permute.xlu0 %827
        %v831 = vsel %vm642, %v501, %v825
        %v833 = vsel %vm667, %v831, %v828
        %s834 = scalar_lea.vmem [#allocation6], 12
        %v835 = vld [vmem:[%s834] sm:$0xf]
        %v836 = vld [vmem:[%s834 + $0x4] sm:$0xf]
        %v837 = vld [vmem:[%s834 + $0x8] sm:$0xf]
        %v839 = vunpack.c.l.b16 %v833
        %v840 = vpack.c.b16 %v697, %v696
        %v841 = vpack.c.b16 %v699, %v698
        %v842 = vpack.c.b16 %v701, %v700
        %v843 = vpack.c.b16 %v839, %v702
        %v847 = vunpack.c.l.b16 %v835
        %v848 = vunpack.c.l.b16 %v836
        %v849 = vunpack.c.l.b16 %v837
        %v850 = vpack.c.b16 %v848, %v847
        %v851 = vpack.c.b16 %v849, %v849
        %v854 = vsel %vm716, %v840, 0
        %v857 = vsel %vm716, %v841, 0
        %v860 = vsel %vm716, %v842, 0
        %v863 = vsel %vm716, %v843, 0
        %v866 = vsel %vm729, %v851, 0
        %868 = vmatprep.subr.bf16.mxu0 0
        %869 = vmatpush1.bf16.msra.mxu0 %v850
        %870 = vmatprep.subr.bf16.mxu0 0
        %871 = vmatpush1.bf16.msra.mxu0 %v866
        %872 = vmatprep.subr.bf16.mxu0 0
        %873 = vmatpush1.bf16.msra.mxu0 0
        %874 = vmatprep.subr.bf16.mxu0 0
        %875 = vmatpush1.bf16.msra.mxu0 0
        %876 = vmatprep.subr.bf16.mxu0 0
        %877 = vmatpush1.bf16.msra.mxu0 0
        %878 = vmatprep.subr.bf16.mxu0 0
        %879 = vmatpush1.bf16.msra.mxu0 0
        %880 = vmatprep.subr.bf16.mxu0 0
        %881 = vmatpush1.bf16.msra.mxu0 0
        %882 = vmatprep.subr.bf16.mxu0 0
        %883 = vmatpush1.bf16.msra.mxu0 0
        %884 = vmatprep.subr.bf16.mxu0 0
        %885 = vmatpush1.bf16.msra.mxu0 0
        %886 = vmatprep.subr.bf16.mxu0 0
        %887 = vmatpush1.bf16.msra.mxu0 0
        %888 = vmatprep.subr.bf16.mxu0 0
        %889 = vmatpush1.bf16.msra.mxu0 0
        %890 = vmatprep.subr.bf16.mxu0 0
        %891 = vmatpush1.bf16.msra.mxu0 0
        %892 = vmatprep.subr.bf16.mxu0 0
        %893 = vmatpush1.bf16.msra.mxu0 0
        %894 = vmatprep.subr.bf16.mxu0 0
        %895 = vmatpush1.bf16.msra.mxu0 0
        %896 = vmatprep.subr.bf16.mxu0 0
        %897 = vmatpush1.bf16.msra.mxu0 0
        %898 = vmatprep.subr.bf16.mxu0 0
        %899 = vmatpush1.bf16.msra.mxu0 0
        %900 = vmatprep.mubr.bf16.mxu0 0
        %901 = vmatmul.mubr.bf16.gmra.mrb[0].mxu0 %v854
        %v902 = vpop.f32.mrb[0].mxu0
        %v903 = vadd.f32 0.0, %v902
        %v904 = vpop.f32.mrb[0].mxu0
        %v905 = vpop.f32.mrb[0].mxu0
        %v906 = vadd.f32 0.0, %v905
        %v907 = vpop.f32.mrb[0].mxu0
        %908 = vmatprep.mubr.bf16.mxu0 0
        %909 = vmatmul.mubr.bf16.gmra.mrb[0].mxu0 %v857
        %v910 = vpop.f32.mrb[0].mxu0
        %v911 = vadd.f32 0.0, %v910
        %v912 = vpop.f32.mrb[0].mxu0
        %v913 = vpop.f32.mrb[0].mxu0
        %v914 = vadd.f32 0.0, %v913
        %v915 = vpop.f32.mrb[0].mxu0
        %916 = vmatprep.mubr.bf16.mxu0 0
        %917 = vmatmul.mubr.bf16.gmra.mrb[0].mxu0 %v860
        %v918 = vpop.f32.mrb[0].mxu0
        %v919 = vadd.f32 0.0, %v918
        %v920 = vpop.f32.mrb[0].mxu0
        %v921 = vpop.f32.mrb[0].mxu0
        %v922 = vadd.f32 0.0, %v921
        %v923 = vpop.f32.mrb[0].mxu0
        %924 = vmatprep.mubr.bf16.mxu0 0
        %925 = vmatmul.mubr.bf16.gmra.mrb[0].mxu0 %v863
        %v926 = vpop.f32.mrb[0].mxu0
        %v927 = vadd.f32 0.0, %v926
        %v928 = vpop.f32.mrb[0].mxu0
        %v929 = vpop.f32.mrb[0].mxu0
        %v930 = vadd.f32 0.0, %v929
        %v931 = vpop.f32.mrb[0].mxu0
        %932 = vdwg.mxu0
        %v933 = vadd.f32 %v804, %v903
        %v934 = vadd.f32 %v805, %v906
        %v935 = vadd.f32 %v806, %v911
        %v936 = vadd.f32 %v807, %v914
        %v937 = vadd.f32 %v808, %v919
        %v938 = vadd.f32 %v809, %v922
        %v939 = vadd.f32 %v810, %v927
        %v940 = vadd.f32 %v811, %v930
        %v943 = vunpack.c.l.b16 %v503
        %v944 = vunpack.c.l.b16 %v504
        %v945 = vpack.c.b16 %v944, %v943
        %v947 = vshrl.u32 %v945, 16
        %v949 = vshll.u32 %v945, 16
        %v951 = vrot.slane %v949, 1
        %v952 = vor.u32 %v947, %v951
        %953 = vrot.lane.b32.xlu0 %v952, 8
        %v954 = vpop.permute.xlu0 %953
        %v955 = vrot.slane %v945, 1
        %956 = vrot.lane.b32.xlu0 %v955, 16
        %v957 = vpop.permute.xlu0 %956
        %v960 = vsel %vm642, %v503, %v954
        %v962 = vsel %vm667, %v960, %v957
        %s963 = scalar_lea.vmem [#allocation6], 24
        %v964 = vld [vmem:[%s963] sm:$0xf]
        %v965 = vld [vmem:[%s963 + $0x4] sm:$0xf]
        %v966 = vld [vmem:[%s963 + $0x8] sm:$0xf]
        %v968 = vunpack.c.l.b16 %v962
        %v969 = vpack.c.b16 %v968, %v839
        %v973 = vunpack.c.l.b16 %v964
        %v974 = vunpack.c.l.b16 %v965
        %v975 = vunpack.c.l.b16 %v966
        %v976 = vpack.c.b16 %v974, %v973
        %v977 = vpack.c.b16 %v975, %v975
        %v980 = vsel %vm716, %v969, 0
        %v983 = vsel %vm729, %v977, 0
        %985 = vmatprep.subr.bf16.mxu0 0
        %986 = vmatpush1.bf16.msra.mxu0 %v976
        %987 = vmatprep.subr.bf16.mxu0 0
        %988 = vmatpush1.bf16.msra.mxu0 %v983
        %989 = vmatprep.subr.bf16.mxu0 0
        %990 = vmatpush1.bf16.msra.mxu0 0
        %991 = vmatprep.subr.bf16.mxu0 0
        %992 = vmatpush1.bf16.msra.mxu0 0
        %993 = vmatprep.subr.bf16.mxu0 0
        %994 = vmatpush1.bf16.msra.mxu0 0
        %995 = vmatprep.subr.bf16.mxu0 0
        %996 = vmatpush1.bf16.msra.mxu0 0
        %997 = vmatprep.subr.bf16.mxu0 0
        %998 = vmatpush1.bf16.msra.mxu0 0
        %999 = vmatprep.subr.bf16.mxu0 0
        %1000 = vmatpush1.bf16.msra.mxu0 0
        %1001 = vmatprep.subr.bf16.mxu0 0
        %1002 = vmatpush1.bf16.msra.mxu0 0
        %1003 = vmatprep.subr.bf16.mxu0 0
        %1004 = vmatpush1.bf16.msra.mxu0 0
        %1005 = vmatprep.subr.bf16.mxu0 0
        %1006 = vmatpush1.bf16.msra.mxu0 0
        %1007 = vmatprep.subr.bf16.mxu0 0
        %1008 = vmatpush1.bf16.msra.mxu0 0
        %1009 = vmatprep.subr.bf16.mxu0 0
        %1010 = vmatpush1.bf16.msra.mxu0 0
        %1011 = vmatprep.subr.bf16.mxu0 0
        %1012 = vmatpush1.bf16.msra.mxu0 0
        %1013 = vmatprep.subr.bf16.mxu0 0
        %1014 = vmatpush1.bf16.msra.mxu0 0
        %1015 = vmatprep.subr.bf16.mxu0 0
        %1016 = vmatpush1.bf16.msra.mxu0 0
        %1017 = vmatprep.mubr.bf16.mxu0 0
        %1018 = vmatmul.mubr.bf16.gmra.mrb[0].mxu0 %v721
        %v1019 = vpop.f32.mrb[0].mxu0
        %v1020 = vadd.f32 0.0, %v1019
        %v1021 = vpop.f32.mrb[0].mxu0
        %v1022 = vpop.f32.mrb[0].mxu0
        %v1023 = vadd.f32 0.0, %v1022
        %v1024 = vpop.f32.mrb[0].mxu0
        %1025 = vmatprep.mubr.bf16.mxu0 0
        %1026 = vmatmul.mubr.bf16.gmra.mrb[0].mxu0 %v724
        %v1027 = vpop.f32.mrb[0].mxu0
        %v1028 = vadd.f32 0.0, %v1027
        %v1029 = vpop.f32.mrb[0].mxu0
        %v1030 = vpop.f32.mrb[0].mxu0
        %v1031 = vadd.f32 0.0, %v1030
        %v1032 = vpop.f32.mrb[0].mxu0
        %1033 = vmatprep.mubr.bf16.mxu0 0
        %1034 = vmatmul.mubr.bf16.gmra.mrb[0].mxu0 %v727
        %v1035 = vpop.f32.mrb[0].mxu0
        %v1036 = vadd.f32 0.0, %v1035
        %v1037 = vpop.f32.mrb[0].mxu0
        %v1038 = vpop.f32.mrb[0].mxu0
        %v1039 = vadd.f32 0.0, %v1038
        %v1040 = vpop.f32.mrb[0].mxu0
        %1041 = vmatprep.mubr.bf16.mxu0 0
        %1042 = vmatmul.mubr.bf16.gmra.mrb[0].mxu0 %v980
        %v1043 = vpop.f32.mrb[0].mxu0
        %v1044 = vadd.f32 0.0, %v1043
        %v1045 = vpop.f32.mrb[0].mxu0
        %v1046 = vpop.f32.mrb[0].mxu0
        %v1047 = vadd.f32 0.0, %v1046
        %v1048 = vpop.f32.mrb[0].mxu0
        %1049 = vdwg.mxu0
        %v1050 = vadd.f32 %v933, %v1020
        %v1051 = vadd.f32 %v934, %v1023
        %v1052 = vadd.f32 %v935, %v1028
        %v1053 = vadd.f32 %v936, %v1031
        %v1054 = vadd.f32 %v937, %v1036
        %v1055 = vadd.f32 %v938, %v1039
        %v1056 = vadd.f32 %v939, %v1044
        %v1057 = vadd.f32 %v940, %v1047
        %v1058 = vld [vmem:[%s271] sm:$0xf]
        %v1059 = vld [vmem:[%s271 + $0x4] sm:$0xf]
        %v1060 = vld [vmem:[%s271 + $0x8] sm:$0xf]
        %v1061 = vld [vmem:[%s271 + $0xc] sm:$0xf]
        %v1062 = vld [vmem:[%s271 + $0x10] sm:$0xf]
        %v1063 = vld [vmem:[%s271 + $0x14] sm:$0xf]
        %v1064 = vld [vmem:[%s271 + $0x18] sm:$0xf]
        %v1065 = vld [vmem:[%s271 + $0x1c] sm:$0xf]
        %v1066 = vunpack.c.l.bf16 %v1058
        %v1067 = vunpack.c.l.bf16 %v1059
        %v1068 = vunpack.c.l.bf16 %v1060
        %v1069 = vunpack.c.l.bf16 %v1061
        %v1070 = vunpack.c.l.bf16 %v1062
        %v1071 = vunpack.c.l.bf16 %v1063
        %v1072 = vunpack.c.l.bf16 %v1064
        %v1073 = vunpack.c.l.bf16 %v1065
        %v1074 = vadd.f32 %v1050, %v1066
        %v1075 = vadd.f32 %v1051, %v1067
        %v1076 = vadd.f32 %v1052, %v1068
        %v1077 = vadd.f32 %v1053, %v1069
        %v1078 = vadd.f32 %v1054, %v1070
        %v1079 = vadd.f32 %v1055, %v1071
        %v1080 = vadd.f32 %v1056, %v1072
        %v1081 = vadd.f32 %v1057, %v1073
        %v1082 = vpack.c.bf16 %v1074, %v1074
        %v1083 = vpack.c.bf16 %v1075, %v1075
        %v1084 = vpack.c.bf16 %v1076, %v1076
        %v1085 = vpack.c.bf16 %v1077, %v1077
        %v1086 = vpack.c.bf16 %v1078, %v1078
        %v1087 = vpack.c.bf16 %v1079, %v1079
        %v1088 = vpack.c.bf16 %v1080, %v1080
        %v1089 = vpack.c.bf16 %v1081, %v1081
        %vm1090 = vcmask 60416
        %1091 = vst.msk [vmem:[%s300] sm:$0xf] %vm1090, %v1082
        %1092 = vst.msk [vmem:[%s300 + $0x4] sm:$0xf] %vm1090, %v1083
        %1093 = vst.msk [vmem:[%s300 + $0x8] sm:$0xf] %vm1090, %v1084
        %1094 = vst.msk [vmem:[%s300 + $0xc] sm:$0xf] %vm1090, %v1085
        %1095 = vst.msk [vmem:[%s300 + $0x10] sm:$0xf] %vm1090, %v1086
        %1096 = vst.msk [vmem:[%s300 + $0x14] sm:$0xf] %vm1090, %v1087
        %1097 = vst.msk [vmem:[%s300 + $0x18] sm:$0xf] %vm1090, %v1088
        %1098 = vst.msk [vmem:[%s300 + $0x1c] sm:$0xf] %vm1090, %v1089
        %s1099 = sand.u32 %s143, 1
        %s1100 = scalar_lea.sflag [#allocation5], %s1099
        %s1101 = sand.u32 %s143, 1
        %s1102 = smul.addr %s1101, 32
        %s1103 = scalar_lea.vmem [#allocation11], %s1102
        // Predicated region
        $region57: #{impala_cnn_block.7} parent=35 // pred_check
          %p1104 = pneg %p153
        $region58: #{impala_cnn_block.7} parent=35 // pred_check_branch
          %1106 = sbr.rel (%p1104) target = $region60
        $region59: #{impala_cnn_block.7} parent=35 // pred_region
          %s1107 = smul.u32 8, %s30
          %s1109 = ssub.s32 512, 512
          %1110 = vsyncadd %s1100, %s1109
          %s1111 = smul.addr %s29, 8
          %s1112 = sadd.s32 %s1107, %s1111
          %s1113 = smul.addr %s1112, 64
          %s1114 = scalar_lea.hbm %s4, %s1113
          %s1115 = sshll.u32 %s1103, 4
          %s1116 = int_to_ptr.vmem [resolvable:$true] %s1115
          %1121 = dma.vmem_to_hbm [thread:$0]  %s1116, 512, %s1114, %s1100, 64, 64, 4
        $region60: #{impala_cnn_block.7} parent=35 // pred_fallthru
          _
      $region36: #{impala_cnn_block.7} parent=5 // pred_fallthru
        _
      %p1122 = scmp.le.s32.totalorder 2, %s20
      // Predicated region
      $region61: #{impala_cnn_block.7} parent=5 // pred_check
        %p1123 = pneg %p1122
      $region62: #{impala_cnn_block.7} parent=5 // pred_check_branch
        %1125 = sbr.rel (%p1123) target = $region64
      $region63: #{impala_cnn_block.7} parent=5 // pred_region
        %s1126 = ssub.s32 %s20, 2
        // Predicated region
        $region65: #{impala_cnn_block.7} parent=63 // pred_check
          %p1127 = pneg %p159
        $region66: #{impala_cnn_block.7} parent=63 // pred_check_branch
          %1129 = sbr.rel (%p1127) target = $region68
        $region67: #{impala_cnn_block.7} parent=63 // pred_region
          %s1130 = sand.u32 %s144, 1
          %s1131 = scalar_lea.sflag [#allocation5], %s1130
          %s1132 = sand.u32 %s144, 1
          %s1133 = smul.addr %s1132, 32
          %s1134 = scalar_lea.vmem [#allocation11], %s1133
          %1135 = dma.done %s1131, 512
        $region68: #{impala_cnn_block.7} parent=63 // pred_fallthru
          _
      $region64: #{impala_cnn_block.7} parent=5 // pred_fallthru
        _
    $region6: #{impala_cnn_block.7} parent=1 // loop_footer
      %s24 = sadd.s32 1, %s20
    $region7: #{impala_cnn_block.7} parent=1 // loop_footer_branch
      %19 = sbr.rel target = $region3
    $region8: #{impala_cnn_block.7} parent=1 // loop_exit
      _
    %1136 = vsyncpa [#allocation4], 1
    %s1137 = scalar_lea.sflag [#allocation4], 1
    %1138 = vsyncpa %s1137, 1
    %1139 = vsyncpa [#allocation7], 1
    %1140 = vsyncpa [#allocation10], 1
    %s1141 = scalar_lea.sflag [#allocation10], 1
    %1142 = vsyncpa %s1141, 1
    %1143 = vsyncpa [#allocation5], 1
    %s1144 = scalar_lea.sflag [#allocation5], 1
    %1145 = vsyncpa %s1144, 1

// kernel: impala_cnn_block.9
$region0: #{impala_cnn_block.9}
  #allocation0 [shape = 'u32[]', space=smem, size = 0x4, offset = 0x4, fixed_abs, tag = 'smem constant byte address 0x4 - core index']
  #allocation1 [shape = 'u32[144,128]{1,0:T(1,128)}', space=vmem, size = 0x12000, scoped, tag = 'internal scratch']
  #allocation2 [shape = 'bf16[10,10,8]{2,1,0:T(8,128)(2,1)}', space=vmem, size = 0xa000, scoped, tag = 'scratch operand']
  %s0 = inlined_call_operand.hbm [shape: bf16[2,8,8,8], index: 0, kind: input, shape index: {}]
  %s1 = inlined_call_operand.hbm [shape: bf16[3,24,8], index: 1, kind: input, shape index: {}]
  %s2 = inlined_call_operand.hbm [shape: f32[1,8], index: 2, kind: input, shape index: {}]
  %s3 = inlined_call_operand.hbm [shape: bf16[2,8,8,8], index: 3, kind: input, shape index: {}]
  %s4 = inlined_call_operand.hbm [shape: f32[2,8,8,8], index: 4, kind: output, shape index: {}]
  %s5 = sld [smem:[#allocation0]]
  $region69: #{impala_cnn_block.9} parent=0
    _
  %s7 = ssub.s32 1, %s5
  %s8 = scalar_select 0, %s7, %s5
  $region1: #{impala_cnn_block.9} parent=0
    #allocation3 [shape = 'u8[32768]{0}', space=vmem, size = 0x8000, scoped, tag = 'input window, operand 0']
    #allocation4 [shape = 's32[2]{0}', space=sflag, size = 0x8, scoped, tag = 'scoped memory for impala_cnn_block.9']
    #allocation5 [shape = 's32[2]{0}', space=sflag, size = 0x8, scoped, tag = 'scoped memory for impala_cnn_block.9']
    #allocation6 [shape = 'u8[18432]{0}', space=vmem, size = 0x4800, scoped, tag = 'input window, operand 1, single buffered']
    #allocation7 [shape = 's32[1]{0}', space=sflag, size = 0x4, scoped, tag = 'scoped memory for impala_cnn_block.9']
    #allocation8 [shape = 'u8[512]{0}', space=vmem, size = 0x400, scoped, tag = 'input window, operand 2, single buffered']
    #allocation9 [shape = 'u8[32768]{0}', space=vmem, size = 0x8000, scoped, tag = 'input window, operand 3']
    #allocation10 [shape = 's32[2]{0}', space=sflag, size = 0x8, scoped, tag = 'scoped memory for impala_cnn_block.9']
    #allocation11 [shape = 'u8[65536]{0}', space=vmem, size = 0x10000, scoped, tag = 'output window, operand 0']
    %9 = vsyncpa [#allocation4], 0
    %s10 = scalar_lea.sflag [#allocation4], 1
    %11 = vsyncpa %s10, 0
    %12 = vsyncpa [#allocation7], 0
    %13 = vsyncpa [#allocation10], 0
    %s14 = scalar_lea.sflag [#allocation10], 1
    %15 = vsyncpa %s14, 0
    %16 = vsyncpa [#allocation5], 0
    %s17 = scalar_lea.sflag [#allocation5], 1
    %18 = vsyncpa %s17, 0
    loop: start=0, step=1, limit=4
    $region2: #{impala_cnn_block.9} parent=1 // loop_pre_header
      _
    $region3: #{impala_cnn_block.9} parent=1 // loop_header
      %s20 = sphi 0, %s24
      %p21 = scmp.ge.s32.totalorder %s20, 4
      %s27 = sphi 0, %s39
      %s28 = sphi 0, %s35
      %s29 = sphi 0, %s27
      %s30 = sphi 0, %s28
      %s31 = sphi 0, %s29
      %s32 = sphi 0, %s30
      %s42 = sphi 0, %s44
      %s45 = sphi 0, %s42
      %s46 = sphi 0, %s45
      %s62 = sphi 0, %s46
      %s66 = sphi 0, %s66
      %s68 = sphi 0, %s66
      %s69 = sphi 0, %s68
      %s83 = sphi 0, %s69
      %s87 = sphi 0, %s87
      %s89 = sphi 0, %s87
      %s90 = sphi 0, %s89
      %s104 = sphi 0, %s90
      %s112 = sphi 0, %s114
      %s115 = sphi 0, %s112
      %s116 = sphi 0, %s115
      %s132 = sphi 0, %s116
      %s140 = sphi 0, %s142
      %s143 = sphi 0, %s140
      %s144 = sphi 0, %s143
      %s160 = sphi 0, %s144
    $region4: #{impala_cnn_block.9} parent=1 // loop_header_branch
      %23 = sbr.rel (%p21) target = $region8
    $region5: #{impala_cnn_block.9} parent=1 // loop_body
      %s25 = ssub.s32 %s20, 1
      %s26 = ssub.s32 %s20, 2
      %s33 = sadd.s32 1, %s28
      %p34 = scmp.ge.s32.totalorder %s33, 1
      %s35 = scalar_select %p34, 0, %s33
      %s36 = sadd.s32 1, %s27
      %s37 = scalar_select %p34, %s36, %s27
      %p38 = scmp.ge.s32.totalorder %s37, 2
      %s39 = scalar_select %p38, 0, %s37
      %s40 = ssub.s32 %s27, %s39
      %p41 = scmp.eq.s32.totalorder %s40, 0
      %s43 = sadd.s32 %s42, 1
      %s44 = scalar_select %p41, %s42, %s43
      %p47 = pneg %p41
      %p48 = scmp.eq.s32.totalorder %s20, 1
      %p49 = por %p47, %p48
      %p50 = scmp.ne.s32.totalorder %s42, %s45
      %p51 = scmp.eq.s32.totalorder %s20, 0
      %p52 = por %p50, %p51
      %p53 = scmp.ne.s32.totalorder %s42, %s45
      %p54 = scmp.eq.s32.totalorder %s25, 1
      %p55 = por %p53, %p54
      %p56 = scmp.ne.s32.totalorder %s45, %s46
      %p57 = scmp.eq.s32.totalorder %s25, 0
      %p58 = por %p56, %p57
      %p59 = scmp.ne.s32.totalorder %s45, %s46
      %p60 = scmp.eq.s32.totalorder %s26, 1
      %p61 = por %p59, %p60
      %p63 = scmp.ne.s32.totalorder %s46, %s62
      %p64 = scmp.eq.s32.totalorder %s26, 0
      %p65 = por %p63, %p64
      %s67 = sadd.s32 %s66, 1
      %p70 = scmp.eq.s32.totalorder %s20, 1
      %p71 = scmp.ne.s32.totalorder %s66, %s68
      %p72 = scmp.eq.s32.totalorder %s20, 0
      %p73 = por %p71, %p72
      %p74 = scmp.ne.s32.totalorder %s66, %s68
      %p75 = scmp.eq.s32.totalorder %s25, 1
      %p76 = por %p74, %p75
      %p77 = scmp.ne.s32.totalorder %s68, %s69
      %p78 = scmp.eq.s32.totalorder %s25, 0
      %p79 = por %p77, %p78
      %p80 = scmp.ne.s32.totalorder %s68, %s69
      %p81 = scmp.eq.s32.totalorder %s26, 1
      %p82 = por %p80, %p81
      %p84 = scmp.ne.s32.totalorder %s69, %s83
      %p85 = scmp.eq.s32.totalorder %s26, 0
      %p86 = por %p84, %p85
      %s88 = sadd.s32 %s87, 1
      %p91 = scmp.eq.s32.totalorder %s20, 1
      %p92 = scmp.ne.s32.totalorder %s87, %s89
      %p93 = scmp.eq.s32.totalorder %s20, 0
      %p94 = por %p92, %p93
      %p95 = scmp.ne.s32.totalorder %s87, %s89
      %p96 = scmp.eq.s32.totalorder %s25, 1
      %p97 = por %p95, %p96
      %p98 = scmp.ne.s32.totalorder %s89, %s90
      %p99 = scmp.eq.s32.totalorder %s25, 0
      %p100 = por %p98, %p99
      %p101 = scmp.ne.s32.totalorder %s89, %s90
      %p102 = scmp.eq.s32.totalorder %s26, 1
      %p103 = por %p101, %p102
      %p105 = scmp.ne.s32.totalorder %s90, %s104
      %p106 = scmp.eq.s32.totalorder %s26, 0
      %p107 = por %p105, %p106
      %s108 = ssub.s32 %s27, %s39
      %s109 = ssub.s32 %s28, %s35
      %s110 = sor.u32 %s108, %s109
      %p111 = scmp.eq.s32.totalorder %s110, 0
      %s113 = sadd.s32 %s112, 1
      %s114 = scalar_select %p111, %s112, %s113
      %p117 = pneg %p111
      %p118 = scmp.eq.s32.totalorder %s20, 1
      %p119 = por %p117, %p118
      %p120 = scmp.ne.s32.totalorder %s112, %s115
      %p121 = scmp.eq.s32.totalorder %s20, 0
      %p122 = por %p120, %p121
      %p123 = scmp.ne.s32.totalorder %s112, %s115
      %p124 = scmp.eq.s32.totalorder %s25, 1
      %p125 = por %p123, %p124
      %p126 = scmp.ne.s32.totalorder %s115, %s116
      %p127 = scmp.eq.s32.totalorder %s25, 0
      %p128 = por %p126, %p127
      %p129 = scmp.ne.s32.totalorder %s115, %s116
      %p130 = scmp.eq.s32.totalorder %s26, 1
      %p131 = por %p129, %p130
      %p133 = scmp.ne.s32.totalorder %s116, %s132
      %p134 = scmp.eq.s32.totalorder %s26, 0
      %p135 = por %p133, %p134
      %s136 = ssub.s32 %s27, %s39
      %s137 = ssub.s32 %s28, %s35
      %s138 = sor.u32 %s136, %s137
      %p139 = scmp.eq.s32.totalorder %s138, 0
      %s141 = sadd.s32 %s140, 1
      %s142 = scalar_select %p139, %s140, %s141
      %p145 = pneg %p139
      %p146 = scmp.eq.s32.totalorder %s20, 1
      %p147 = por %p145, %p146
      %p148 = scmp.ne.s32.totalorder %s140, %s143
      %p149 = scmp.eq.s32.totalorder %s20, 0
      %p150 = por %p148, %p149
      %p151 = scmp.ne.s32.totalorder %s140, %s143
      %p152 = scmp.eq.s32.totalorder %s25, 1
      %p153 = por %p151, %p152
      %p154 = scmp.ne.s32.totalorder %s143, %s144
      %p155 = scmp.eq.s32.totalorder %s25, 0
      %p156 = por %p154, %p155
      %p157 = scmp.ne.s32.totalorder %s143, %s144
      %p158 = scmp.eq.s32.totalorder %s26, 1
      %p159 = por %p157, %p158
      %p161 = scmp.ne.s32.totalorder %s144, %s160
      %p162 = scmp.eq.s32.totalorder %s26, 0
      %p163 = por %p161, %p162
      %p164 = scmp.le.s32.totalorder 1, %s20
      %p165 = scmp.lt.s32.totalorder %s20, 3
      %p166 = pnand %p164, %p165
      %p167 = pneg %p166
      // Predicated region
      $region9: #{impala_cnn_block.9} parent=5 // pred_check
        _
      $region10: #{impala_cnn_block.9} parent=5 // pred_check_branch
        %169 = sbr.rel (%p166) target = $region12
      $region11: #{impala_cnn_block.9} parent=5 // pred_region
        %s170 = ssub.s32 %s20, 1
        // Predicated region
        $region13: #{impala_cnn_block.9} parent=11 // pred_check
          %p171 = pneg %p79
        $region14: #{impala_cnn_block.9} parent=11 // pred_check_branch
          %173 = sbr.rel (%p171) target = $region16
        $region15: #{impala_cnn_block.9} parent=11 // pred_region
          %s175 = ssub.s32 576, 576
          %176 = vsyncadd [#allocation7], %s175
          %s177 = sshll.u32 [#allocation6], 4
          %s178 = int_to_ptr.vmem [resolvable:$true] %s177
          %183 = dma.hbm_to_vmem [thread:$0]  %s1, 576, %s178, [#allocation7], 64, 64, 4
        $region16: #{impala_cnn_block.9} parent=11 // pred_fallthru
          _
        // Predicated region
        $region17: #{impala_cnn_block.9} parent=11 // pred_check
          %p184 = pneg %p100
        $region18: #{impala_cnn_block.9} parent=11 // pred_check_branch
          %186 = sbr.rel (%p184) target = $region20
        $region19: #{impala_cnn_block.9} parent=11 // pred_region
          %s188 = ssub.s32 16, 16
          %189 = vsyncadd [#allocation7], %s188
          %s191 = sshll.u32 [#allocation8], 4
          %s192 = int_to_ptr.vmem [resolvable:$true] %s191
          %194 = dma.hbm_to_vmem [thread:$0]  %s2, 16, %s192, [#allocation7]
        $region20: #{impala_cnn_block.9} parent=11 // pred_fallthru
          _
      $region12: #{impala_cnn_block.9} parent=5 // pred_fallthru
        _
      %p195 = scmp.lt.s32.totalorder %s20, 2
      // Predicated region
      $region21: #{impala_cnn_block.9} parent=5 // pred_check
        %p196 = pneg %p195
      $region22: #{impala_cnn_block.9} parent=5 // pred_check_branch
        %198 = sbr.rel (%p196) target = $region24
      $region23: #{impala_cnn_block.9} parent=5 // pred_region
        // Predicated region
        $region25: #{impala_cnn_block.9} parent=23 // pred_check
          %p199 = pneg %p52
        $region26: #{impala_cnn_block.9} parent=23 // pred_check_branch
          %201 = sbr.rel (%p199) target = $region28
        $region27: #{impala_cnn_block.9} parent=23 // pred_region
          %s202 = sand.u32 %s42, 1
          %s203 = scalar_lea.sflag [#allocation4], %s202
          %s204 = sand.u32 %s42, 1
          %s205 = smul.addr %s204, 32
          %s206 = scalar_lea.vmem [#allocation3], %s205
          %s208 = ssub.s32 512, 512
          %209 = vsyncadd %s203, %s208
          %s210 = smul.addr %s27, 8
          %s211 = smul.addr %s210, 64
          %s212 = scalar_lea.hbm %s0, %s211
          %s213 = sshll.u32 %s206, 4
          %s214 = int_to_ptr.vmem [resolvable:$true] %s213
          %219 = dma.hbm_to_vmem [thread:$0]  %s212, 512, %s214, %s203, 64, 64, 4
        $region28: #{impala_cnn_block.9} parent=23 // pred_fallthru
          _
        // Predicated region
        $region29: #{impala_cnn_block.9} parent=23 // pred_check
          %p220 = pneg %p122
        $region30: #{impala_cnn_block.9} parent=23 // pred_check_branch
          %222 = sbr.rel (%p220) target = $region32
        $region31: #{impala_cnn_block.9} parent=23 // pred_region
          %s223 = sand.u32 %s112, 1
          %s224 = scalar_lea.sflag [#allocation10], %s223
          %s225 = sand.u32 %s112, 1
          %s226 = smul.addr %s225, 32
          %s227 = scalar_lea.vmem [#allocation9], %s226
          %s228 = smul.u32 8, %s28
          %s230 = ssub.s32 512, 512
          %231 = vsyncadd %s224, %s230
          %s232 = smul.addr %s27, 8
          %s233 = sadd.s32 %s228, %s232
          %s234 = smul.addr %s233, 64
          %s235 = scalar_lea.hbm %s3, %s234
          %s236 = sshll.u32 %s227, 4
          %s237 = int_to_ptr.vmem [resolvable:$true] %s236
          %242 = dma.hbm_to_vmem [thread:$0]  %s235, 512, %s237, %s224, 64, 64, 4
        $region32: #{impala_cnn_block.9} parent=23 // pred_fallthru
          _
      $region24: #{impala_cnn_block.9} parent=5 // pred_fallthru
        _
      %p243 = scmp.le.s32.totalorder 1, %s20
      %p244 = scmp.lt.s32.totalorder %s20, 3
      %p245 = pnand %p243, %p244
      %p246 = pneg %p245
      // Predicated region
      $region33: #{impala_cnn_block.9} parent=5 // pred_check
        _
      $region34: #{impala_cnn_block.9} parent=5 // pred_check_branch
        %248 = sbr.rel (%p245) target = $region36
      $region35: #{impala_cnn_block.9} parent=5 // pred_region
        %s249 = ssub.s32 %s20, 1
        %s250 = sand.u32 %s45, 1
        %s251 = scalar_lea.sflag [#allocation4], %s250
        %s252 = sand.u32 %s45, 1
        %s253 = smul.addr %s252, 32
        %s254 = scalar_lea.vmem [#allocation3], %s253
        // Predicated region
        $region37: #{impala_cnn_block.9} parent=35 // pred_check
          %p255 = pneg %p58
        $region38: #{impala_cnn_block.9} parent=35 // pred_check_branch
          %257 = sbr.rel (%p255) target = $region40
        $region39: #{impala_cnn_block.9} parent=35 // pred_region
          %258 = dma.done %s251, 512
        $region40: #{impala_cnn_block.9} parent=35 // pred_fallthru
          _
        // Predicated region
        $region41: #{impala_cnn_block.9} parent=35 // pred_check
          %p259 = pneg %p79
        $region42: #{impala_cnn_block.9} parent=35 // pred_check_branch
          %261 = sbr.rel (%p259) target = $region44
        $region43: #{impala_cnn_block.9} parent=35 // pred_region
          %262 = dma.done [#allocation7], 576
        $region44: #{impala_cnn_block.9} parent=35 // pred_fallthru
          _
        // Predicated region
        $region45: #{impala_cnn_block.9} parent=35 // pred_check
          %p263 = pneg %p100
        $region46: #{impala_cnn_block.9} parent=35 // pred_check_branch
          %265 = sbr.rel (%p263) target = $region48
        $region47: #{impala_cnn_block.9} parent=35 // pred_region
          %266 = dma.done [#allocation7], 16
        $region48: #{impala_cnn_block.9} parent=35 // pred_fallthru
          _
        %s267 = sand.u32 %s115, 1
        %s268 = scalar_lea.sflag [#allocation10], %s267
        %s269 = sand.u32 %s115, 1
        %s270 = smul.addr %s269, 32
        %s271 = scalar_lea.vmem [#allocation9], %s270
        // Predicated region
        $region49: #{impala_cnn_block.9} parent=35 // pred_check
          %p272 = pneg %p128
        $region50: #{impala_cnn_block.9} parent=35 // pred_check_branch
          %274 = sbr.rel (%p272) target = $region52
        $region51: #{impala_cnn_block.9} parent=35 // pred_region
          %275 = dma.done %s268, 512
        $region52: #{impala_cnn_block.9} parent=35 // pred_fallthru
          _
        %s276 = sand.u32 %s45, 1
        %s277 = scalar_lea.sflag [#allocation4], %s276
        %s278 = sand.u32 %s45, 1
        %s279 = smul.addr %s278, 32
        %s280 = scalar_lea.vmem [#allocation3], %s279
        %p281 = pneg %p58
        %p282 = pneg %p55
        %p283 = pneg %p79
        %p284 = pneg %p76
        %p285 = pneg %p100
        %p286 = pneg %p97
        %s287 = sand.u32 %s115, 1
        %s288 = scalar_lea.sflag [#allocation10], %s287
        %s289 = sand.u32 %s115, 1
        %s290 = smul.addr %s289, 32
        %s291 = scalar_lea.vmem [#allocation9], %s290
        %p292 = pneg %p128
        %p293 = pneg %p125
        %p294 = pneg %p156
        %p295 = pneg %p153
        %s296 = sand.u32 %s143, 1
        %s297 = scalar_lea.sflag [#allocation5], %s296
        %s298 = sand.u32 %s143, 1
        %s299 = smul.addr %s298, 64
        %s300 = scalar_lea.vmem [#allocation11], %s299
        %s301 = smul.u32 8, %s30
        %s302 = smul.u32 8, %s30
        %p304 = scmp.eq.s32.totalorder %s30, 0
        // Predicated region
        $region53: #{impala_cnn_block.9} parent=35 // pred_check
          %p305 = pneg %p304
        $region54: #{impala_cnn_block.9} parent=35 // pred_check_branch
          %307 = sbr.rel (%p305) target = $region56
        $region55: #{impala_cnn_block.9} parent=35 // pred_region
          %v308 = vld [vmem:[%s254] sm:$0xf]
          %v309 = vld [vmem:[%s254 + $0x4] sm:$0xf]
          %v310 = vld [vmem:[%s254 + $0x8] sm:$0xf]
          %v311 = vld [vmem:[%s254 + $0xc] sm:$0xf]
          %v312 = vld [vmem:[%s254 + $0x10] sm:$0xf]
          %v313 = vld [vmem:[%s254 + $0x14] sm:$0xf]
          %v314 = vld [vmem:[%s254 + $0x18] sm:$0xf]
          %v315 = vld [vmem:[%s254 + $0x1c] sm:$0xf]
          %v316 = vmax.bf16 %v308, 0
          %v317 = vmax.bf16 %v309, 0
          %v318 = vmax.bf16 %v310, 0
          %v319 = vmax.bf16 %v311, 0
          %v320 = vmax.bf16 %v312, 0
          %v321 = vmax.bf16 %v313, 0
          %v322 = vmax.bf16 %v314, 0
          %v323 = vmax.bf16 %v315, 0
          %vm324 = vcmask 60416
          %325 = vst.msk [vmem:[#allocation2] sm:$0xf] %vm324, 0
          %vm326 = vcmask 57344
          %327 = vst.msk [vmem:[#allocation2 + $0x4] sm:$0x1] %vm326, 0
          %328 = vst.msk [vmem:[#allocation2 + $0x8] sm:$0xf] %vm324, 0
          %329 = vst.msk [vmem:[#allocation2 + $0xc] sm:$0x1] %vm326, 0
          %330 = vst.msk [vmem:[#allocation2 + $0x10] sm:$0xf] %vm324, 0
          %331 = vst.msk [vmem:[#allocation2 + $0x14] sm:$0x1] %vm326, 0
          %332 = vst.msk [vmem:[#allocation2 + $0x18] sm:$0xf] %vm324, 0
          %333 = vst.msk [vmem:[#allocation2 + $0x1c] sm:$0x1] %vm326, 0
          %334 = vst.msk [vmem:[#allocation2 + $0x20] sm:$0xf] %vm324, 0
          %335 = vst.msk [vmem:[#allocation2 + $0x24] sm:$0x1] %vm326, 0
          %336 = vst.msk [vmem:[#allocation2 + $0x28] sm:$0xf] %vm324, 0
          %337 = vst.msk [vmem:[#allocation2 + $0x2c] sm:$0x1] %vm326, 0
          %338 = vst.msk [vmem:[#allocation2 + $0x30] sm:$0xf] %vm324, 0
          %339 = vst.msk [vmem:[#allocation2 + $0x34] sm:$0x1] %vm326, 0
          %340 = vst.msk [vmem:[#allocation2 + $0x38] sm:$0xf] %vm324, 0
          %341 = vst.msk [vmem:[#allocation2 + $0x3c] sm:$0x1] %vm326, 0
          %342 = vst.msk [vmem:[#allocation2 + $0x40] sm:$0xf] %vm324, 0
          %343 = vst.msk [vmem:[#allocation2 + $0x44] sm:$0x1] %vm326, 0
          %344 = vst.msk [vmem:[#allocation2 + $0x48] sm:$0xf] %vm324, 0
          %345 = vst.msk [vmem:[#allocation2 + $0x4c] sm:$0x1] %vm326, 0
          %v347 = vshrl.u32 %v316, 16
          %v349 = vrot.slane %v347, 7
          %v350 = vshll.u32 %v316, 16
          %v352 = vor.u32 %v349, %v350
          %v353 = vrot.slane %v349, 4
          %v355 = vshrl.u32 %v317, 16
          %v357 = vrot.slane %v355, 7
          %v358 = vshll.u32 %v317, 16
          %v360 = vor.u32 %v357, %v358
          %v361 = vrot.slane %v357, 4
          %v363 = vshrl.u32 %v318, 16
          %v365 = vrot.slane %v363, 7
          %v366 = vshll.u32 %v318, 16
          %v368 = vor.u32 %v365, %v366
          %v369 = vrot.slane %v365, 4
          %v371 = vshrl.u32 %v319, 16
          %v373 = vrot.slane %v371, 7
          %v374 = vshll.u32 %v319, 16
          %v376 = vor.u32 %v373, %v374
          %v377 = vrot.slane %v373, 4
          %v379 = vshrl.u32 %v320, 16
          %v381 = vrot.slane %v379, 7
          %v382 = vshll.u32 %v320, 16
          %v384 = vor.u32 %v381, %v382
          %v385 = vrot.slane %v381, 4
          %v387 = vshrl.u32 %v321, 16
          %v389 = vrot.slane %v387, 7
          %v390 = vshll.u32 %v321, 16
          %v392 = vor.u32 %v389, %v390
          %v393 = vrot.slane %v389, 4
          %v395 = vshrl.u32 %v322, 16
          %v397 = vrot.slane %v395, 7
          %v398 = vshll.u32 %v322, 16
          %v400 = vor.u32 %v397, %v398
          %v401 = vrot.slane %v397, 4
          %v403 = vshrl.u32 %v323, 16
          %v405 = vrot.slane %v403, 7
          %v406 = vshll.u32 %v323, 16
          %v408 = vor.u32 %v405, %v406
          %v409 = vrot.slane %v405, 4
          %s426 = scalar_lea.vmem [#allocation2], 8
          %vm427 = vcmask 60416
          %vm428 = vsmask.f32 7938
          %vm429 = vmand %vm427, %vm428
          %v430 = vld [vmem:[%s426] sm:$0xf]
          %v431 = vsel %vm429, %v352, %v430
          %432 = vst [vmem:[%s426] sm:$0xf] %v431
          %vm433 = vcmask 57344
          %vm434 = vsmask.f32 256
          %vm435 = vmand %vm433, %vm434
          %v436 = vld [vmem:[%s426 + $0x4] sm:$0x1]
          %v437 = vsel %vm435, %v353, %v436
          %438 = vst [vmem:[%s426 + $0x4] sm:$0x1] %v437
          %v439 = vld [vmem:[%s426 + $0x8] sm:$0xf]
          %v440 = vsel %vm429, %v360, %v439
          %441 = vst [vmem:[%s426 + $0x8] sm:$0xf] %v440
          %v442 = vld [vmem:[%s426 + $0xc] sm:$0x1]
          %v443 = vsel %vm435, %v361, %v442
          %444 = vst [vmem:[%s426 + $0xc] sm:$0x1] %v443
          %v445 = vld [vmem:[%s426 + $0x10] sm:$0xf]
          %v446 = vsel %vm429, %v368, %v445
          %447 = vst [vmem:[%s426 + $0x10] sm:$0xf] %v446
          %v448 = vld [vmem:[%s426 + $0x14] sm:$0x1]
          %v449 = vsel %vm435, %v369, %v448
          %450 = vst [vmem:[%s426 + $0x14] sm:$0x1] %v449
          %v451 = vld [vmem:[%s426 + $0x18] sm:$0xf]
          %v452 = vsel %vm429, %v376, %v451
          %453 = vst [vmem:[%s426 + $0x18] sm:$0xf] %v452
          %v454 = vld [vmem:[%s426 + $0x1c] sm:$0x1]
          %v455 = vsel %vm435, %v377, %v454
          %456 = vst [vmem:[%s426 + $0x1c] sm:$0x1] %v455
          %v457 = vld [vmem:[%s426 + $0x20] sm:$0xf]
          %v458 = vsel %vm429, %v384, %v457
          %459 = vst [vmem:[%s426 + $0x20] sm:$0xf] %v458
          %v460 = vld [vmem:[%s426 + $0x24] sm:$0x1]
          %v461 = vsel %vm435, %v385, %v460
          %462 = vst [vmem:[%s426 + $0x24] sm:$0x1] %v461
          %v463 = vld [vmem:[%s426 + $0x28] sm:$0xf]
          %v464 = vsel %vm429, %v392, %v463
          %465 = vst [vmem:[%s426 + $0x28] sm:$0xf] %v464
          %v466 = vld [vmem:[%s426 + $0x2c] sm:$0x1]
          %v467 = vsel %vm435, %v393, %v466
          %468 = vst [vmem:[%s426 + $0x2c] sm:$0x1] %v467
          %v469 = vld [vmem:[%s426 + $0x30] sm:$0xf]
          %v470 = vsel %vm429, %v400, %v469
          %471 = vst [vmem:[%s426 + $0x30] sm:$0xf] %v470
          %v472 = vld [vmem:[%s426 + $0x34] sm:$0x1]
          %v473 = vsel %vm435, %v401, %v472
          %474 = vst [vmem:[%s426 + $0x34] sm:$0x1] %v473
          %v475 = vld [vmem:[%s426 + $0x38] sm:$0xf]
          %v476 = vsel %vm429, %v408, %v475
          %477 = vst [vmem:[%s426 + $0x38] sm:$0xf] %v476
          %v478 = vld [vmem:[%s426 + $0x3c] sm:$0x1]
          %v479 = vsel %vm435, %v409, %v478
          %480 = vst [vmem:[%s426 + $0x3c] sm:$0x1] %v479
        $region56: #{impala_cnn_block.9} parent=35 // pred_fallthru
          _
        %s481 = smul.u32 %s30, 8
        %s482 = smul.u32 %s481, 2
        %s483 = smul.addr %s482, 4
        %s484 = scalar_lea.vmem [#allocation2], %s483
        %v485 = vld [vmem:[%s484] sm:$0xf]
        %v486 = vld [vmem:[%s484 + $0x4] sm:$0x1]
        %v487 = vld [vmem:[%s484 + $0x8] sm:$0xf]
        %v488 = vld [vmem:[%s484 + $0xc] sm:$0x1]
        %v489 = vld [vmem:[%s484 + $0x10] sm:$0xf]
        %v490 = vld [vmem:[%s484 + $0x14] sm:$0x1]
        %v491 = vld [vmem:[%s484 + $0x18] sm:$0xf]
        %v492 = vld [vmem:[%s484 + $0x1c] sm:$0x1]
        %v493 = vld [vmem:[%s484 + $0x20] sm:$0xf]
        %v494 = vld [vmem:[%s484 + $0x24] sm:$0x1]
        %v495 = vld [vmem:[%s484 + $0x28] sm:$0xf]
        %v496 = vld [vmem:[%s484 + $0x2c] sm:$0x1]
        %v497 = vld [vmem:[%s484 + $0x30] sm:$0xf]
        %v498 = vld [vmem:[%s484 + $0x34] sm:$0x1]
        %v499 = vld [vmem:[%s484 + $0x38] sm:$0xf]
        %v500 = vld [vmem:[%s484 + $0x3c] sm:$0x1]
        %v501 = vld [vmem:[%s484 + $0x40] sm:$0xf]
        %v502 = vld [vmem:[%s484 + $0x44] sm:$0x1]
        %v503 = vld [vmem:[%s484 + $0x48] sm:$0xf]
        %v504 = vld [vmem:[%s484 + $0x4c] sm:$0x1]
        %v505 = vld [vmem:[#allocation8] sm:$0x1]
        %v522 = vunpack.c.l.b16 %v485
        %v523 = vunpack.c.l.b16 %v486
        %v524 = vunpack.c.l.b16 %v487
        %v525 = vunpack.c.l.b16 %v488
        %v526 = vunpack.c.l.b16 %v489
        %v527 = vunpack.c.l.b16 %v490
        %v528 = vunpack.c.l.b16 %v491
        %v529 = vunpack.c.l.b16 %v492
        %v530 = vunpack.c.l.b16 %v493
        %v531 = vunpack.c.l.b16 %v494
        %v532 = vunpack.c.l.b16 %v495
        %v533 = vunpack.c.l.b16 %v496
        %v534 = vunpack.c.l.b16 %v497
        %v535 = vunpack.c.l.b16 %v498
        %v536 = vunpack.c.l.b16 %v499
        %v537 = vunpack.c.l.b16 %v500
        %v538 = vpack.c.b16 %v523, %v522
        %v539 = vpack.c.b16 %v525, %v524
        %v540 = vpack.c.b16 %v527, %v526
        %v541 = vpack.c.b16 %v529, %v528
        %v542 = vpack.c.b16 %v531, %v530
        %v543 = vpack.c.b16 %v533, %v532
        %v544 = vpack.c.b16 %v535, %v534
        %v545 = vpack.c.b16 %v537, %v536
        %v547 = vshrl.u32 %v538, 16
        %v549 = vshll.u32 %v538, 16
        %v551 = vrot.slane %v549, 1
        %v552 = vor.u32 %v547, %v551
        %v554 = vshrl.u32 %v539, 16
        %v556 = vshll.u32 %v539, 16
        %v558 = vrot.slane %v556, 1
        %v559 = vor.u32 %v554, %v558
        %v561 = vshrl.u32 %v540, 16
        %v563 = vshll.u32 %v540, 16
        %v565 = vrot.slane %v563, 1
        %v566 = vor.u32 %v561, %v565
        %v568 = vshrl.u32 %v541, 16
        %v570 = vshll.u32 %v541, 16
        %v572 = vrot.slane %v570, 1
        %v573 = vor.u32 %v568, %v572
        %v575 = vshrl.u32 %v542, 16
        %v577 = vshll.u32 %v542, 16
        %v579 = vrot.slane %v577, 1
        %v580 = vor.u32 %v575, %v579
        %v582 = vshrl.u32 %v543, 16
        %v584 = vshll.u32 %v543, 16
        %v586 = vrot.slane %v584, 1
        %v587 = vor.u32 %v582, %v586
        %v589 = vshrl.u32 %v544, 16
        %v591 = vshll.u32 %v544, 16
        %v593 = vrot.slane %v591, 1
        %v594 = vor.u32 %v589, %v593
        %v596 = vshrl.u32 %v545, 16
        %v598 = vshll.u32 %v545, 16
        %v600 = vrot.slane %v598, 1
        %v601 = vor.u32 %v596, %v600
        %602 = vrot.lane.b32.xlu0 %v552, 8
        %v603 = vpop.permute.xlu0 %602
        %604 = vrot.lane.b32.xlu0 %v559, 8
        %v605 = vpop.permute.xlu0 %604
        %606 = vrot.lane.b32.xlu0 %v566, 8
        %v607 = vpop.permute.xlu0 %606
        %608 = vrot.lane.b32.xlu0 %v573, 8
        %v609 = vpop.permute.xlu0 %608
        %610 = vrot.lane.b32.xlu0 %v580, 8
        %v611 = vpop.permute.xlu0 %610
        %612 = vrot.lane.b32.xlu0 %v587, 8
        %v613 = vpop.permute.xlu0 %612
        %614 = vrot.lane.b32.xlu0 %v594, 8
        %v615 = vpop.permute.xlu0 %614
        %616 = vrot.lane.b32.xlu0 %v601, 8
        %v617 = vpop.permute.xlu0 %616
        %v618 = vrot.slane %v538, 1
        %v619 = vrot.slane %v539, 1
        %v620 = vrot.slane %v540, 1
        %v621 = vrot.slane %v541, 1
        %v622 = vrot.slane %v542, 1
        %v623 = vrot.slane %v543, 1
        %v624 = vrot.slane %v544, 1
        %v625 = vrot.slane %v545, 1
        %626 = vrot.lane.b32.xlu0 %v618, 16
        %v627 = vpop.permute.xlu0 %626
        %628 = vrot.lane.b32.xlu0 %v619, 16
        %v629 = vpop.permute.xlu0 %628
        %630 = vrot.lane.b32.xlu0 %v620, 16
        %v631 = vpop.permute.xlu0 %630
        %632 = vrot.lane.b32.xlu0 %v621, 16
        %v633 = vpop.permute.xlu0 %632
        %634 = vrot.lane.b32.xlu0 %v622, 16
        %v635 = vpop.permute.xlu0 %634
        %636 = vrot.lane.b32.xlu0 %v623, 16
        %v637 = vpop.permute.xlu0 %636
        %638 = vrot.lane.b32.xlu0 %v624, 16
        %v639 = vpop.permute.xlu0 %638
        %640 = vrot.lane.b32.xlu0 %v625, 16
        %v641 = vpop.permute.xlu0 %640
        %vm642 = vcmask 64512
        %v645 = vsel %vm642, %v485, %v603
        %v648 = vsel %vm642, %v487, %v605
        %v651 = vsel %vm642, %v489, %v607
        %v654 = vsel %vm642, %v491, %v609
        %v657 = vsel %vm642, %v493, %v611
        %v660 = vsel %vm642, %v495, %v613
        %v663 = vsel %vm642, %v497, %v615
        %v666 = vsel %vm642, %v499, %v617
        %vm667 = vcmask 130048
        %v669 = vsel %vm667, %v645, %v627
        %v671 = vsel %vm667, %v648, %v629
        %v673 = vsel %vm667, %v651, %v631
        %v675 = vsel %vm667, %v654, %v633
        %v677 = vsel %vm667, %v657, %v635
        %v679 = vsel %vm667, %v660, %v637
        %v681 = vsel %vm667, %v663, %v639
        %v683 = vsel %vm667, %v666, %v641
        %v684 = vld [vmem:[#allocation6] sm:$0xf]
        %v685 = vld [vmem:[#allocation6 + $0x4] sm:$0xf]
        %v686 = vld [vmem:[#allocation6 + $0x8] sm:$0xf]
        %v695 = vunpack.c.l.b16 %v669
        %v696 = vunpack.c.l.b16 %v671
        %v697 = vunpack.c.l.b16 %v673
        %v698 = vunpack.c.l.b16 %v675
        %v699 = vunpack.c.l.b16 %v677
        %v700 = vunpack.c.l.b16 %v679
        %v701 = vunpack.c.l.b16 %v681
        %v702 = vunpack.c.l.b16 %v683
        %v703 = vpack.c.b16 %v696, %v695
        %v704 = vpack.c.b16 %v698, %v697
        %v705 = vpack.c.b16 %v700, %v699
        %v706 = vpack.c.b16 %v702, %v701
        %v710 = vunpack.c.l.b16 %v684
        %v711 = vunpack.c.l.b16 %v685
        %v712 = vunpack.c.l.b16 %v686
        %v713 = vpack.c.b16 %v711, %v710
        %v714 = vpack.c.b16 %v712, %v712
        %vm716 = vcmask 195584
        %v718 = vsel %vm716, %v703, 0
        %v721 = vsel %vm716, %v704, 0
        %v724 = vsel %vm716, %v705, 0
        %v727 = vsel %vm716, %v706, 0
        %vm729 = vcmask 1043456
        %v731 = vsel %vm729, %v714, 0
        %733 = vmatprep.subr.bf16.mxu0 0
        %734 = vmatpush1.bf16.msra.mxu0 %v713
        %735 = vmatprep.subr.bf16.mxu0 0
        %736 = vmatpush1.bf16.msra.mxu0 %v731
        %737 = vmatprep.subr.bf16.mxu0 0
        %738 = vmatpush1.bf16.msra.mxu0 0
        %739 = vmatprep.subr.bf16.mxu0 0
        %740 = vmatpush1.bf16.msra.mxu0 0
        %741 = vmatprep.subr.bf16.mxu0 0
        %742 = vmatpush1.bf16.msra.mxu0 0
        %743 = vmatprep.subr.bf16.mxu0 0
        %744 = vmatpush1.bf16.msra.mxu0 0
        %745 = vmatprep.subr.bf16.mxu0 0
        %746 = vmatpush1.bf16.msra.mxu0 0
        %747 = vmatprep.subr.bf16.mxu0 0
        %748 = vmatpush1.bf16.msra.mxu0 0
        %749 = vmatprep.subr.bf16.mxu0 0
        %750 = vmatpush1.bf16.msra.mxu0 0
        %751 = vmatprep.subr.bf16.mxu0 0
        %752 = vmatpush1.bf16.msra.mxu0 0
        %753 = vmatprep.subr.bf16.mxu0 0
        %754 = vmatpush1.bf16.msra.mxu0 0
        %755 = vmatprep.subr.bf16.mxu0 0
        %756 = vmatpush1.bf16.msra.mxu0 0
        %757 = vmatprep.subr.bf16.mxu0 0
        %758 = vmatpush1.bf16.msra.mxu0 0
        %759 = vmatprep.subr.bf16.mxu0 0
        %760 = vmatpush1.bf16.msra.mxu0 0
        %761 = vmatprep.subr.bf16.mxu0 0
        %762 = vmatpush1.bf16.msra.mxu0 0
        %763 = vmatprep.subr.bf16.mxu0 0
        %764 = vmatpush1.bf16.msra.mxu0 0
        %765 = vmatprep.mubr.bf16.mxu0 0
        %766 = vmatmul.mubr.bf16.gmra.mrb[0].mxu0 %v718
        %v767 = vpop.f32.mrb[0].mxu0
        %v768 = vadd.f32 0.0, %v767
        %v769 = vpop.f32.mrb[0].mxu0
        %v770 = vpop.f32.mrb[0].mxu0
        %v771 = vadd.f32 0.0, %v770
        %v772 = vpop.f32.mrb[0].mxu0
        %773 = vmatprep.mubr.bf16.mxu0 0
        %774 = vmatmul.mubr.bf16.gmra.mrb[0].mxu0 %v721
        %v775 = vpop.f32.mrb[0].mxu0
        %v776 = vadd.f32 0.0, %v775
        %v777 = vpop.f32.mrb[0].mxu0
        %v778 = vpop.f32.mrb[0].mxu0
        %v779 = vadd.f32 0.0, %v778
        %v780 = vpop.f32.mrb[0].mxu0
        %781 = vmatprep.mubr.bf16.mxu0 0
        %782 = vmatmul.mubr.bf16.gmra.mrb[0].mxu0 %v724
        %v783 = vpop.f32.mrb[0].mxu0
        %v784 = vadd.f32 0.0, %v783
        %v785 = vpop.f32.mrb[0].mxu0
        %v786 = vpop.f32.mrb[0].mxu0
        %v787 = vadd.f32 0.0, %v786
        %v788 = vpop.f32.mrb[0].mxu0
        %789 = vmatprep.mubr.bf16.mxu0 0
        %790 = vmatmul.mubr.bf16.gmra.mrb[0].mxu0 %v727
        %v791 = vpop.f32.mrb[0].mxu0
        %v792 = vadd.f32 0.0, %v791
        %v793 = vpop.f32.mrb[0].mxu0
        %v794 = vpop.f32.mrb[0].mxu0
        %v795 = vadd.f32 0.0, %v794
        %v796 = vpop.f32.mrb[0].mxu0
        %797 = vdwg.mxu0
        %v799 = vlaneseq
        %v800 = vshrl.u32 %v799, 7
        %v801 = vsub.s32 0, %v800
        %v802 = vrot.slane %v505, %v801
        %v804 = vadd.f32 %v802, %v768
        %v805 = vadd.f32 %v802, %v771
        %v806 = vadd.f32 %v802, %v776
        %v807 = vadd.f32 %v802, %v779
        %v808 = vadd.f32 %v802, %v784
        %v809 = vadd.f32 %v802, %v787
        %v810 = vadd.f32 %v802, %v792
        %v811 = vadd.f32 %v802, %v795
        %v814 = vunpack.c.l.b16 %v501
        %v815 = vunpack.c.l.b16 %v502
        %v816 = vpack.c.b16 %v815, %v814
        %v818 = vshrl.u32 %v816, 16
        %v820 = vshll.u32 %v816, 16
        %v822 = vrot.slane %v820, 1
        %v823 = vor.u32 %v818, %v822
        %824 = vrot.lane.b32.xlu0 %v823, 8
        %v825 = vpop.permute.xlu0 %824
        %v826 = vrot.slane %v816, 1
        %827 = vrot.lane.b32.xlu0 %v826, 16
        %v828 = vpop.permute.xlu0 %827
        %v831 = vsel %vm642, %v501, %v825
        %v833 = vsel %vm667, %v831, %v828
        %s834 = scalar_lea.vmem [#allocation6], 12
        %v835 = vld [vmem:[%s834] sm:$0xf]
        %v836 = vld [vmem:[%s834 + $0x4] sm:$0xf]
        %v837 = vld [vmem:[%s834 + $0x8] sm:$0xf]
        %v839 = vunpack.c.l.b16 %v833
        %v840 = vpack.c.b16 %v697, %v696
        %v841 = vpack.c.b16 %v699, %v698
        %v842 = vpack.c.b16 %v701, %v700
        %v843 = vpack.c.b16 %v839, %v702
        %v847 = vunpack.c.l.b16 %v835
        %v848 = vunpack.c.l.b16 %v836
        %v849 = vunpack.c.l.b16 %v837
        %v850 = vpack.c.b16 %v848, %v847
        %v851 = vpack.c.b16 %v849, %v849
        %v854 = vsel %vm716, %v840, 0
        %v857 = vsel %vm716, %v841, 0
        %v860 = vsel %vm716, %v842, 0
        %v863 = vsel %vm716, %v843, 0
        %v866 = vsel %vm729, %v851, 0
        %868 = vmatprep.subr.bf16.mxu0 0
        %869 = vmatpush1.bf16.msra.mxu0 %v850
        %870 = vmatprep.subr.bf16.mxu0 0
        %871 = vmatpush1.bf16.msra.mxu0 %v866
        %872 = vmatprep.subr.bf16.mxu0 0
        %873 = vmatpush1.bf16.msra.mxu0 0
        %874 = vmatprep.subr.bf16.mxu0 0
        %875 = vmatpush1.bf16.msra.mxu0 0
        %876 = vmatprep.subr.bf16.mxu0 0
        %877 = vmatpush1.bf16.msra.mxu0 0
        %878 = vmatprep.subr.bf16.mxu0 0
        %879 = vmatpush1.bf16.msra.mxu0 0
        %880 = vmatprep.subr.bf16.mxu0 0
        %881 = vmatpush1.bf16.msra.mxu0 0
        %882 = vmatprep.subr.bf16.mxu0 0
        %883 = vmatpush1.bf16.msra.mxu0 0
        %884 = vmatprep.subr.bf16.mxu0 0
        %885 = vmatpush1.bf16.msra.mxu0 0
        %886 = vmatprep.subr.bf16.mxu0 0
        %887 = vmatpush1.bf16.msra.mxu0 0
        %888 = vmatprep.subr.bf16.mxu0 0
        %889 = vmatpush1.bf16.msra.mxu0 0
        %890 = vmatprep.subr.bf16.mxu0 0
        %891 = vmatpush1.bf16.msra.mxu0 0
        %892 = vmatprep.subr.bf16.mxu0 0
        %893 = vmatpush1.bf16.msra.mxu0 0
        %894 = vmatprep.subr.bf16.mxu0 0
        %895 = vmatpush1.bf16.msra.mxu0 0
        %896 = vmatprep.subr.bf16.mxu0 0
        %897 = vmatpush1.bf16.msra.mxu0 0
        %898 = vmatprep.subr.bf16.mxu0 0
        %899 = vmatpush1.bf16.msra.mxu0 0
        %900 = vmatprep.mubr.bf16.mxu0 0
        %901 = vmatmul.mubr.bf16.gmra.mrb[0].mxu0 %v854
        %v902 = vpop.f32.mrb[0].mxu0
        %v903 = vadd.f32 0.0, %v902
        %v904 = vpop.f32.mrb[0].mxu0
        %v905 = vpop.f32.mrb[0].mxu0
        %v906 = vadd.f32 0.0, %v905
        %v907 = vpop.f32.mrb[0].mxu0
        %908 = vmatprep.mubr.bf16.mxu0 0
        %909 = vmatmul.mubr.bf16.gmra.mrb[0].mxu0 %v857
        %v910 = vpop.f32.mrb[0].mxu0
        %v911 = vadd.f32 0.0, %v910
        %v912 = vpop.f32.mrb[0].mxu0
        %v913 = vpop.f32.mrb[0].mxu0
        %v914 = vadd.f32 0.0, %v913
        %v915 = vpop.f32.mrb[0].mxu0
        %916 = vmatprep.mubr.bf16.mxu0 0
        %917 = vmatmul.mubr.bf16.gmra.mrb[0].mxu0 %v860
        %v918 = vpop.f32.mrb[0].mxu0
        %v919 = vadd.f32 0.0, %v918
        %v920 = vpop.f32.mrb[0].mxu0
        %v921 = vpop.f32.mrb[0].mxu0
        %v922 = vadd.f32 0.0, %v921
        %v923 = vpop.f32.mrb[0].mxu0
        %924 = vmatprep.mubr.bf16.mxu0 0
        %925 = vmatmul.mubr.bf16.gmra.mrb[0].mxu0 %v863
        %v926 = vpop.f32.mrb[0].mxu0
        %v927 = vadd.f32 0.0, %v926
        %v928 = vpop.f32.mrb[0].mxu0
        %v929 = vpop.f32.mrb[0].mxu0
        %v930 = vadd.f32 0.0, %v929
        %v931 = vpop.f32.mrb[0].mxu0
        %932 = vdwg.mxu0
        %v933 = vadd.f32 %v804, %v903
        %v934 = vadd.f32 %v805, %v906
        %v935 = vadd.f32 %v806, %v911
        %v936 = vadd.f32 %v807, %v914
        %v937 = vadd.f32 %v808, %v919
        %v938 = vadd.f32 %v809, %v922
        %v939 = vadd.f32 %v810, %v927
        %v940 = vadd.f32 %v811, %v930
        %v943 = vunpack.c.l.b16 %v503
        %v944 = vunpack.c.l.b16 %v504
        %v945 = vpack.c.b16 %v944, %v943
        %v947 = vshrl.u32 %v945, 16
        %v949 = vshll.u32 %v945, 16
        %v951 = vrot.slane %v949, 1
        %v952 = vor.u32 %v947, %v951
        %953 = vrot.lane.b32.xlu0 %v952, 8
        %v954 = vpop.permute.xlu0 %953
        %v955 = vrot.slane %v945, 1
        %956 = vrot.lane.b32.xlu0 %v955, 16
        %v957 = vpop.permute.xlu0 %956
        %v960 = vsel %vm642, %v503, %v954
        %v962 = vsel %vm667, %v960, %v957
        %s963 = scalar_lea.vmem [#allocation6], 24
        %v964 = vld [vmem:[%s963] sm:$0xf]
        %v965 = vld [vmem:[%s963 + $0x4] sm:$0xf]
        %v966 = vld [vmem:[%s963 + $0x8] sm:$0xf]
        %v968 = vunpack.c.l.b16 %v962
        %v969 = vpack.c.b16 %v968, %v839
        %v973 = vunpack.c.l.b16 %v964
        %v974 = vunpack.c.l.b16 %v965
        %v975 = vunpack.c.l.b16 %v966
        %v976 = vpack.c.b16 %v974, %v973
        %v977 = vpack.c.b16 %v975, %v975
        %v980 = vsel %vm716, %v969, 0
        %v983 = vsel %vm729, %v977, 0
        %985 = vmatprep.subr.bf16.mxu0 0
        %986 = vmatpush1.bf16.msra.mxu0 %v976
        %987 = vmatprep.subr.bf16.mxu0 0
        %988 = vmatpush1.bf16.msra.mxu0 %v983
        %989 = vmatprep.subr.bf16.mxu0 0
        %990 = vmatpush1.bf16.msra.mxu0 0
        %991 = vmatprep.subr.bf16.mxu0 0
        %992 = vmatpush1.bf16.msra.mxu0 0
        %993 = vmatprep.subr.bf16.mxu0 0
        %994 = vmatpush1.bf16.msra.mxu0 0
        %995 = vmatprep.subr.bf16.mxu0 0
        %996 = vmatpush1.bf16.msra.mxu0 0
        %997 = vmatprep.subr.bf16.mxu0 0
        %998 = vmatpush1.bf16.msra.mxu0 0
        %999 = vmatprep.subr.bf16.mxu0 0
        %1000 = vmatpush1.bf16.msra.mxu0 0
        %1001 = vmatprep.subr.bf16.mxu0 0
        %1002 = vmatpush1.bf16.msra.mxu0 0
        %1003 = vmatprep.subr.bf16.mxu0 0
        %1004 = vmatpush1.bf16.msra.mxu0 0
        %1005 = vmatprep.subr.bf16.mxu0 0
        %1006 = vmatpush1.bf16.msra.mxu0 0
        %1007 = vmatprep.subr.bf16.mxu0 0
        %1008 = vmatpush1.bf16.msra.mxu0 0
        %1009 = vmatprep.subr.bf16.mxu0 0
        %1010 = vmatpush1.bf16.msra.mxu0 0
        %1011 = vmatprep.subr.bf16.mxu0 0
        %1012 = vmatpush1.bf16.msra.mxu0 0
        %1013 = vmatprep.subr.bf16.mxu0 0
        %1014 = vmatpush1.bf16.msra.mxu0 0
        %1015 = vmatprep.subr.bf16.mxu0 0
        %1016 = vmatpush1.bf16.msra.mxu0 0
        %1017 = vmatprep.mubr.bf16.mxu0 0
        %1018 = vmatmul.mubr.bf16.gmra.mrb[0].mxu0 %v721
        %v1019 = vpop.f32.mrb[0].mxu0
        %v1020 = vadd.f32 0.0, %v1019
        %v1021 = vpop.f32.mrb[0].mxu0
        %v1022 = vpop.f32.mrb[0].mxu0
        %v1023 = vadd.f32 0.0, %v1022
        %v1024 = vpop.f32.mrb[0].mxu0
        %1025 = vmatprep.mubr.bf16.mxu0 0
        %1026 = vmatmul.mubr.bf16.gmra.mrb[0].mxu0 %v724
        %v1027 = vpop.f32.mrb[0].mxu0
        %v1028 = vadd.f32 0.0, %v1027
        %v1029 = vpop.f32.mrb[0].mxu0
        %v1030 = vpop.f32.mrb[0].mxu0
        %v1031 = vadd.f32 0.0, %v1030
        %v1032 = vpop.f32.mrb[0].mxu0
        %1033 = vmatprep.mubr.bf16.mxu0 0
        %1034 = vmatmul.mubr.bf16.gmra.mrb[0].mxu0 %v727
        %v1035 = vpop.f32.mrb[0].mxu0
        %v1036 = vadd.f32 0.0, %v1035
        %v1037 = vpop.f32.mrb[0].mxu0
        %v1038 = vpop.f32.mrb[0].mxu0
        %v1039 = vadd.f32 0.0, %v1038
        %v1040 = vpop.f32.mrb[0].mxu0
        %1041 = vmatprep.mubr.bf16.mxu0 0
        %1042 = vmatmul.mubr.bf16.gmra.mrb[0].mxu0 %v980
        %v1043 = vpop.f32.mrb[0].mxu0
        %v1044 = vadd.f32 0.0, %v1043
        %v1045 = vpop.f32.mrb[0].mxu0
        %v1046 = vpop.f32.mrb[0].mxu0
        %v1047 = vadd.f32 0.0, %v1046
        %v1048 = vpop.f32.mrb[0].mxu0
        %1049 = vdwg.mxu0
        %v1050 = vadd.f32 %v933, %v1020
        %v1051 = vadd.f32 %v934, %v1023
        %v1052 = vadd.f32 %v935, %v1028
        %v1053 = vadd.f32 %v936, %v1031
        %v1054 = vadd.f32 %v937, %v1036
        %v1055 = vadd.f32 %v938, %v1039
        %v1056 = vadd.f32 %v939, %v1044
        %v1057 = vadd.f32 %v940, %v1047
        %v1058 = vld [vmem:[%s271] sm:$0xf]
        %v1059 = vld [vmem:[%s271 + $0x4] sm:$0xf]
        %v1060 = vld [vmem:[%s271 + $0x8] sm:$0xf]
        %v1061 = vld [vmem:[%s271 + $0xc] sm:$0xf]
        %v1062 = vld [vmem:[%s271 + $0x10] sm:$0xf]
        %v1063 = vld [vmem:[%s271 + $0x14] sm:$0xf]
        %v1064 = vld [vmem:[%s271 + $0x18] sm:$0xf]
        %v1065 = vld [vmem:[%s271 + $0x1c] sm:$0xf]
        %v1066 = vunpack.c.l.bf16 %v1058
        %v1067 = vunpack.c.l.bf16 %v1059
        %v1068 = vunpack.c.l.bf16 %v1060
        %v1069 = vunpack.c.l.bf16 %v1061
        %v1070 = vunpack.c.l.bf16 %v1062
        %v1071 = vunpack.c.l.bf16 %v1063
        %v1072 = vunpack.c.l.bf16 %v1064
        %v1073 = vunpack.c.l.bf16 %v1065
        %v1074 = vadd.f32 %v1050, %v1066
        %v1075 = vadd.f32 %v1051, %v1067
        %v1076 = vadd.f32 %v1052, %v1068
        %v1077 = vadd.f32 %v1053, %v1069
        %v1078 = vadd.f32 %v1054, %v1070
        %v1079 = vadd.f32 %v1055, %v1071
        %v1080 = vadd.f32 %v1056, %v1072
        %v1081 = vadd.f32 %v1057, %v1073
        %1082 = vst.msk [vmem:[%s300] sm:$0xff] %vm642, %v1074
        %1083 = vst.msk [vmem:[%s300 + $0x8] sm:$0xff] %vm642, %v1075
        %1084 = vst.msk [vmem:[%s300 + $0x10] sm:$0xff] %vm642, %v1076
        %1085 = vst.msk [vmem:[%s300 + $0x18] sm:$0xff] %vm642, %v1077
        %1086 = vst.msk [vmem:[%s300 + $0x20] sm:$0xff] %vm642, %v1078
        %1087 = vst.msk [vmem:[%s300 + $0x28] sm:$0xff] %vm642, %v1079
        %1088 = vst.msk [vmem:[%s300 + $0x30] sm:$0xff] %vm642, %v1080
        %1089 = vst.msk [vmem:[%s300 + $0x38] sm:$0xff] %vm642, %v1081
        %s1090 = sand.u32 %s143, 1
        %s1091 = scalar_lea.sflag [#allocation5], %s1090
        %s1092 = sand.u32 %s143, 1
        %s1093 = smul.addr %s1092, 64
        %s1094 = scalar_lea.vmem [#allocation11], %s1093
        // Predicated region
        $region57: #{impala_cnn_block.9} parent=35 // pred_check
          %p1095 = pneg %p153
        $region58: #{impala_cnn_block.9} parent=35 // pred_check_branch
          %1097 = sbr.rel (%p1095) target = $region60
        $region59: #{impala_cnn_block.9} parent=35 // pred_region
          %s1098 = smul.u32 8, %s30
          %s1100 = ssub.s32 1024, 1024
          %1101 = vsyncadd %s1091, %s1100
          %s1102 = smul.addr %s29, 8
          %s1103 = sadd.s32 %s1098, %s1102
          %s1104 = smul.addr %s1103, 128
          %s1105 = scalar_lea.hbm %s4, %s1104
          %s1106 = sshll.u32 %s1094, 4
          %s1107 = int_to_ptr.vmem [resolvable:$true] %s1106
          %1112 = dma.vmem_to_hbm [thread:$0]  %s1107, 1024, %s1105, %s1091, 128, 128, 8
        $region60: #{impala_cnn_block.9} parent=35 // pred_fallthru
          _
      $region36: #{impala_cnn_block.9} parent=5 // pred_fallthru
        _
      %p1113 = scmp.le.s32.totalorder 2, %s20
      // Predicated region
      $region61: #{impala_cnn_block.9} parent=5 // pred_check
        %p1114 = pneg %p1113
      $region62: #{impala_cnn_block.9} parent=5 // pred_check_branch
        %1116 = sbr.rel (%p1114) target = $region64
      $region63: #{impala_cnn_block.9} parent=5 // pred_region
        %s1117 = ssub.s32 %s20, 2
        // Predicated region
        $region65: #{impala_cnn_block.9} parent=63 // pred_check
          %p1118 = pneg %p159
        $region66: #{impala_cnn_block.9} parent=63 // pred_check_branch
          %1120 = sbr.rel (%p1118) target = $region68
        $region67: #{impala_cnn_block.9} parent=63 // pred_region
          %s1121 = sand.u32 %s144, 1
          %s1122 = scalar_lea.sflag [#allocation5], %s1121
          %s1123 = sand.u32 %s144, 1
          %s1124 = smul.addr %s1123, 64
          %s1125 = scalar_lea.vmem [#allocation11], %s1124
          %1126 = dma.done %s1122, 1024
        $region68: #{impala_cnn_block.9} parent=63 // pred_fallthru
          _
      $region64: #{impala_cnn_block.9} parent=5 // pred_fallthru
        _
    $region6: #{impala_cnn_block.9} parent=1 // loop_footer
      %s24 = sadd.s32 1, %s20
    $region7: #{impala_cnn_block.9} parent=1 // loop_footer_branch
      %19 = sbr.rel target = $region3
    $region8: #{impala_cnn_block.9} parent=1 // loop_exit
      _
    %1127 = vsyncpa [#allocation4], 1
    %s1128 = scalar_lea.sflag [#allocation4], 1
    %1129 = vsyncpa %s1128, 1
    %1130 = vsyncpa [#allocation7], 1
    %1131 = vsyncpa [#allocation10], 1
    %s1132 = scalar_lea.sflag [#allocation10], 1
    %1133 = vsyncpa %s1132, 1
    %1134 = vsyncpa [#allocation5], 1
    %s1135 = scalar_lea.sflag [#allocation5], 1
    %1136 = vsyncpa %s1135, 1

// kernel: impala_cnn_block.5
$region0: #{impala_cnn_block.5}
  #allocation0 [shape = 'u32[]', space=smem, size = 0x4, offset = 0x4, fixed_abs, tag = 'smem constant byte address 0x4 - core index']
  #allocation1 [shape = 'u32[144,128]{1,0:T(1,128)}', space=vmem, size = 0x12000, scoped, tag = 'internal scratch']
  #allocation2 [shape = 'bf16[20,18,4]{2,1,0:T(8,128)(2,1)}', space=vmem, size = 0x1e000, scoped, tag = 'scratch operand']
  #allocation3 [shape = 'f32[17,18,8]{2,1,0:T(8,128)}', space=vmem, size = 0x33000, scoped, tag = 'scratch operand']
  #allocation4 [shape = 'f32[17,8,8]{2,1,0:T(8,128)}', space=vmem, size = 0x11000, scoped, tag = 'scratch operand']
  %s0 = inlined_call_operand.hbm [shape: f32[2,16,16,4], index: 0, kind: input, shape index: {}]
  %s1 = inlined_call_operand.hbm [shape: bf16[3,12,8], index: 1, kind: input, shape index: {}]
  %s2 = inlined_call_operand.hbm [shape: f32[1,8], index: 2, kind: input, shape index: {}]
  %s3 = inlined_call_operand.hbm [shape: bf16[2,8,8,8], index: 3, kind: output, shape index: {}]
  %s4 = sld [smem:[#allocation0]]
  $region61: #{impala_cnn_block.5} parent=0
    _
  %s6 = ssub.s32 1, %s4
  %s7 = scalar_select 0, %s6, %s4
  $region1: #{impala_cnn_block.5} parent=0
    #allocation5 [shape = 'u8[262144]{0}', space=vmem, size = 0x40000, scoped, tag = 'input window, operand 0']
    #allocation6 [shape = 's32[2]{0}', space=sflag, size = 0x8, scoped, tag = 'scoped memory for impala_cnn_block.5']
    #allocation7 [shape = 's32[2]{0}', space=sflag, size = 0x8, scoped, tag = 'scoped memory for impala_cnn_block.5']
    #allocation8 [shape = 'u8[12288]{0}', space=vmem, size = 0x3000, scoped, tag = 'input window, operand 1, single buffered']
    #allocation9 [shape = 's32[1]{0}', space=sflag, size = 0x4, scoped, tag = 'scoped memory for impala_cnn_block.5']
    #allocation10 [shape = 'u8[512]{0}', space=vmem, size = 0x400, scoped, tag = 'input window, operand 2, single buffered']
    #allocation11 [shape = 'u8[32768]{0}', space=vmem, size = 0x8000, scoped, tag = 'output window, operand 0']
    %8 = vsyncpa [#allocation6], 0
    %s9 = scalar_lea.sflag [#allocation6], 1
    %10 = vsyncpa %s9, 0
    %11 = vsyncpa [#allocation9], 0
    %12 = vsyncpa [#allocation7], 0
    %s13 = scalar_lea.sflag [#allocation7], 1
    %14 = vsyncpa %s13, 0
    loop: start=0, step=1, limit=4
    $region2: #{impala_cnn_block.5} parent=1 // loop_pre_header
      _
    $region3: #{impala_cnn_block.5} parent=1 // loop_header
      %s16 = sphi 0, %s20
      %p17 = scmp.ge.s32.totalorder %s16, 4
      %s23 = sphi 0, %s35
      %s24 = sphi 0, %s31
      %s25 = sphi 0, %s23
      %s26 = sphi 0, %s24
      %s27 = sphi 0, %s25
      %s28 = sphi 0, %s26
      %s38 = sphi 0, %s40
      %s41 = sphi 0, %s38
      %s42 = sphi 0, %s41
      %s58 = sphi 0, %s42
      %s62 = sphi 0, %s62
      %s64 = sphi 0, %s62
      %s65 = sphi 0, %s64
      %s79 = sphi 0, %s65
      %s83 = sphi 0, %s83
      %s85 = sphi 0, %s83
      %s86 = sphi 0, %s85
      %s100 = sphi 0, %s86
      %s108 = sphi 0, %s110
      %s111 = sphi 0, %s108
      %s112 = sphi 0, %s111
      %s128 = sphi 0, %s112
    $region4: #{impala_cnn_block.5} parent=1 // loop_header_branch
      %19 = sbr.rel (%p17) target = $region8
    $region5: #{impala_cnn_block.5} parent=1 // loop_body
      %s21 = ssub.s32 %s16, 1
      %s22 = ssub.s32 %s16, 2
      %s29 = sadd.s32 1, %s24
      %p30 = scmp.ge.s32.totalorder %s29, 1
      %s31 = scalar_select %p30, 0, %s29
      %s32 = sadd.s32 1, %s23
      %s33 = scalar_select %p30, %s32, %s23
      %p34 = scmp.ge.s32.totalorder %s33, 2
      %s35 = scalar_select %p34, 0, %s33
      %s36 = ssub.s32 %s23, %s35
      %p37 = scmp.eq.s32.totalorder %s36, 0
      %s39 = sadd.s32 %s38, 1
      %s40 = scalar_select %p37, %s38, %s39
      %p43 = pneg %p37
      %p44 = scmp.eq.s32.totalorder %s16, 1
      %p45 = por %p43, %p44
      %p46 = scmp.ne.s32.totalorder %s38, %s41
      %p47 = scmp.eq.s32.totalorder %s16, 0
      %p48 = por %p46, %p47
      %p49 = scmp.ne.s32.totalorder %s38, %s41
      %p50 = scmp.eq.s32.totalorder %s21, 1
      %p51 = por %p49, %p50
      %p52 = scmp.ne.s32.totalorder %s41, %s42
      %p53 = scmp.eq.s32.totalorder %s21, 0
      %p54 = por %p52, %p53
      %p55 = scmp.ne.s32.totalorder %s41, %s42
      %p56 = scmp.eq.s32.totalorder %s22, 1
      %p57 = por %p55, %p56
      %p59 = scmp.ne.s32.totalorder %s42, %s58
      %p60 = scmp.eq.s32.totalorder %s22, 0
      %p61 = por %p59, %p60
      %s63 = sadd.s32 %s62, 1
      %p66 = scmp.eq.s32.totalorder %s16, 1
      %p67 = scmp.ne.s32.totalorder %s62, %s64
      %p68 = scmp.eq.s32.totalorder %s16, 0
      %p69 = por %p67, %p68
      %p70 = scmp.ne.s32.totalorder %s62, %s64
      %p71 = scmp.eq.s32.totalorder %s21, 1
      %p72 = por %p70, %p71
      %p73 = scmp.ne.s32.totalorder %s64, %s65
      %p74 = scmp.eq.s32.totalorder %s21, 0
      %p75 = por %p73, %p74
      %p76 = scmp.ne.s32.totalorder %s64, %s65
      %p77 = scmp.eq.s32.totalorder %s22, 1
      %p78 = por %p76, %p77
      %p80 = scmp.ne.s32.totalorder %s65, %s79
      %p81 = scmp.eq.s32.totalorder %s22, 0
      %p82 = por %p80, %p81
      %s84 = sadd.s32 %s83, 1
      %p87 = scmp.eq.s32.totalorder %s16, 1
      %p88 = scmp.ne.s32.totalorder %s83, %s85
      %p89 = scmp.eq.s32.totalorder %s16, 0
      %p90 = por %p88, %p89
      %p91 = scmp.ne.s32.totalorder %s83, %s85
      %p92 = scmp.eq.s32.totalorder %s21, 1
      %p93 = por %p91, %p92
      %p94 = scmp.ne.s32.totalorder %s85, %s86
      %p95 = scmp.eq.s32.totalorder %s21, 0
      %p96 = por %p94, %p95
      %p97 = scmp.ne.s32.totalorder %s85, %s86
      %p98 = scmp.eq.s32.totalorder %s22, 1
      %p99 = por %p97, %p98
      %p101 = scmp.ne.s32.totalorder %s86, %s100
      %p102 = scmp.eq.s32.totalorder %s22, 0
      %p103 = por %p101, %p102
      %s104 = ssub.s32 %s23, %s35
      %s105 = ssub.s32 %s24, %s31
      %s106 = sor.u32 %s104, %s105
      %p107 = scmp.eq.s32.totalorder %s106, 0
      %s109 = sadd.s32 %s108, 1
      %s110 = scalar_select %p107, %s108, %s109
      %p113 = pneg %p107
      %p114 = scmp.eq.s32.totalorder %s16, 1
      %p115 = por %p113, %p114
      %p116 = scmp.ne.s32.totalorder %s108, %s111
      %p117 = scmp.eq.s32.totalorder %s16, 0
      %p118 = por %p116, %p117
      %p119 = scmp.ne.s32.totalorder %s108, %s111
      %p120 = scmp.eq.s32.totalorder %s21, 1
      %p121 = por %p119, %p120
      %p122 = scmp.ne.s32.totalorder %s111, %s112
      %p123 = scmp.eq.s32.totalorder %s21, 0
      %p124 = por %p122, %p123
      %p125 = scmp.ne.s32.totalorder %s111, %s112
      %p126 = scmp.eq.s32.totalorder %s22, 1
      %p127 = por %p125, %p126
      %p129 = scmp.ne.s32.totalorder %s112, %s128
      %p130 = scmp.eq.s32.totalorder %s22, 0
      %p131 = por %p129, %p130
      %p132 = scmp.le.s32.totalorder 1, %s16
      %p133 = scmp.lt.s32.totalorder %s16, 3
      %p134 = pnand %p132, %p133
      %p135 = pneg %p134
      // Predicated region
      $region9: #{impala_cnn_block.5} parent=5 // pred_check
        _
      $region10: #{impala_cnn_block.5} parent=5 // pred_check_branch
        %137 = sbr.rel (%p134) target = $region12
      $region11: #{impala_cnn_block.5} parent=5 // pred_region
        %s138 = ssub.s32 %s16, 1
        // Predicated region
        $region13: #{impala_cnn_block.5} parent=11 // pred_check
          %p139 = pneg %p75
        $region14: #{impala_cnn_block.5} parent=11 // pred_check_branch
          %141 = sbr.rel (%p139) target = $region16
        $region15: #{impala_cnn_block.5} parent=11 // pred_region
          %s143 = ssub.s32 384, 384
          %144 = vsyncadd [#allocation9], %s143
          %s145 = sshll.u32 [#allocation8], 4
          %s146 = int_to_ptr.vmem [resolvable:$true] %s145
          %151 = dma.hbm_to_vmem [thread:$0]  %s1, 384, %s146, [#allocation9], 64, 64, 4
        $region16: #{impala_cnn_block.5} parent=11 // pred_fallthru
          _
        // Predicated region
        $region17: #{impala_cnn_block.5} parent=11 // pred_check
          %p152 = pneg %p96
        $region18: #{impala_cnn_block.5} parent=11 // pred_check_branch
          %154 = sbr.rel (%p152) target = $region20
        $region19: #{impala_cnn_block.5} parent=11 // pred_region
          %s156 = ssub.s32 16, 16
          %157 = vsyncadd [#allocation9], %s156
          %s159 = sshll.u32 [#allocation10], 4
          %s160 = int_to_ptr.vmem [resolvable:$true] %s159
          %162 = dma.hbm_to_vmem [thread:$0]  %s2, 16, %s160, [#allocation9]
        $region20: #{impala_cnn_block.5} parent=11 // pred_fallthru
          _
      $region12: #{impala_cnn_block.5} parent=5 // pred_fallthru
        _
      %p163 = scmp.lt.s32.totalorder %s16, 2
      // Predicated region
      $region21: #{impala_cnn_block.5} parent=5 // pred_check
        %p164 = pneg %p163
      $region22: #{impala_cnn_block.5} parent=5 // pred_check_branch
        %166 = sbr.rel (%p164) target = $region24
      $region23: #{impala_cnn_block.5} parent=5 // pred_region
        // Predicated region
        $region25: #{impala_cnn_block.5} parent=23 // pred_check
          %p167 = pneg %p48
        $region26: #{impala_cnn_block.5} parent=23 // pred_check_branch
          %169 = sbr.rel (%p167) target = $region28
        $region27: #{impala_cnn_block.5} parent=23 // pred_region
          %s170 = sand.u32 %s38, 1
          %s171 = scalar_lea.sflag [#allocation6], %s170
          %s172 = sand.u32 %s38, 1
          %s173 = smul.addr %s172, 256
          %s174 = scalar_lea.vmem [#allocation5], %s173
          %s176 = ssub.s32 4096, 4096
          %177 = vsyncadd %s171, %s176
          %s178 = smul.addr %s23, 32
          %s179 = smul.addr %s178, 128
          %s180 = scalar_lea.hbm %s0, %s179
          %s181 = sshll.u32 %s174, 4
          %s182 = int_to_ptr.vmem [resolvable:$true] %s181
          %187 = dma.hbm_to_vmem [thread:$0]  %s180, 4096, %s182, %s171, 128, 128, 8
        $region28: #{impala_cnn_block.5} parent=23 // pred_fallthru
          _
      $region24: #{impala_cnn_block.5} parent=5 // pred_fallthru
        _
      %p188 = scmp.le.s32.totalorder 1, %s16
      %p189 = scmp.lt.s32.totalorder %s16, 3
      %p190 = pnand %p188, %p189
      %p191 = pneg %p190
      // Predicated region
      $region29: #{impala_cnn_block.5} parent=5 // pred_check
        _
      $region30: #{impala_cnn_block.5} parent=5 // pred_check_branch
        %193 = sbr.rel (%p190) target = $region32
      $region31: #{impala_cnn_block.5} parent=5 // pred_region
        %s194 = ssub.s32 %s16, 1
        %s195 = sand.u32 %s41, 1
        %s196 = scalar_lea.sflag [#allocation6], %s195
        %s197 = sand.u32 %s41, 1
        %s198 = smul.addr %s197, 256
        %s199 = scalar_lea.vmem [#allocation5], %s198
        // Predicated region
        $region33: #{impala_cnn_block.5} parent=31 // pred_check
          %p200 = pneg %p54
        $region34: #{impala_cnn_block.5} parent=31 // pred_check_branch
          %202 = sbr.rel (%p200) target = $region36
        $region35: #{impala_cnn_block.5} parent=31 // pred_region
          %203 = dma.done %s196, 4096
        $region36: #{impala_cnn_block.5} parent=31 // pred_fallthru
          _
        // Predicated region
        $region37: #{impala_cnn_block.5} parent=31 // pred_check
          %p204 = pneg %p75
        $region38: #{impala_cnn_block.5} parent=31 // pred_check_branch
          %206 = sbr.rel (%p204) target = $region40
        $region39: #{impala_cnn_block.5} parent=31 // pred_region
          %207 = dma.done [#allocation9], 384
        $region40: #{impala_cnn_block.5} parent=31 // pred_fallthru
          _
        // Predicated region
        $region41: #{impala_cnn_block.5} parent=31 // pred_check
          %p208 = pneg %p96
        $region42: #{impala_cnn_block.5} parent=31 // pred_check_branch
          %210 = sbr.rel (%p208) target = $region44
        $region43: #{impala_cnn_block.5} parent=31 // pred_region
          %211 = dma.done [#allocation9], 16
        $region44: #{impala_cnn_block.5} parent=31 // pred_fallthru
          _
        %s212 = sand.u32 %s41, 1
        %s213 = scalar_lea.sflag [#allocation6], %s212
        %s214 = sand.u32 %s41, 1
        %s215 = smul.addr %s214, 256
        %s216 = scalar_lea.vmem [#allocation5], %s215
        %p217 = pneg %p54
        %p218 = pneg %p51
        %p219 = pneg %p75
        %p220 = pneg %p72
        %p221 = pneg %p96
        %p222 = pneg %p93
        %p223 = pneg %p124
        %p224 = pneg %p121
        %s225 = sand.u32 %s111, 1
        %s226 = scalar_lea.sflag [#allocation7], %s225
        %s227 = sand.u32 %s111, 1
        %s228 = smul.addr %s227, 32
        %s229 = scalar_lea.vmem [#allocation11], %s228
        %s230 = smul.u32 8, %s26
        %p232 = scmp.eq.s32.totalorder %s26, 0
        // Predicated region
        $region45: #{impala_cnn_block.5} parent=31 // pred_check
          %p233 = pneg %p232
        $region46: #{impala_cnn_block.5} parent=31 // pred_check_branch
          %235 = sbr.rel (%p233) target = $region48
        $region47: #{impala_cnn_block.5} parent=31 // pred_region
          %vm236 = vcmask 27648
          %237 = vst.msk [vmem:[#allocation2] sm:$0xf] %vm236, 0
          %238 = vst.msk [vmem:[#allocation2 + $0x4] sm:$0xf] %vm236, 0
          %vm239 = vcmask 24576
          %240 = vst.msk [vmem:[#allocation2 + $0x8] sm:$0x1] %vm239, 0
          %241 = vst.msk [vmem:[#allocation2 + $0xc] sm:$0xf] %vm236, 0
          %242 = vst.msk [vmem:[#allocation2 + $0x10] sm:$0xf] %vm236, 0
          %243 = vst.msk [vmem:[#allocation2 + $0x14] sm:$0x1] %vm239, 0
          %244 = vst.msk [vmem:[#allocation2 + $0x18] sm:$0xf] %vm236, 0
          %245 = vst.msk [vmem:[#allocation2 + $0x1c] sm:$0xf] %vm236, 0
          %246 = vst.msk [vmem:[#allocation2 + $0x20] sm:$0x1] %vm239, 0
          %247 = vst.msk [vmem:[#allocation2 + $0x24] sm:$0xf] %vm236, 0
          %248 = vst.msk [vmem:[#allocation2 + $0x28] sm:$0xf] %vm236, 0
          %249 = vst.msk [vmem:[#allocation2 + $0x2c] sm:$0x1] %vm239, 0
          %250 = vst.msk [vmem:[#allocation2 + $0x30] sm:$0xf] %vm236, 0
          %251 = vst.msk [vmem:[#allocation2 + $0x34] sm:$0xf] %vm236, 0
          %252 = vst.msk [vmem:[#allocation2 + $0x38] sm:$0x1] %vm239, 0
          %253 = vst.msk [vmem:[#allocation2 + $0x3c] sm:$0xf] %vm236, 0
          %254 = vst.msk [vmem:[#allocation2 + $0x40] sm:$0xf] %vm236, 0
          %255 = vst.msk [vmem:[#allocation2 + $0x44] sm:$0x1] %vm239, 0
          %256 = vst.msk [vmem:[#allocation2 + $0x48] sm:$0xf] %vm236, 0
          %257 = vst.msk [vmem:[#allocation2 + $0x4c] sm:$0xf] %vm236, 0
          %258 = vst.msk [vmem:[#allocation2 + $0x50] sm:$0x1] %vm239, 0
          %259 = vst.msk [vmem:[#allocation2 + $0x54] sm:$0xf] %vm236, 0
          %260 = vst.msk [vmem:[#allocation2 + $0x58] sm:$0xf] %vm236, 0
          %261 = vst.msk [vmem:[#allocation2 + $0x5c] sm:$0x1] %vm239, 0
          %262 = vst.msk [vmem:[#allocation2 + $0x60] sm:$0xf] %vm236, 0
          %263 = vst.msk [vmem:[#allocation2 + $0x64] sm:$0xf] %vm236, 0
          %264 = vst.msk [vmem:[#allocation2 + $0x68] sm:$0x1] %vm239, 0
          %265 = vst.msk [vmem:[#allocation2 + $0x6c] sm:$0xf] %vm236, 0
          %266 = vst.msk [vmem:[#allocation2 + $0x70] sm:$0xf] %vm236, 0
          %267 = vst.msk [vmem:[#allocation2 + $0x74] sm:$0x1] %vm239, 0
          %268 = vst.msk [vmem:[#allocation2 + $0x78] sm:$0xf] %vm236, 0
          %269 = vst.msk [vmem:[#allocation2 + $0x7c] sm:$0xf] %vm236, 0
          %270 = vst.msk [vmem:[#allocation2 + $0x80] sm:$0x1] %vm239, 0
          %271 = vst.msk [vmem:[#allocation2 + $0x84] sm:$0xf] %vm236, 0
          %272 = vst.msk [vmem:[#allocation2 + $0x88] sm:$0xf] %vm236, 0
          %273 = vst.msk [vmem:[#allocation2 + $0x8c] sm:$0x1] %vm239, 0
          %274 = vst.msk [vmem:[#allocation2 + $0x90] sm:$0xf] %vm236, 0
          %275 = vst.msk [vmem:[#allocation2 + $0x94] sm:$0xf] %vm236, 0
          %276 = vst.msk [vmem:[#allocation2 + $0x98] sm:$0x1] %vm239, 0
          %277 = vst.msk [vmem:[#allocation2 + $0x9c] sm:$0xf] %vm236, 0
          %278 = vst.msk [vmem:[#allocation2 + $0xa0] sm:$0xf] %vm236, 0
          %279 = vst.msk [vmem:[#allocation2 + $0xa4] sm:$0x1] %vm239, 0
          %280 = vst.msk [vmem:[#allocation2 + $0xa8] sm:$0xf] %vm236, 0
          %281 = vst.msk [vmem:[#allocation2 + $0xac] sm:$0xf] %vm236, 0
          %282 = vst.msk [vmem:[#allocation2 + $0xb0] sm:$0x1] %vm239, 0
          %283 = vst.msk [vmem:[#allocation2 + $0xb4] sm:$0xf] %vm236, 0
          %284 = vst.msk [vmem:[#allocation2 + $0xb8] sm:$0xf] %vm236, 0
          %285 = vst.msk [vmem:[#allocation2 + $0xbc] sm:$0x1] %vm239, 0
          %286 = vst.msk [vmem:[#allocation2 + $0xc0] sm:$0xf] %vm236, 0
          %287 = vst.msk [vmem:[#allocation2 + $0xc4] sm:$0xf] %vm236, 0
          %288 = vst.msk [vmem:[#allocation2 + $0xc8] sm:$0x1] %vm239, 0
          %289 = vst.msk [vmem:[#allocation2 + $0xcc] sm:$0xf] %vm236, 0
          %290 = vst.msk [vmem:[#allocation2 + $0xd0] sm:$0xf] %vm236, 0
          %291 = vst.msk [vmem:[#allocation2 + $0xd4] sm:$0x1] %vm239, 0
          %292 = vst.msk [vmem:[#allocation2 + $0xd8] sm:$0xf] %vm236, 0
          %293 = vst.msk [vmem:[#allocation2 + $0xdc] sm:$0xf] %vm236, 0
          %294 = vst.msk [vmem:[#allocation2 + $0xe0] sm:$0x1] %vm239, 0
          %295 = vst.msk [vmem:[#allocation2 + $0xe4] sm:$0xf] %vm236, 0
          %296 = vst.msk [vmem:[#allocation2 + $0xe8] sm:$0xf] %vm236, 0
          %297 = vst.msk [vmem:[#allocation2 + $0xec] sm:$0x1] %vm239, 0
          %v298 = vld [vmem:[%s199] sm:$0xff]
          %v299 = vld [vmem:[%s199 + $0x8] sm:$0xff]
          %v300 = vld [vmem:[%s199 + $0x10] sm:$0xff]
          %v301 = vld [vmem:[%s199 + $0x18] sm:$0xff]
          %v302 = vld [vmem:[%s199 + $0x20] sm:$0xff]
          %v303 = vld [vmem:[%s199 + $0x28] sm:$0xff]
          %v304 = vld [vmem:[%s199 + $0x30] sm:$0xff]
          %v305 = vld [vmem:[%s199 + $0x38] sm:$0xff]
          %v306 = vld [vmem:[%s199 + $0x40] sm:$0xff]
          %v307 = vld [vmem:[%s199 + $0x48] sm:$0xff]
          %v308 = vld [vmem:[%s199 + $0x50] sm:$0xff]
          %v309 = vld [vmem:[%s199 + $0x58] sm:$0xff]
          %v310 = vld [vmem:[%s199 + $0x60] sm:$0xff]
          %v311 = vld [vmem:[%s199 + $0x68] sm:$0xff]
          %v312 = vld [vmem:[%s199 + $0x70] sm:$0xff]
          %v313 = vld [vmem:[%s199 + $0x78] sm:$0xff]
          %v314 = vld [vmem:[%s199 + $0x80] sm:$0xff]
          %v315 = vld [vmem:[%s199 + $0x88] sm:$0xff]
          %v316 = vld [vmem:[%s199 + $0x90] sm:$0xff]
          %v317 = vld [vmem:[%s199 + $0x98] sm:$0xff]
          %v318 = vld [vmem:[%s199 + $0xa0] sm:$0xff]
          %v319 = vld [vmem:[%s199 + $0xa8] sm:$0xff]
          %v320 = vld [vmem:[%s199 + $0xb0] sm:$0xff]
          %v321 = vld [vmem:[%s199 + $0xb8] sm:$0xff]
          %v322 = vld [vmem:[%s199 + $0xc0] sm:$0xff]
          %v323 = vld [vmem:[%s199 + $0xc8] sm:$0xff]
          %v324 = vld [vmem:[%s199 + $0xd0] sm:$0xff]
          %v325 = vld [vmem:[%s199 + $0xd8] sm:$0xff]
          %v326 = vld [vmem:[%s199 + $0xe0] sm:$0xff]
          %v327 = vld [vmem:[%s199 + $0xe8] sm:$0xff]
          %v328 = vld [vmem:[%s199 + $0xf0] sm:$0xff]
          %v329 = vld [vmem:[%s199 + $0xf8] sm:$0xff]
          %v330 = vpack.c.bf16 %v299, %v298
          %v331 = vpack.c.bf16 %v301, %v300
          %v332 = vpack.c.bf16 %v303, %v302
          %v333 = vpack.c.bf16 %v305, %v304
          %v334 = vpack.c.bf16 %v307, %v306
          %v335 = vpack.c.bf16 %v309, %v308
          %v336 = vpack.c.bf16 %v311, %v310
          %v337 = vpack.c.bf16 %v313, %v312
          %v338 = vpack.c.bf16 %v315, %v314
          %v339 = vpack.c.bf16 %v317, %v316
          %v340 = vpack.c.bf16 %v319, %v318
          %v341 = vpack.c.bf16 %v321, %v320
          %v342 = vpack.c.bf16 %v323, %v322
          %v343 = vpack.c.bf16 %v325, %v324
          %v344 = vpack.c.bf16 %v327, %v326
          %v345 = vpack.c.bf16 %v329, %v328
          %v362 = vunpack.c.l.b16 %v330
          %v363 = vunpack.c.h.b16 %v330
          %v364 = vunpack.c.l.b16 %v331
          %v365 = vunpack.c.h.b16 %v331
          %v366 = vunpack.c.l.b16 %v332
          %v367 = vunpack.c.h.b16 %v332
          %v368 = vunpack.c.l.b16 %v333
          %v369 = vunpack.c.h.b16 %v333
          %v370 = vunpack.c.l.b16 %v334
          %v371 = vunpack.c.h.b16 %v334
          %v372 = vunpack.c.l.b16 %v335
          %v373 = vunpack.c.h.b16 %v335
          %v374 = vunpack.c.l.b16 %v336
          %v375 = vunpack.c.h.b16 %v336
          %v376 = vunpack.c.l.b16 %v337
          %v377 = vunpack.c.h.b16 %v337
          %v378 = vunpack.c.l.b16 %v338
          %v379 = vunpack.c.h.b16 %v338
          %v380 = vunpack.c.l.b16 %v339
          %v381 = vunpack.c.h.b16 %v339
          %v382 = vunpack.c.l.b16 %v340
          %v383 = vunpack.c.h.b16 %v340
          %v384 = vunpack.c.l.b16 %v341
          %v385 = vunpack.c.h.b16 %v341
          %v386 = vunpack.c.l.b16 %v342
          %v387 = vunpack.c.h.b16 %v342
          %v388 = vunpack.c.l.b16 %v343
          %v389 = vunpack.c.h.b16 %v343
          %v390 = vunpack.c.l.b16 %v344
          %v391 = vunpack.c.h.b16 %v344
          %v392 = vunpack.c.l.b16 %v345
          %v393 = vunpack.c.h.b16 %v345
          %v394 = vpack.c.b16 %v362, %v362
          %v395 = vpack.c.b16 %v363, %v363
          %v396 = vpack.c.b16 %v364, %v364
          %v397 = vpack.c.b16 %v365, %v365
          %v398 = vpack.c.b16 %v366, %v366
          %v399 = vpack.c.b16 %v367, %v367
          %v400 = vpack.c.b16 %v368, %v368
          %v401 = vpack.c.b16 %v369, %v369
          %v402 = vpack.c.b16 %v370, %v370
          %v403 = vpack.c.b16 %v371, %v371
          %v404 = vpack.c.b16 %v372, %v372
          %v405 = vpack.c.b16 %v373, %v373
          %v406 = vpack.c.b16 %v374, %v374
          %v407 = vpack.c.b16 %v375, %v375
          %v408 = vpack.c.b16 %v376, %v376
          %v409 = vpack.c.b16 %v377, %v377
          %v410 = vpack.c.b16 %v378, %v378
          %v411 = vpack.c.b16 %v379, %v379
          %v412 = vpack.c.b16 %v380, %v380
          %v413 = vpack.c.b16 %v381, %v381
          %v414 = vpack.c.b16 %v382, %v382
          %v415 = vpack.c.b16 %v383, %v383
          %v416 = vpack.c.b16 %v384, %v384
          %v417 = vpack.c.b16 %v385, %v385
          %v418 = vpack.c.b16 %v386, %v386
          %v419 = vpack.c.b16 %v387, %v387
          %v420 = vpack.c.b16 %v388, %v388
          %v421 = vpack.c.b16 %v389, %v389
          %v422 = vpack.c.b16 %v390, %v390
          %v423 = vpack.c.b16 %v391, %v391
          %v424 = vpack.c.b16 %v392, %v392
          %v425 = vpack.c.b16 %v393, %v393
          %vm426 = vsmask.f32 256
          %vm427 = vsmask.f32 4368
          %vm428 = vmor %vm426, %vm427
          %v430 = vshrl.u32 %v394, 16
          %v432 = vrot.slane %v430, 7
          %v433 = vshll.u32 %v394, 16
          %v435 = vor.u32 %v432, %v433
          %v436 = vrot.slane %v432, 4
          %v438 = vshrl.u32 %v395, 16
          %v440 = vrot.slane %v438, 7
          %v441 = vshll.u32 %v395, 16
          %v443 = vor.u32 %v440, %v441
          %v444 = vsel %vm428, %v436, %v443
          %v445 = vrot.slane %v440, 4
          %v447 = vshrl.u32 %v396, 16
          %v449 = vrot.slane %v447, 7
          %v450 = vshll.u32 %v396, 16
          %v452 = vor.u32 %v449, %v450
          %v453 = vrot.slane %v449, 4
          %v455 = vshrl.u32 %v397, 16
          %v457 = vrot.slane %v455, 7
          %v458 = vshll.u32 %v397, 16
          %v460 = vor.u32 %v457, %v458
          %v461 = vsel %vm428, %v453, %v460
          %v462 = vrot.slane %v457, 4
          %v464 = vshrl.u32 %v398, 16
          %v466 = vrot.slane %v464, 7
          %v467 = vshll.u32 %v398, 16
          %v469 = vor.u32 %v466, %v467
          %v470 = vrot.slane %v466, 4
          %v472 = vshrl.u32 %v399, 16
          %v474 = vrot.slane %v472, 7
          %v475 = vshll.u32 %v399, 16
          %v477 = vor.u32 %v474, %v475
          %v478 = vsel %vm428, %v470, %v477
          %v479 = vrot.slane %v474, 4
          %v481 = vshrl.u32 %v400, 16
          %v483 = vrot.slane %v481, 7
          %v484 = vshll.u32 %v400, 16
          %v486 = vor.u32 %v483, %v484
          %v487 = vrot.slane %v483, 4
          %v489 = vshrl.u32 %v401, 16
          %v491 = vrot.slane %v489, 7
          %v492 = vshll.u32 %v401, 16
          %v494 = vor.u32 %v491, %v492
          %v495 = vsel %vm428, %v487, %v494
          %v496 = vrot.slane %v491, 4
          %v498 = vshrl.u32 %v402, 16
          %v500 = vrot.slane %v498, 7
          %v501 = vshll.u32 %v402, 16
          %v503 = vor.u32 %v500, %v501
          %v504 = vrot.slane %v500, 4
          %v506 = vshrl.u32 %v403, 16
          %v508 = vrot.slane %v506, 7
          %v509 = vshll.u32 %v403, 16
          %v511 = vor.u32 %v508, %v509
          %v512 = vsel %vm428, %v504, %v511
          %v513 = vrot.slane %v508, 4
          %v515 = vshrl.u32 %v404, 16
          %v517 = vrot.slane %v515, 7
          %v518 = vshll.u32 %v404, 16
          %v520 = vor.u32 %v517, %v518
          %v521 = vrot.slane %v517, 4
          %v523 = vshrl.u32 %v405, 16
          %v525 = vrot.slane %v523, 7
          %v526 = vshll.u32 %v405, 16
          %v528 = vor.u32 %v525, %v526
          %v529 = vsel %vm428, %v521, %v528
          %v530 = vrot.slane %v525, 4
          %v532 = vshrl.u32 %v406, 16
          %v534 = vrot.slane %v532, 7
          %v535 = vshll.u32 %v406, 16
          %v537 = vor.u32 %v534, %v535
          %v538 = vrot.slane %v534, 4
          %v540 = vshrl.u32 %v407, 16
          %v542 = vrot.slane %v540, 7
          %v543 = vshll.u32 %v407, 16
          %v545 = vor.u32 %v542, %v543
          %v546 = vsel %vm428, %v538, %v545
          %v547 = vrot.slane %v542, 4
          %v549 = vshrl.u32 %v408, 16
          %v551 = vrot.slane %v549, 7
          %v552 = vshll.u32 %v408, 16
          %v554 = vor.u32 %v551, %v552
          %v555 = vrot.slane %v551, 4
          %v557 = vshrl.u32 %v409, 16
          %v559 = vrot.slane %v557, 7
          %v560 = vshll.u32 %v409, 16
          %v562 = vor.u32 %v559, %v560
          %v563 = vsel %vm428, %v555, %v562
          %v564 = vrot.slane %v559, 4
          %v566 = vshrl.u32 %v410, 16
          %v568 = vrot.slane %v566, 7
          %v569 = vshll.u32 %v410, 16
          %v571 = vor.u32 %v568, %v569
          %v572 = vrot.slane %v568, 4
          %v574 = vshrl.u32 %v411, 16
          %v576 = vrot.slane %v574, 7
          %v577 = vshll.u32 %v411, 16
          %v579 = vor.u32 %v576, %v577
          %v580 = vsel %vm428, %v572, %v579
          %v581 = vrot.slane %v576, 4
          %v583 = vshrl.u32 %v412, 16
          %v585 = vrot.slane %v583, 7
          %v586 = vshll.u32 %v412, 16
          %v588 = vor.u32 %v585, %v586
          %v589 = vrot.slane %v585, 4
          %v591 = vshrl.u32 %v413, 16
          %v593 = vrot.slane %v591, 7
          %v594 = vshll.u32 %v413, 16
          %v596 = vor.u32 %v593, %v594
          %v597 = vsel %vm428, %v589, %v596
          %v598 = vrot.slane %v593, 4
          %v600 = vshrl.u32 %v414, 16
          %v602 = vrot.slane %v600, 7
          %v603 = vshll.u32 %v414, 16
          %v605 = vor.u32 %v602, %v603
          %v606 = vrot.slane %v602, 4
          %v608 = vshrl.u32 %v415, 16
          %v610 = vrot.slane %v608, 7
          %v611 = vshll.u32 %v415, 16
          %v613 = vor.u32 %v610, %v611
          %v614 = vsel %vm428, %v606, %v613
          %v615 = vrot.slane %v610, 4
          %v617 = vshrl.u32 %v416, 16
          %v619 = vrot.slane %v617, 7
          %v620 = vshll.u32 %v416, 16
          %v622 = vor.u32 %v619, %v620
          %v623 = vrot.slane %v619, 4
          %v625 = vshrl.u32 %v417, 16
          %v627 = vrot.slane %v625, 7
          %v628 = vshll.u32 %v417, 16
          %v630 = vor.u32 %v627, %v628
          %v631 = vsel %vm428, %v623, %v630
          %v632 = vrot.slane %v627, 4
          %v634 = vshrl.u32 %v418, 16
          %v636 = vrot.slane %v634, 7
          %v637 = vshll.u32 %v418, 16
          %v639 = vor.u32 %v636, %v637
          %v640 = vrot.slane %v636, 4
          %v642 = vshrl.u32 %v419, 16
          %v644 = vrot.slane %v642, 7
          %v645 = vshll.u32 %v419, 16
          %v647 = vor.u32 %v644, %v645
          %v648 = vsel %vm428, %v640, %v647
          %v649 = vrot.slane %v644, 4
          %v651 = vshrl.u32 %v420, 16
          %v653 = vrot.slane %v651, 7
          %v654 = vshll.u32 %v420, 16
          %v656 = vor.u32 %v653, %v654
          %v657 = vrot.slane %v653, 4
          %v659 = vshrl.u32 %v421, 16
          %v661 = vrot.slane %v659, 7
          %v662 = vshll.u32 %v421, 16
          %v664 = vor.u32 %v661, %v662
          %v665 = vsel %vm428, %v657, %v664
          %v666 = vrot.slane %v661, 4
          %v668 = vshrl.u32 %v422, 16
          %v670 = vrot.slane %v668, 7
          %v671 = vshll.u32 %v422, 16
          %v673 = vor.u32 %v670, %v671
          %v674 = vrot.slane %v670, 4
          %v676 = vshrl.u32 %v423, 16
          %v678 = vrot.slane %v676, 7
          %v679 = vshll.u32 %v423, 16
          %v681 = vor.u32 %v678, %v679
          %v682 = vsel %vm428, %v674, %v681
          %v683 = vrot.slane %v678, 4
          %v685 = vshrl.u32 %v424, 16
          %v687 = vrot.slane %v685, 7
          %v688 = vshll.u32 %v424, 16
          %v690 = vor.u32 %v687, %v688
          %v691 = vrot.slane %v687, 4
          %v693 = vshrl.u32 %v425, 16
          %v695 = vrot.slane %v693, 7
          %v696 = vshll.u32 %v425, 16
          %v698 = vor.u32 %v695, %v696
          %v699 = vsel %vm428, %v691, %v698
          %v700 = vrot.slane %v695, 4
          %s749 = scalar_lea.vmem [#allocation2], 24
          %vm750 = vcmask 27648
          %vm751 = vsmask.f32 7938
          %vm752 = vmand %vm750, %vm751
          %v753 = vld [vmem:[%s749] sm:$0xf]
          %v754 = vsel %vm752, %v435, %v753
          %755 = vst [vmem:[%s749] sm:$0xf] %v754
          %756 = vst.msk [vmem:[%s749 + $0x4] sm:$0xf] %vm236, %v444
          %vm757 = vcmask 24576
          %vm758 = vmand %vm757, %vm426
          %v759 = vld [vmem:[%s749 + $0x8] sm:$0x1]
          %v760 = vsel %vm758, %v445, %v759
          %761 = vst [vmem:[%s749 + $0x8] sm:$0x1] %v760
          %v762 = vld [vmem:[%s749 + $0xc] sm:$0xf]
          %v763 = vsel %vm752, %v452, %v762
          %764 = vst [vmem:[%s749 + $0xc] sm:$0xf] %v763
          %765 = vst.msk [vmem:[%s749 + $0x10] sm:$0xf] %vm236, %v461
          %v766 = vld [vmem:[%s749 + $0x14] sm:$0x1]
          %v767 = vsel %vm758, %v462, %v766
          %768 = vst [vmem:[%s749 + $0x14] sm:$0x1] %v767
          %v769 = vld [vmem:[%s749 + $0x18] sm:$0xf]
          %v770 = vsel %vm752, %v469, %v769
          %771 = vst [vmem:[%s749 + $0x18] sm:$0xf] %v770
          %772 = vst.msk [vmem:[%s749 + $0x1c] sm:$0xf] %vm236, %v478
          %v773 = vld [vmem:[%s749 + $0x20] sm:$0x1]
          %v774 = vsel %vm758, %v479, %v773
          %775 = vst [vmem:[%s749 + $0x20] sm:$0x1] %v774
          %v776 = vld [vmem:[%s749 + $0x24] sm:$0xf]
          %v777 = vsel %vm752, %v486, %v776
          %778 = vst [vmem:[%s749 + $0x24] sm:$0xf] %v777
          %779 = vst.msk [vmem:[%s749 + $0x28] sm:$0xf] %vm236, %v495
          %v780 = vld [vmem:[%s749 + $0x2c] sm:$0x1]
          %v781 = vsel %vm758, %v496, %v780
          %782 = vst [vmem:[%s749 + $0x2c] sm:$0x1] %v781
          %v783 = vld [vmem:[%s749 + $0x30] sm:$0xf]
          %v784 = vsel %vm752, %v503, %v783
          %785 = vst [vmem:[%s749 + $0x30] sm:$0xf] %v784
          %786 = vst.msk [vmem:[%s749 + $0x34] sm:$0xf] %vm236, %v512
          %v787 = vld [vmem:[%s749 + $0x38] sm:$0x1]
          %v788 = vsel %vm758, %v513, %v787
          %789 = vst [vmem:[%s749 + $0x38] sm:$0x1] %v788
          %v790 = vld [vmem:[%s749 + $0x3c] sm:$0xf]
          %v791 = vsel %vm752, %v520, %v790
          %792 = vst [vmem:[%s749 + $0x3c] sm:$0xf] %v791
          %793 = vst.msk [vmem:[%s749 + $0x40] sm:$0xf] %vm236, %v529
          %v794 = vld [vmem:[%s749 + $0x44] sm:$0x1]
          %v795 = vsel %vm758, %v530, %v794
          %796 = vst [vmem:[%s749 + $0x44] sm:$0x1] %v795
          %v797 = vld [vmem:[%s749 + $0x48] sm:$0xf]
          %v798 = vsel %vm752, %v537, %v797
          %799 = vst [vmem:[%s749 + $0x48] sm:$0xf] %v798
          %800 = vst.msk [vmem:[%s749 + $0x4c] sm:$0xf] %vm236, %v546
          %v801 = vld [vmem:[%s749 + $0x50] sm:$0x1]
          %v802 = vsel %vm758, %v547, %v801
          %803 = vst [vmem:[%s749 + $0x50] sm:$0x1] %v802
          %v804 = vld [vmem:[%s749 + $0x54] sm:$0xf]
          %v805 = vsel %vm752, %v554, %v804
          %806 = vst [vmem:[%s749 + $0x54] sm:$0xf] %v805
          %807 = vst.msk [vmem:[%s749 + $0x58] sm:$0xf] %vm236, %v563
          %v808 = vld [vmem:[%s749 + $0x5c] sm:$0x1]
          %v809 = vsel %vm758, %v564, %v808
          %810 = vst [vmem:[%s749 + $0x5c] sm:$0x1] %v809
          %v811 = vld [vmem:[%s749 + $0x60] sm:$0xf]
          %v812 = vsel %vm752, %v571, %v811
          %813 = vst [vmem:[%s749 + $0x60] sm:$0xf] %v812
          %814 = vst.msk [vmem:[%s749 + $0x64] sm:$0xf] %vm236, %v580
          %v815 = vld [vmem:[%s749 + $0x68] sm:$0x1]
          %v816 = vsel %vm758, %v581, %v815
          %817 = vst [vmem:[%s749 + $0x68] sm:$0x1] %v816
          %v818 = vld [vmem:[%s749 + $0x6c] sm:$0xf]
          %v819 = vsel %vm752, %v588, %v818
          %820 = vst [vmem:[%s749 + $0x6c] sm:$0xf] %v819
          %821 = vst.msk [vmem:[%s749 + $0x70] sm:$0xf] %vm236, %v597
          %v822 = vld [vmem:[%s749 + $0x74] sm:$0x1]
          %v823 = vsel %vm758, %v598, %v822
          %824 = vst [vmem:[%s749 + $0x74] sm:$0x1] %v823
          %v825 = vld [vmem:[%s749 + $0x78] sm:$0xf]
          %v826 = vsel %vm752, %v605, %v825
          %827 = vst [vmem:[%s749 + $0x78] sm:$0xf] %v826
          %828 = vst.msk [vmem:[%s749 + $0x7c] sm:$0xf] %vm236, %v614
          %v829 = vld [vmem:[%s749 + $0x80] sm:$0x1]
          %v830 = vsel %vm758, %v615, %v829
          %831 = vst [vmem:[%s749 + $0x80] sm:$0x1] %v830
          %v832 = vld [vmem:[%s749 + $0x84] sm:$0xf]
          %v833 = vsel %vm752, %v622, %v832
          %834 = vst [vmem:[%s749 + $0x84] sm:$0xf] %v833
          %835 = vst.msk [vmem:[%s749 + $0x88] sm:$0xf] %vm236, %v631
          %v836 = vld [vmem:[%s749 + $0x8c] sm:$0x1]
          %v837 = vsel %vm758, %v632, %v836
          %838 = vst [vmem:[%s749 + $0x8c] sm:$0x1] %v837
          %v839 = vld [vmem:[%s749 + $0x90] sm:$0xf]
          %v840 = vsel %vm752, %v639, %v839
          %841 = vst [vmem:[%s749 + $0x90] sm:$0xf] %v840
          %842 = vst.msk [vmem:[%s749 + $0x94] sm:$0xf] %vm236, %v648
          %v843 = vld [vmem:[%s749 + $0x98] sm:$0x1]
          %v844 = vsel %vm758, %v649, %v843
          %845 = vst [vmem:[%s749 + $0x98] sm:$0x1] %v844
          %v846 = vld [vmem:[%s749 + $0x9c] sm:$0xf]
          %v847 = vsel %vm752, %v656, %v846
          %848 = vst [vmem:[%s749 + $0x9c] sm:$0xf] %v847
          %849 = vst.msk [vmem:[%s749 + $0xa0] sm:$0xf] %vm236, %v665
          %v850 = vld [vmem:[%s749 + $0xa4] sm:$0x1]
          %v851 = vsel %vm758, %v666, %v850
          %852 = vst [vmem:[%s749 + $0xa4] sm:$0x1] %v851
          %v853 = vld [vmem:[%s749 + $0xa8] sm:$0xf]
          %v854 = vsel %vm752, %v673, %v853
          %855 = vst [vmem:[%s749 + $0xa8] sm:$0xf] %v854
          %856 = vst.msk [vmem:[%s749 + $0xac] sm:$0xf] %vm236, %v682
          %v857 = vld [vmem:[%s749 + $0xb0] sm:$0x1]
          %v858 = vsel %vm758, %v683, %v857
          %859 = vst [vmem:[%s749 + $0xb0] sm:$0x1] %v858
          %v860 = vld [vmem:[%s749 + $0xb4] sm:$0xf]
          %v861 = vsel %vm752, %v690, %v860
          %862 = vst [vmem:[%s749 + $0xb4] sm:$0xf] %v861
          %863 = vst.msk [vmem:[%s749 + $0xb8] sm:$0xf] %vm236, %v699
          %v864 = vld [vmem:[%s749 + $0xbc] sm:$0x1]
          %v865 = vsel %vm758, %v700, %v864
          %866 = vst [vmem:[%s749 + $0xbc] sm:$0x1] %v865
        $region48: #{impala_cnn_block.5} parent=31 // pred_fallthru
          _
        %s867 = smul.u32 %s26, 16
        %s868 = smul.u32 %s867, 3
        %s869 = smul.addr %s868, 4
        %s870 = scalar_lea.vmem [#allocation2], %s869
        %v871 = vld [vmem:[%s870] sm:$0xf]
        %v872 = vld [vmem:[%s870 + $0x4] sm:$0xf]
        %v873 = vld [vmem:[%s870 + $0x8] sm:$0x1]
        %v874 = vld [vmem:[%s870 + $0xc] sm:$0xf]
        %v875 = vld [vmem:[%s870 + $0x10] sm:$0xf]
        %v876 = vld [vmem:[%s870 + $0x14] sm:$0x1]
        %v877 = vld [vmem:[%s870 + $0x18] sm:$0xf]
        %v878 = vld [vmem:[%s870 + $0x1c] sm:$0xf]
        %v879 = vld [vmem:[%s870 + $0x20] sm:$0x1]
        %v880 = vld [vmem:[%s870 + $0x24] sm:$0xf]
        %v881 = vld [vmem:[%s870 + $0x28] sm:$0xf]
        %v882 = vld [vmem:[%s870 + $0x2c] sm:$0x1]
        %v883 = vld [vmem:[%s870 + $0x30] sm:$0xf]
        %v884 = vld [vmem:[%s870 + $0x34] sm:$0xf]
        %v885 = vld [vmem:[%s870 + $0x38] sm:$0x1]
        %v886 = vld [vmem:[%s870 + $0x3c] sm:$0xf]
        %v887 = vld [vmem:[%s870 + $0x40] sm:$0xf]
        %v888 = vld [vmem:[%s870 + $0x44] sm:$0x1]
        %v889 = vld [vmem:[%s870 + $0x48] sm:$0xf]
        %v890 = vld [vmem:[%s870 + $0x4c] sm:$0xf]
        %v891 = vld [vmem:[%s870 + $0x50] sm:$0x1]
        %v892 = vld [vmem:[%s870 + $0x54] sm:$0xf]
        %v893 = vld [vmem:[%s870 + $0x58] sm:$0xf]
        %v894 = vld [vmem:[%s870 + $0x5c] sm:$0x1]
        %v895 = vld [vmem:[%s870 + $0x60] sm:$0xf]
        %v896 = vld [vmem:[%s870 + $0x64] sm:$0xf]
        %v897 = vld [vmem:[%s870 + $0x68] sm:$0x1]
        %v898 = vld [vmem:[%s870 + $0x6c] sm:$0xf]
        %v899 = vld [vmem:[%s870 + $0x70] sm:$0xf]
        %v900 = vld [vmem:[%s870 + $0x74] sm:$0x1]
        %v901 = vld [vmem:[%s870 + $0x78] sm:$0xf]
        %v902 = vld [vmem:[%s870 + $0x7c] sm:$0xf]
        %v903 = vld [vmem:[%s870 + $0x80] sm:$0x1]
        %v904 = vld [vmem:[%s870 + $0x84] sm:$0xf]
        %v905 = vld [vmem:[%s870 + $0x88] sm:$0xf]
        %v906 = vld [vmem:[%s870 + $0x8c] sm:$0x1]
        %v907 = vld [vmem:[%s870 + $0x90] sm:$0xf]
        %v908 = vld [vmem:[%s870 + $0x94] sm:$0xf]
        %v909 = vld [vmem:[%s870 + $0x98] sm:$0x1]
        %v910 = vld [vmem:[%s870 + $0x9c] sm:$0xf]
        %v911 = vld [vmem:[%s870 + $0xa0] sm:$0xf]
        %v912 = vld [vmem:[%s870 + $0xa4] sm:$0x1]
        %v913 = vld [vmem:[%s870 + $0xa8] sm:$0xf]
        %v914 = vld [vmem:[%s870 + $0xac] sm:$0xf]
        %v915 = vld [vmem:[%s870 + $0xb0] sm:$0x1]
        %v916 = vld [vmem:[%s870 + $0xb4] sm:$0xf]
        %v917 = vld [vmem:[%s870 + $0xb8] sm:$0xf]
        %v918 = vld [vmem:[%s870 + $0xbc] sm:$0x1]
        %v919 = vld [vmem:[%s870 + $0xc0] sm:$0xf]
        %v920 = vld [vmem:[%s870 + $0xc4] sm:$0xf]
        %v921 = vld [vmem:[%s870 + $0xc8] sm:$0x1]
        %v922 = vld [vmem:[%s870 + $0xcc] sm:$0xf]
        %v923 = vld [vmem:[%s870 + $0xd0] sm:$0xf]
        %v924 = vld [vmem:[%s870 + $0xd4] sm:$0x1]
        %v925 = vld [vmem:[%s870 + $0xd8] sm:$0xf]
        %v926 = vld [vmem:[%s870 + $0xdc] sm:$0xf]
        %v927 = vld [vmem:[%s870 + $0xe0] sm:$0x1]
        %v928 = vld [vmem:[#allocation10] sm:$0x1]
        %v963 = vunpack.c.l.b16 %v871
        %v964 = vunpack.c.l.b16 %v872
        %v965 = vunpack.c.l.b16 %v874
        %v966 = vunpack.c.l.b16 %v875
        %v967 = vunpack.c.l.b16 %v877
        %v968 = vunpack.c.l.b16 %v878
        %v969 = vunpack.c.l.b16 %v880
        %v970 = vunpack.c.l.b16 %v881
        %v971 = vunpack.c.l.b16 %v883
        %v972 = vunpack.c.l.b16 %v884
        %v973 = vunpack.c.l.b16 %v886
        %v974 = vunpack.c.l.b16 %v887
        %v975 = vunpack.c.l.b16 %v889
        %v976 = vunpack.c.l.b16 %v890
        %v977 = vunpack.c.l.b16 %v892
        %v978 = vunpack.c.l.b16 %v893
        %v979 = vunpack.c.l.b16 %v895
        %v980 = vunpack.c.l.b16 %v896
        %v981 = vunpack.c.l.b16 %v898
        %v982 = vunpack.c.l.b16 %v899
        %v983 = vunpack.c.l.b16 %v901
        %v984 = vunpack.c.l.b16 %v902
        %v985 = vunpack.c.l.b16 %v904
        %v986 = vunpack.c.l.b16 %v905
        %v987 = vunpack.c.l.b16 %v907
        %v988 = vunpack.c.l.b16 %v908
        %v989 = vunpack.c.l.b16 %v910
        %v990 = vunpack.c.l.b16 %v911
        %v991 = vunpack.c.l.b16 %v913
        %v992 = vunpack.c.l.b16 %v914
        %v993 = vunpack.c.l.b16 %v916
        %v994 = vunpack.c.l.b16 %v917
        %v995 = vunpack.c.l.b16 %v919
        %v996 = vunpack.c.l.b16 %v920
        %v997 = vpack.c.b16 %v964, %v963
        %v998 = vpack.c.b16 %v966, %v965
        %v999 = vpack.c.b16 %v968, %v967
        %v1000 = vpack.c.b16 %v970, %v969
        %v1001 = vpack.c.b16 %v972, %v971
        %v1002 = vpack.c.b16 %v974, %v973
        %v1003 = vpack.c.b16 %v976, %v975
        %v1004 = vpack.c.b16 %v978, %v977
        %v1005 = vpack.c.b16 %v980, %v979
        %v1006 = vpack.c.b16 %v982, %v981
        %v1007 = vpack.c.b16 %v984, %v983
        %v1008 = vpack.c.b16 %v986, %v985
        %v1009 = vpack.c.b16 %v988, %v987
        %v1010 = vpack.c.b16 %v990, %v989
        %v1011 = vpack.c.b16 %v992, %v991
        %v1012 = vpack.c.b16 %v994, %v993
        %v1013 = vpack.c.b16 %v996, %v995
        %v1031 = vunpack.c.l.b16 %v873
        %v1032 = vunpack.c.l.b16 %v876
        %v1033 = vunpack.c.l.b16 %v879
        %v1034 = vunpack.c.l.b16 %v882
        %v1035 = vunpack.c.l.b16 %v885
        %v1036 = vunpack.c.l.b16 %v888
        %v1037 = vunpack.c.l.b16 %v891
        %v1038 = vunpack.c.l.b16 %v894
        %v1039 = vunpack.c.l.b16 %v897
        %v1040 = vunpack.c.l.b16 %v900
        %v1041 = vunpack.c.l.b16 %v903
        %v1042 = vunpack.c.l.b16 %v906
        %v1043 = vunpack.c.l.b16 %v909
        %v1044 = vunpack.c.l.b16 %v912
        %v1045 = vunpack.c.l.b16 %v915
        %v1046 = vunpack.c.l.b16 %v918
        %v1047 = vunpack.c.l.b16 %v921
        %v1048 = vpack.c.b16 %v1031, %v1031
        %v1049 = vpack.c.b16 %v1032, %v1032
        %v1050 = vpack.c.b16 %v1033, %v1033
        %v1051 = vpack.c.b16 %v1034, %v1034
        %v1052 = vpack.c.b16 %v1035, %v1035
        %v1053 = vpack.c.b16 %v1036, %v1036
        %v1054 = vpack.c.b16 %v1037, %v1037
        %v1055 = vpack.c.b16 %v1038, %v1038
        %v1056 = vpack.c.b16 %v1039, %v1039
        %v1057 = vpack.c.b16 %v1040, %v1040
        %v1058 = vpack.c.b16 %v1041, %v1041
        %v1059 = vpack.c.b16 %v1042, %v1042
        %v1060 = vpack.c.b16 %v1043, %v1043
        %v1061 = vpack.c.b16 %v1044, %v1044
        %v1062 = vpack.c.b16 %v1045, %v1045
        %v1063 = vpack.c.b16 %v1046, %v1046
        %v1064 = vpack.c.b16 %v1047, %v1047
        %vm1065 = vsmask.f32 7424
        %v1067 = vshrl.u32 %v997, 16
        %v1069 = vshll.u32 %v997, 16
        %v1071 = vrot.slane %v1069, 1
        %v1072 = vor.u32 %v1067, %v1071
        %v1074 = vshll.u32 %v1048, 16
        %v1076 = vrot.slane %v1074, 1
        %v1077 = vsel %vm1065, %v1072, %v1076
        %v1079 = vshrl.u32 %v998, 16
        %v1081 = vshll.u32 %v998, 16
        %v1083 = vrot.slane %v1081, 1
        %v1084 = vor.u32 %v1079, %v1083
        %v1086 = vshll.u32 %v1049, 16
        %v1088 = vrot.slane %v1086, 1
        %v1089 = vsel %vm1065, %v1084, %v1088
        %v1091 = vshrl.u32 %v999, 16
        %v1093 = vshll.u32 %v999, 16
        %v1095 = vrot.slane %v1093, 1
        %v1096 = vor.u32 %v1091, %v1095
        %v1098 = vshll.u32 %v1050, 16
        %v1100 = vrot.slane %v1098, 1
        %v1101 = vsel %vm1065, %v1096, %v1100
        %v1103 = vshrl.u32 %v1000, 16
        %v1105 = vshll.u32 %v1000, 16
        %v1107 = vrot.slane %v1105, 1
        %v1108 = vor.u32 %v1103, %v1107
        %v1110 = vshll.u32 %v1051, 16
        %v1112 = vrot.slane %v1110, 1
        %v1113 = vsel %vm1065, %v1108, %v1112
        %v1115 = vshrl.u32 %v1001, 16
        %v1117 = vshll.u32 %v1001, 16
        %v1119 = vrot.slane %v1117, 1
        %v1120 = vor.u32 %v1115, %v1119
        %v1122 = vshll.u32 %v1052, 16
        %v1124 = vrot.slane %v1122, 1
        %v1125 = vsel %vm1065, %v1120, %v1124
        %v1127 = vshrl.u32 %v1002, 16
        %v1129 = vshll.u32 %v1002, 16
        %v1131 = vrot.slane %v1129, 1
        %v1132 = vor.u32 %v1127, %v1131
        %v1134 = vshll.u32 %v1053, 16
        %v1136 = vrot.slane %v1134, 1
        %v1137 = vsel %vm1065, %v1132, %v1136
        %v1139 = vshrl.u32 %v1003, 16
        %v1141 = vshll.u32 %v1003, 16
        %v1143 = vrot.slane %v1141, 1
        %v1144 = vor.u32 %v1139, %v1143
        %v1146 = vshll.u32 %v1054, 16
        %v1148 = vrot.slane %v1146, 1
        %v1149 = vsel %vm1065, %v1144, %v1148
        %v1151 = vshrl.u32 %v1004, 16
        %v1153 = vshll.u32 %v1004, 16
        %v1155 = vrot.slane %v1153, 1
        %v1156 = vor.u32 %v1151, %v1155
        %v1158 = vshll.u32 %v1055, 16
        %v1160 = vrot.slane %v1158, 1
        %v1161 = vsel %vm1065, %v1156, %v1160
        %v1163 = vshrl.u32 %v1005, 16
        %v1165 = vshll.u32 %v1005, 16
        %v1167 = vrot.slane %v1165, 1
        %v1168 = vor.u32 %v1163, %v1167
        %v1170 = vshll.u32 %v1056, 16
        %v1172 = vrot.slane %v1170, 1
        %v1173 = vsel %vm1065, %v1168, %v1172
        %v1175 = vshrl.u32 %v1006, 16
        %v1177 = vshll.u32 %v1006, 16
        %v1179 = vrot.slane %v1177, 1
        %v1180 = vor.u32 %v1175, %v1179
        %v1182 = vshll.u32 %v1057, 16
        %v1184 = vrot.slane %v1182, 1
        %v1185 = vsel %vm1065, %v1180, %v1184
        %v1187 = vshrl.u32 %v1007, 16
        %v1189 = vshll.u32 %v1007, 16
        %v1191 = vrot.slane %v1189, 1
        %v1192 = vor.u32 %v1187, %v1191
        %v1194 = vshll.u32 %v1058, 16
        %v1196 = vrot.slane %v1194, 1
        %v1197 = vsel %vm1065, %v1192, %v1196
        %v1199 = vshrl.u32 %v1008, 16
        %v1201 = vshll.u32 %v1008, 16
        %v1203 = vrot.slane %v1201, 1
        %v1204 = vor.u32 %v1199, %v1203
        %v1206 = vshll.u32 %v1059, 16
        %v1208 = vrot.slane %v1206, 1
        %v1209 = vsel %vm1065, %v1204, %v1208
        %v1211 = vshrl.u32 %v1009, 16
        %v1213 = vshll.u32 %v1009, 16
        %v1215 = vrot.slane %v1213, 1
        %v1216 = vor.u32 %v1211, %v1215
        %v1218 = vshll.u32 %v1060, 16
        %v1220 = vrot.slane %v1218, 1
        %v1221 = vsel %vm1065, %v1216, %v1220
        %v1223 = vshrl.u32 %v1010, 16
        %v1225 = vshll.u32 %v1010, 16
        %v1227 = vrot.slane %v1225, 1
        %v1228 = vor.u32 %v1223, %v1227
        %v1230 = vshll.u32 %v1061, 16
        %v1232 = vrot.slane %v1230, 1
        %v1233 = vsel %vm1065, %v1228, %v1232
        %v1235 = vshrl.u32 %v1011, 16
        %v1237 = vshll.u32 %v1011, 16
        %v1239 = vrot.slane %v1237, 1
        %v1240 = vor.u32 %v1235, %v1239
        %v1242 = vshll.u32 %v1062, 16
        %v1244 = vrot.slane %v1242, 1
        %v1245 = vsel %vm1065, %v1240, %v1244
        %v1247 = vshrl.u32 %v1012, 16
        %v1249 = vshll.u32 %v1012, 16
        %v1251 = vrot.slane %v1249, 1
        %v1252 = vor.u32 %v1247, %v1251
        %v1254 = vshll.u32 %v1063, 16
        %v1256 = vrot.slane %v1254, 1
        %v1257 = vsel %vm1065, %v1252, %v1256
        %v1259 = vshrl.u32 %v1013, 16
        %v1261 = vshll.u32 %v1013, 16
        %v1263 = vrot.slane %v1261, 1
        %v1264 = vor.u32 %v1259, %v1263
        %v1266 = vshll.u32 %v1064, 16
        %v1268 = vrot.slane %v1266, 1
        %v1269 = vsel %vm1065, %v1264, %v1268
        %1270 = vrot.lane.b32.xlu0 %v1077, 4
        %v1271 = vpop.permute.xlu0 %1270
        %1272 = vrot.lane.b32.xlu0 %v1089, 4
        %v1273 = vpop.permute.xlu0 %1272
        %1274 = vrot.lane.b32.xlu0 %v1101, 4
        %v1275 = vpop.permute.xlu0 %1274
        %1276 = vrot.lane.b32.xlu0 %v1113, 4
        %v1277 = vpop.permute.xlu0 %1276
        %1278 = vrot.lane.b32.xlu0 %v1125, 4
        %v1279 = vpop.permute.xlu0 %1278
        %1280 = vrot.lane.b32.xlu0 %v1137, 4
        %v1281 = vpop.permute.xlu0 %1280
        %1282 = vrot.lane.b32.xlu0 %v1149, 4
        %v1283 = vpop.permute.xlu0 %1282
        %1284 = vrot.lane.b32.xlu0 %v1161, 4
        %v1285 = vpop.permute.xlu0 %1284
        %1286 = vrot.lane.b32.xlu0 %v1173, 4
        %v1287 = vpop.permute.xlu0 %1286
        %1288 = vrot.lane.b32.xlu0 %v1185, 4
        %v1289 = vpop.permute.xlu0 %1288
        %1290 = vrot.lane.b32.xlu0 %v1197, 4
        %v1291 = vpop.permute.xlu0 %1290
        %1292 = vrot.lane.b32.xlu0 %v1209, 4
        %v1293 = vpop.permute.xlu0 %1292
        %1294 = vrot.lane.b32.xlu0 %v1221, 4
        %v1295 = vpop.permute.xlu0 %1294
        %1296 = vrot.lane.b32.xlu0 %v1233, 4
        %v1297 = vpop.permute.xlu0 %1296
        %1298 = vrot.lane.b32.xlu0 %v1245, 4
        %v1299 = vpop.permute.xlu0 %1298
        %1300 = vrot.lane.b32.xlu0 %v1257, 4
        %v1301 = vpop.permute.xlu0 %1300
        %1302 = vrot.lane.b32.xlu0 %v1269, 4
        %v1303 = vpop.permute.xlu0 %1302
        %vm1304 = vcmask 1046528
        %v1305 = vrot.slane %v997, 1
        %v1306 = vrot.slane %v1048, 1
        %v1307 = vsel %vm1304, %v1305, %v1306
        %v1308 = vrot.slane %v998, 1
        %v1309 = vrot.slane %v1049, 1
        %v1310 = vsel %vm1304, %v1308, %v1309
        %v1311 = vrot.slane %v999, 1
        %v1312 = vrot.slane %v1050, 1
        %v1313 = vsel %vm1304, %v1311, %v1312
        %v1314 = vrot.slane %v1000, 1
        %v1315 = vrot.slane %v1051, 1
        %v1316 = vsel %vm1304, %v1314, %v1315
        %v1317 = vrot.slane %v1001, 1
        %v1318 = vrot.slane %v1052, 1
        %v1319 = vsel %vm1304, %v1317, %v1318
        %v1320 = vrot.slane %v1002, 1
        %v1321 = vrot.slane %v1053, 1
        %v1322 = vsel %vm1304, %v1320, %v1321
        %v1323 = vrot.slane %v1003, 1
        %v1324 = vrot.slane %v1054, 1
        %v1325 = vsel %vm1304, %v1323, %v1324
        %v1326 = vrot.slane %v1004, 1
        %v1327 = vrot.slane %v1055, 1
        %v1328 = vsel %vm1304, %v1326, %v1327
        %v1329 = vrot.slane %v1005, 1
        %v1330 = vrot.slane %v1056, 1
        %v1331 = vsel %vm1304, %v1329, %v1330
        %v1332 = vrot.slane %v1006, 1
        %v1333 = vrot.slane %v1057, 1
        %v1334 = vsel %vm1304, %v1332, %v1333
        %v1335 = vrot.slane %v1007, 1
        %v1336 = vrot.slane %v1058, 1
        %v1337 = vsel %vm1304, %v1335, %v1336
        %v1338 = vrot.slane %v1008, 1
        %v1339 = vrot.slane %v1059, 1
        %v1340 = vsel %vm1304, %v1338, %v1339
        %v1341 = vrot.slane %v1009, 1
        %v1342 = vrot.slane %v1060, 1
        %v1343 = vsel %vm1304, %v1341, %v1342
        %v1344 = vrot.slane %v1010, 1
        %v1345 = vrot.slane %v1061, 1
        %v1346 = vsel %vm1304, %v1344, %v1345
        %v1347 = vrot.slane %v1011, 1
        %v1348 = vrot.slane %v1062, 1
        %v1349 = vsel %vm1304, %v1347, %v1348
        %v1350 = vrot.slane %v1012, 1
        %v1351 = vrot.slane %v1063, 1
        %v1352 = vsel %vm1304, %v1350, %v1351
        %v1353 = vrot.slane %v1013, 1
        %v1354 = vrot.slane %v1064, 1
        %v1355 = vsel %vm1304, %v1353, %v1354
        %1356 = vrot.lane.b32.xlu0 %v1307, 8
        %v1357 = vpop.permute.xlu0 %1356
        %1358 = vrot.lane.b32.xlu0 %v1310, 8
        %v1359 = vpop.permute.xlu0 %1358
        %1360 = vrot.lane.b32.xlu0 %v1313, 8
        %v1361 = vpop.permute.xlu0 %1360
        %1362 = vrot.lane.b32.xlu0 %v1316, 8
        %v1363 = vpop.permute.xlu0 %1362
        %1364 = vrot.lane.b32.xlu0 %v1319, 8
        %v1365 = vpop.permute.xlu0 %1364
        %1366 = vrot.lane.b32.xlu0 %v1322, 8
        %v1367 = vpop.permute.xlu0 %1366
        %1368 = vrot.lane.b32.xlu0 %v1325, 8
        %v1369 = vpop.permute.xlu0 %1368
        %1370 = vrot.lane.b32.xlu0 %v1328, 8
        %v1371 = vpop.permute.xlu0 %1370
        %1372 = vrot.lane.b32.xlu0 %v1331, 8
        %v1373 = vpop.permute.xlu0 %1372
        %1374 = vrot.lane.b32.xlu0 %v1334, 8
        %v1375 = vpop.permute.xlu0 %1374
        %1376 = vrot.lane.b32.xlu0 %v1337, 8
        %v1377 = vpop.permute.xlu0 %1376
        %1378 = vrot.lane.b32.xlu0 %v1340, 8
        %v1379 = vpop.permute.xlu0 %1378
        %1380 = vrot.lane.b32.xlu0 %v1343, 8
        %v1381 = vpop.permute.xlu0 %1380
        %1382 = vrot.lane.b32.xlu0 %v1346, 8
        %v1383 = vpop.permute.xlu0 %1382
        %1384 = vrot.lane.b32.xlu0 %v1349, 8
        %v1385 = vpop.permute.xlu0 %1384
        %1386 = vrot.lane.b32.xlu0 %v1352, 8
        %v1387 = vpop.permute.xlu0 %1386
        %1388 = vrot.lane.b32.xlu0 %v1355, 8
        %v1389 = vpop.permute.xlu0 %1388
        %vm1390 = vcmask 31744
        %v1392 = vsel %vm1390, %v997, %v1271
        %v1394 = vsel %vm1390, %v998, %v1273
        %v1396 = vsel %vm1390, %v999, %v1275
        %v1398 = vsel %vm1390, %v1000, %v1277
        %v1400 = vsel %vm1390, %v1001, %v1279
        %v1402 = vsel %vm1390, %v1002, %v1281
        %v1404 = vsel %vm1390, %v1003, %v1283
        %v1406 = vsel %vm1390, %v1004, %v1285
        %v1408 = vsel %vm1390, %v1005, %v1287
        %v1410 = vsel %vm1390, %v1006, %v1289
        %v1412 = vsel %vm1390, %v1007, %v1291
        %v1414 = vsel %vm1390, %v1008, %v1293
        %v1416 = vsel %vm1390, %v1009, %v1295
        %v1418 = vsel %vm1390, %v1010, %v1297
        %v1420 = vsel %vm1390, %v1011, %v1299
        %v1422 = vsel %vm1390, %v1012, %v1301
        %v1424 = vsel %vm1390, %v1013, %v1303
        %vm1425 = vcmask 64512
        %v1427 = vsel %vm1425, %v1392, %v1357
        %v1429 = vsel %vm1425, %v1394, %v1359
        %v1431 = vsel %vm1425, %v1396, %v1361
        %v1433 = vsel %vm1425, %v1398, %v1363
        %v1435 = vsel %vm1425, %v1400, %v1365
        %v1437 = vsel %vm1425, %v1402, %v1367
        %v1439 = vsel %vm1425, %v1404, %v1369
        %v1441 = vsel %vm1425, %v1406, %v1371
        %v1443 = vsel %vm1425, %v1408, %v1373
        %v1445 = vsel %vm1425, %v1410, %v1375
        %v1447 = vsel %vm1425, %v1412, %v1377
        %v1449 = vsel %vm1425, %v1414, %v1379
        %v1451 = vsel %vm1425, %v1416, %v1381
        %v1453 = vsel %vm1425, %v1418, %v1383
        %v1455 = vsel %vm1425, %v1420, %v1385
        %v1457 = vsel %vm1425, %v1422, %v1387
        %v1459 = vsel %vm1425, %v1424, %v1389
        %v1460 = vld [vmem:[#allocation8] sm:$0xf]
        %v1461 = vld [vmem:[#allocation8 + $0x4] sm:$0x3]
        %v1464 = vunpack.c.l.b16 %v1460
        %v1465 = vunpack.c.l.b16 %v1461
        %v1466 = vpack.c.b16 %v1465, %v1464
        %vm1467 = vcmask 97280
        %v1468 = vsel %vm1467, %v1427, 0
        %v1470 = vsel %vm1467, %v1429, 0
        %v1472 = vsel %vm1467, %v1431, 0
        %v1474 = vsel %vm1467, %v1433, 0
        %v1476 = vsel %vm1467, %v1435, 0
        %v1478 = vsel %vm1467, %v1437, 0
        %v1480 = vsel %vm1467, %v1439, 0
        %v1482 = vsel %vm1467, %v1441, 0
        %v1484 = vsel %vm1467, %v1443, 0
        %v1486 = vsel %vm1467, %v1445, 0
        %v1488 = vsel %vm1467, %v1447, 0
        %v1490 = vsel %vm1467, %v1449, 0
        %v1492 = vsel %vm1467, %v1451, 0
        %v1494 = vsel %vm1467, %v1453, 0
        %v1496 = vsel %vm1467, %v1455, 0
        %v1498 = vsel %vm1467, %v1457, 0
        %v1500 = vsel %vm1467, %v1459, 0
        %vm1502 = vcmask 1045504
        %v1504 = vsel %vm1502, %v1466, 0
        %1506 = vmatprep.subr.bf16.mxu0 0
        %1507 = vmatpush1.bf16.msra.mxu0 %v1504
        %1508 = vmatprep.subr.bf16.mxu0 0
        %1509 = vmatpush1.bf16.msra.mxu0 0
        %1510 = vmatprep.subr.bf16.mxu0 0
        %1511 = vmatpush1.bf16.msra.mxu0 0
        %1512 = vmatprep.subr.bf16.mxu0 0
        %1513 = vmatpush1.bf16.msra.mxu0 0
        %1514 = vmatprep.subr.bf16.mxu0 0
        %1515 = vmatpush1.bf16.msra.mxu0 0
        %1516 = vmatprep.subr.bf16.mxu0 0
        %1517 = vmatpush1.bf16.msra.mxu0 0
        %1518 = vmatprep.subr.bf16.mxu0 0
        %1519 = vmatpush1.bf16.msra.mxu0 0
        %1520 = vmatprep.subr.bf16.mxu0 0
        %1521 = vmatpush1.bf16.msra.mxu0 0
        %1522 = vmatprep.subr.bf16.mxu0 0
        %1523 = vmatpush1.bf16.msra.mxu0 0
        %1524 = vmatprep.subr.bf16.mxu0 0
        %1525 = vmatpush1.bf16.msra.mxu0 0
        %1526 = vmatprep.subr.bf16.mxu0 0
        %1527 = vmatpush1.bf16.msra.mxu0 0
        %1528 = vmatprep.subr.bf16.mxu0 0
        %1529 = vmatpush1.bf16.msra.mxu0 0
        %1530 = vmatprep.subr.bf16.mxu0 0
        %1531 = vmatpush1.bf16.msra.mxu0 0
        %1532 = vmatprep.subr.bf16.mxu0 0
        %1533 = vmatpush1.bf16.msra.mxu0 0
        %1534 = vmatprep.subr.bf16.mxu0 0
        %1535 = vmatpush1.bf16.msra.mxu0 0
        %1536 = vmatprep.subr.bf16.mxu0 0
        %1537 = vmatpush1.bf16.msra.mxu0 0
        %1538 = vmatprep.mubr.bf16.mxu0 0
        %1539 = vmatmul.mubr.bf16.gmra.mrb[0].mxu0 %v1468
        %v1540 = vpop.f32.mrb[0].mxu0
        %v1541 = vadd.f32 0.0, %v1540
        %v1542 = vpop.f32.mrb[0].mxu0
        %v1543 = vpop.f32.mrb[0].mxu0
        %v1544 = vadd.f32 0.0, %v1543
        %v1545 = vpop.f32.mrb[0].mxu0
        %1546 = vmatprep.mubr.bf16.mxu0 0
        %1547 = vmatmul.mubr.bf16.gmra.mrb[0].mxu0 %v1470
        %v1548 = vpop.f32.mrb[0].mxu0
        %v1549 = vadd.f32 0.0, %v1548
        %v1550 = vpop.f32.mrb[0].mxu0
        %v1551 = vpop.f32.mrb[0].mxu0
        %v1552 = vadd.f32 0.0, %v1551
        %v1553 = vpop.f32.mrb[0].mxu0
        %1554 = vmatprep.mubr.bf16.mxu0 0
        %1555 = vmatmul.mubr.bf16.gmra.mrb[0].mxu0 %v1472
        %v1556 = vpop.f32.mrb[0].mxu0
        %v1557 = vadd.f32 0.0, %v1556
        %v1558 = vpop.f32.mrb[0].mxu0
        %v1559 = vpop.f32.mrb[0].mxu0
        %v1560 = vadd.f32 0.0, %v1559
        %v1561 = vpop.f32.mrb[0].mxu0
        %1562 = vmatprep.mubr.bf16.mxu0 0
        %1563 = vmatmul.mubr.bf16.gmra.mrb[0].mxu0 %v1474
        %v1564 = vpop.f32.mrb[0].mxu0
        %v1565 = vadd.f32 0.0, %v1564
        %v1566 = vpop.f32.mrb[0].mxu0
        %v1567 = vpop.f32.mrb[0].mxu0
        %v1568 = vadd.f32 0.0, %v1567
        %v1569 = vpop.f32.mrb[0].mxu0
        %1570 = vmatprep.mubr.bf16.mxu0 0
        %1571 = vmatmul.mubr.bf16.gmra.mrb[0].mxu0 %v1476
        %v1572 = vpop.f32.mrb[0].mxu0
        %v1573 = vadd.f32 0.0, %v1572
        %v1574 = vpop.f32.mrb[0].mxu0
        %v1575 = vpop.f32.mrb[0].mxu0
        %v1576 = vadd.f32 0.0, %v1575
        %v1577 = vpop.f32.mrb[0].mxu0
        %1578 = vmatprep.mubr.bf16.mxu0 0
        %1579 = vmatmul.mubr.bf16.gmra.mrb[0].mxu0 %v1478
        %v1580 = vpop.f32.mrb[0].mxu0
        %v1581 = vadd.f32 0.0, %v1580
        %v1582 = vpop.f32.mrb[0].mxu0
        %v1583 = vpop.f32.mrb[0].mxu0
        %v1584 = vadd.f32 0.0, %v1583
        %v1585 = vpop.f32.mrb[0].mxu0
        %1586 = vmatprep.mubr.bf16.mxu0 0
        %1587 = vmatmul.mubr.bf16.gmra.mrb[0].mxu0 %v1480
        %v1588 = vpop.f32.mrb[0].mxu0
        %v1589 = vadd.f32 0.0, %v1588
        %v1590 = vpop.f32.mrb[0].mxu0
        %v1591 = vpop.f32.mrb[0].mxu0
        %v1592 = vadd.f32 0.0, %v1591
        %v1593 = vpop.f32.mrb[0].mxu0
        %1594 = vmatprep.mubr.bf16.mxu0 0
        %1595 = vmatmul.mubr.bf16.gmra.mrb[0].mxu0 %v1482
        %v1596 = vpop.f32.mrb[0].mxu0
        %v1597 = vadd.f32 0.0, %v1596
        %v1598 = vpop.f32.mrb[0].mxu0
        %v1599 = vpop.f32.mrb[0].mxu0
        %v1600 = vadd.f32 0.0, %v1599
        %v1601 = vpop.f32.mrb[0].mxu0
        %1602 = vmatprep.mubr.bf16.mxu0 0
        %1603 = vmatmul.mubr.bf16.gmra.mrb[0].mxu0 %v1484
        %v1604 = vpop.f32.mrb[0].mxu0
        %v1605 = vadd.f32 0.0, %v1604
        %v1606 = vpop.f32.mrb[0].mxu0
        %v1607 = vpop.f32.mrb[0].mxu0
        %v1608 = vadd.f32 0.0, %v1607
        %v1609 = vpop.f32.mrb[0].mxu0
        %1610 = vmatprep.mubr.bf16.mxu0 0
        %1611 = vmatmul.mubr.bf16.gmra.mrb[0].mxu0 %v1486
        %v1612 = vpop.f32.mrb[0].mxu0
        %v1613 = vadd.f32 0.0, %v1612
        %v1614 = vpop.f32.mrb[0].mxu0
        %v1615 = vpop.f32.mrb[0].mxu0
        %v1616 = vadd.f32 0.0, %v1615
        %v1617 = vpop.f32.mrb[0].mxu0
        %1618 = vmatprep.mubr.bf16.mxu0 0
        %1619 = vmatmul.mubr.bf16.gmra.mrb[0].mxu0 %v1488
        %v1620 = vpop.f32.mrb[0].mxu0
        %v1621 = vadd.f32 0.0, %v1620
        %v1622 = vpop.f32.mrb[0].mxu0
        %v1623 = vpop.f32.mrb[0].mxu0
        %v1624 = vadd.f32 0.0, %v1623
        %v1625 = vpop.f32.mrb[0].mxu0
        %1626 = vmatprep.mubr.bf16.mxu0 0
        %1627 = vmatmul.mubr.bf16.gmra.mrb[0].mxu0 %v1490
        %v1628 = vpop.f32.mrb[0].mxu0
        %v1629 = vadd.f32 0.0, %v1628
        %v1630 = vpop.f32.mrb[0].mxu0
        %v1631 = vpop.f32.mrb[0].mxu0
        %v1632 = vadd.f32 0.0, %v1631
        %v1633 = vpop.f32.mrb[0].mxu0
        %1634 = vmatprep.mubr.bf16.mxu0 0
        %1635 = vmatmul.mubr.bf16.gmra.mrb[0].mxu0 %v1492
        %v1636 = vpop.f32.mrb[0].mxu0
        %v1637 = vadd.f32 0.0, %v1636
        %v1638 = vpop.f32.mrb[0].mxu0
        %v1639 = vpop.f32.mrb[0].mxu0
        %v1640 = vadd.f32 0.0, %v1639
        %v1641 = vpop.f32.mrb[0].mxu0
        %1642 = vmatprep.mubr.bf16.mxu0 0
        %1643 = vmatmul.mubr.bf16.gmra.mrb[0].mxu0 %v1494
        %v1644 = vpop.f32.mrb[0].mxu0
        %v1645 = vadd.f32 0.0, %v1644
        %v1646 = vpop.f32.mrb[0].mxu0
        %v1647 = vpop.f32.mrb[0].mxu0
        %v1648 = vadd.f32 0.0, %v1647
        %v1649 = vpop.f32.mrb[0].mxu0
        %1650 = vmatprep.mubr.bf16.mxu0 0
        %1651 = vmatmul.mubr.bf16.gmra.mrb[0].mxu0 %v1496
        %v1652 = vpop.f32.mrb[0].mxu0
        %v1653 = vadd.f32 0.0, %v1652
        %v1654 = vpop.f32.mrb[0].mxu0
        %v1655 = vpop.f32.mrb[0].mxu0
        %v1656 = vadd.f32 0.0, %v1655
        %v1657 = vpop.f32.mrb[0].mxu0
        %1658 = vmatprep.mubr.bf16.mxu0 0
        %1659 = vmatmul.mubr.bf16.gmra.mrb[0].mxu0 %v1498
        %v1660 = vpop.f32.mrb[0].mxu0
        %v1661 = vadd.f32 0.0, %v1660
        %v1662 = vpop.f32.mrb[0].mxu0
        %v1663 = vpop.f32.mrb[0].mxu0
        %v1664 = vadd.f32 0.0, %v1663
        %v1665 = vpop.f32.mrb[0].mxu0
        %1666 = vmatprep.mubr.bf16.mxu0 0
        %1667 = vmatmul.mubr.bf16.gmra.mrb[0].mxu0 %v1500
        %v1668 = vpop.f32.mrb[0].mxu0
        %v1669 = vadd.f32 0.0, %v1668
        %v1670 = vpop.f32.mrb[0].mxu0
        %v1671 = vpop.f32.mrb[0].mxu0
        %v1672 = vadd.f32 0.0, %v1671
        %v1673 = vpop.f32.mrb[0].mxu0
        %1674 = vdwg.mxu0
        %v1676 = vlaneseq
        %v1677 = vshrl.u32 %v1676, 7
        %v1678 = vsub.s32 0, %v1677
        %v1679 = vrot.slane %v928, %v1678
        %v1681 = vadd.f32 %v1679, %v1541
        %v1682 = vadd.f32 %v1679, %v1544
        %v1683 = vadd.f32 %v1679, %v1549
        %v1684 = vadd.f32 %v1679, %v1552
        %v1685 = vadd.f32 %v1679, %v1557
        %v1686 = vadd.f32 %v1679, %v1560
        %v1687 = vadd.f32 %v1679, %v1565
        %v1688 = vadd.f32 %v1679, %v1568
        %v1689 = vadd.f32 %v1679, %v1573
        %v1690 = vadd.f32 %v1679, %v1576
        %v1691 = vadd.f32 %v1679, %v1581
        %v1692 = vadd.f32 %v1679, %v1584
        %v1693 = vadd.f32 %v1679, %v1589
        %v1694 = vadd.f32 %v1679, %v1592
        %v1695 = vadd.f32 %v1679, %v1597
        %v1696 = vadd.f32 %v1679, %v1600
        %v1697 = vadd.f32 %v1679, %v1605
        %v1698 = vadd.f32 %v1679, %v1608
        %v1699 = vadd.f32 %v1679, %v1613
        %v1700 = vadd.f32 %v1679, %v1616
        %v1701 = vadd.f32 %v1679, %v1621
        %v1702 = vadd.f32 %v1679, %v1624
        %v1703 = vadd.f32 %v1679, %v1629
        %v1704 = vadd.f32 %v1679, %v1632
        %v1705 = vadd.f32 %v1679, %v1637
        %v1706 = vadd.f32 %v1679, %v1640
        %v1707 = vadd.f32 %v1679, %v1645
        %v1708 = vadd.f32 %v1679, %v1648
        %v1709 = vadd.f32 %v1679, %v1653
        %v1710 = vadd.f32 %v1679, %v1656
        %v1711 = vadd.f32 %v1679, %v1661
        %v1712 = vadd.f32 %v1679, %v1664
        %v1713 = vadd.f32 %v1679, %v1669
        %v1714 = vadd.f32 %v1679, %v1672
        %v1717 = vunpack.c.l.b16 %v922
        %v1718 = vunpack.c.l.b16 %v923
        %v1719 = vpack.c.b16 %v1718, %v1717
        %v1721 = vunpack.c.l.b16 %v924
        %v1722 = vpack.c.b16 %v1721, %v1721
        %v1724 = vshrl.u32 %v1719, 16
        %v1726 = vshll.u32 %v1719, 16
        %v1728 = vrot.slane %v1726, 1
        %v1729 = vor.u32 %v1724, %v1728
        %v1731 = vshll.u32 %v1722, 16
        %v1733 = vrot.slane %v1731, 1
        %v1734 = vsel %vm1065, %v1729, %v1733
        %1735 = vrot.lane.b32.xlu0 %v1734, 4
        %v1736 = vpop.permute.xlu0 %1735
        %v1737 = vrot.slane %v1719, 1
        %v1738 = vrot.slane %v1722, 1
        %v1739 = vsel %vm1304, %v1737, %v1738
        %1740 = vrot.lane.b32.xlu0 %v1739, 8
        %v1741 = vpop.permute.xlu0 %1740
        %v1743 = vsel %vm1390, %v1719, %v1736
        %v1745 = vsel %vm1425, %v1743, %v1741
        %s1746 = scalar_lea.vmem [#allocation8], 8
        %v1747 = vld [vmem:[%s1746] sm:$0xf]
        %v1748 = vld [vmem:[%s1746 + $0x4] sm:$0x3]
        %v1751 = vunpack.c.l.b16 %v1747
        %v1752 = vunpack.c.l.b16 %v1748
        %v1753 = vpack.c.b16 %v1752, %v1751
        %v1754 = vsel %vm1467, %v1745, 0
        %v1757 = vsel %vm1502, %v1753, 0
        %1759 = vmatprep.subr.bf16.mxu0 0
        %1760 = vmatpush1.bf16.msra.mxu0 %v1757
        %1761 = vmatprep.subr.bf16.mxu0 0
        %1762 = vmatpush1.bf16.msra.mxu0 0
        %1763 = vmatprep.subr.bf16.mxu0 0
        %1764 = vmatpush1.bf16.msra.mxu0 0
        %1765 = vmatprep.subr.bf16.mxu0 0
        %1766 = vmatpush1.bf16.msra.mxu0 0
        %1767 = vmatprep.subr.bf16.mxu0 0
        %1768 = vmatpush1.bf16.msra.mxu0 0
        %1769 = vmatprep.subr.bf16.mxu0 0
        %1770 = vmatpush1.bf16.msra.mxu0 0
        %1771 = vmatprep.subr.bf16.mxu0 0
        %1772 = vmatpush1.bf16.msra.mxu0 0
        %1773 = vmatprep.subr.bf16.mxu0 0
        %1774 = vmatpush1.bf16.msra.mxu0 0
        %1775 = vmatprep.subr.bf16.mxu0 0
        %1776 = vmatpush1.bf16.msra.mxu0 0
        %1777 = vmatprep.subr.bf16.mxu0 0
        %1778 = vmatpush1.bf16.msra.mxu0 0
        %1779 = vmatprep.subr.bf16.mxu0 0
        %1780 = vmatpush1.bf16.msra.mxu0 0
        %1781 = vmatprep.subr.bf16.mxu0 0
        %1782 = vmatpush1.bf16.msra.mxu0 0
        %1783 = vmatprep.subr.bf16.mxu0 0
        %1784 = vmatpush1.bf16.msra.mxu0 0
        %1785 = vmatprep.subr.bf16.mxu0 0
        %1786 = vmatpush1.bf16.msra.mxu0 0
        %1787 = vmatprep.subr.bf16.mxu0 0
        %1788 = vmatpush1.bf16.msra.mxu0 0
        %1789 = vmatprep.subr.bf16.mxu0 0
        %1790 = vmatpush1.bf16.msra.mxu0 0
        %1791 = vmatprep.mubr.bf16.mxu0 0
        %1792 = vmatmul.mubr.bf16.gmra.mrb[0].mxu0 %v1470
        %v1793 = vpop.f32.mrb[0].mxu0
        %v1794 = vadd.f32 0.0, %v1793
        %v1795 = vpop.f32.mrb[0].mxu0
        %v1796 = vpop.f32.mrb[0].mxu0
        %v1797 = vadd.f32 0.0, %v1796
        %v1798 = vpop.f32.mrb[0].mxu0
        %1799 = vmatprep.mubr.bf16.mxu0 0
        %1800 = vmatmul.mubr.bf16.gmra.mrb[0].mxu0 %v1472
        %v1801 = vpop.f32.mrb[0].mxu0
        %v1802 = vadd.f32 0.0, %v1801
        %v1803 = vpop.f32.mrb[0].mxu0
        %v1804 = vpop.f32.mrb[0].mxu0
        %v1805 = vadd.f32 0.0, %v1804
        %v1806 = vpop.f32.mrb[0].mxu0
        %1807 = vmatprep.mubr.bf16.mxu0 0
        %1808 = vmatmul.mubr.bf16.gmra.mrb[0].mxu0 %v1474
        %v1809 = vpop.f32.mrb[0].mxu0
        %v1810 = vadd.f32 0.0, %v1809
        %v1811 = vpop.f32.mrb[0].mxu0
        %v1812 = vpop.f32.mrb[0].mxu0
        %v1813 = vadd.f32 0.0, %v1812
        %v1814 = vpop.f32.mrb[0].mxu0
        %1815 = vmatprep.mubr.bf16.mxu0 0
        %1816 = vmatmul.mubr.bf16.gmra.mrb[0].mxu0 %v1476
        %v1817 = vpop.f32.mrb[0].mxu0
        %v1818 = vadd.f32 0.0, %v1817
        %v1819 = vpop.f32.mrb[0].mxu0
        %v1820 = vpop.f32.mrb[0].mxu0
        %v1821 = vadd.f32 0.0, %v1820
        %v1822 = vpop.f32.mrb[0].mxu0
        %1823 = vmatprep.mubr.bf16.mxu0 0
        %1824 = vmatmul.mubr.bf16.gmra.mrb[0].mxu0 %v1478
        %v1825 = vpop.f32.mrb[0].mxu0
        %v1826 = vadd.f32 0.0, %v1825
        %v1827 = vpop.f32.mrb[0].mxu0
        %v1828 = vpop.f32.mrb[0].mxu0
        %v1829 = vadd.f32 0.0, %v1828
        %v1830 = vpop.f32.mrb[0].mxu0
        %1831 = vmatprep.mubr.bf16.mxu0 0
        %1832 = vmatmul.mubr.bf16.gmra.mrb[0].mxu0 %v1480
        %v1833 = vpop.f32.mrb[0].mxu0
        %v1834 = vadd.f32 0.0, %v1833
        %v1835 = vpop.f32.mrb[0].mxu0
        %v1836 = vpop.f32.mrb[0].mxu0
        %v1837 = vadd.f32 0.0, %v1836
        %v1838 = vpop.f32.mrb[0].mxu0
        %1839 = vmatprep.mubr.bf16.mxu0 0
        %1840 = vmatmul.mubr.bf16.gmra.mrb[0].mxu0 %v1482
        %v1841 = vpop.f32.mrb[0].mxu0
        %v1842 = vadd.f32 0.0, %v1841
        %v1843 = vpop.f32.mrb[0].mxu0
        %v1844 = vpop.f32.mrb[0].mxu0
        %v1845 = vadd.f32 0.0, %v1844
        %v1846 = vpop.f32.mrb[0].mxu0
        %1847 = vmatprep.mubr.bf16.mxu0 0
        %1848 = vmatmul.mubr.bf16.gmra.mrb[0].mxu0 %v1484
        %v1849 = vpop.f32.mrb[0].mxu0
        %v1850 = vadd.f32 0.0, %v1849
        %v1851 = vpop.f32.mrb[0].mxu0
        %v1852 = vpop.f32.mrb[0].mxu0
        %v1853 = vadd.f32 0.0, %v1852
        %v1854 = vpop.f32.mrb[0].mxu0
        %1855 = vmatprep.mubr.bf16.mxu0 0
        %1856 = vmatmul.mubr.bf16.gmra.mrb[0].mxu0 %v1486
        %v1857 = vpop.f32.mrb[0].mxu0
        %v1858 = vadd.f32 0.0, %v1857
        %v1859 = vpop.f32.mrb[0].mxu0
        %v1860 = vpop.f32.mrb[0].mxu0
        %v1861 = vadd.f32 0.0, %v1860
        %v1862 = vpop.f32.mrb[0].mxu0
        %1863 = vmatprep.mubr.bf16.mxu0 0
        %1864 = vmatmul.mubr.bf16.gmra.mrb[0].mxu0 %v1488
        %v1865 = vpop.f32.mrb[0].mxu0
        %v1866 = vadd.f32 0.0, %v1865
        %v1867 = vpop.f32.mrb[0].mxu0
        %v1868 = vpop.f32.mrb[0].mxu0
        %v1869 = vadd.f32 0.0, %v1868
        %v1870 = vpop.f32.mrb[0].mxu0
        %1871 = vmatprep.mubr.bf16.mxu0 0
        %1872 = vmatmul.mubr.bf16.gmra.mrb[0].mxu0 %v1490
        %v1873 = vpop.f32.mrb[0].mxu0
        %v1874 = vadd.f32 0.0, %v1873
        %v1875 = vpop.f32.mrb[0].mxu0
        %v1876 = vpop.f32.mrb[0].mxu0
        %v1877 = vadd.f32 0.0, %v1876
        %v1878 = vpop.f32.mrb[0].mxu0
        %1879 = vmatprep.mubr.bf16.mxu0 0
        %1880 = vmatmul.mubr.bf16.gmra.mrb[0].mxu0 %v1492
        %v1881 = vpop.f32.mrb[0].mxu0
        %v1882 = vadd.f32 0.0, %v1881
        %v1883 = vpop.f32.mrb[0].mxu0
        %v1884 = vpop.f32.mrb[0].mxu0
        %v1885 = vadd.f32 0.0, %v1884
        %v1886 = vpop.f32.mrb[0].mxu0
        %1887 = vmatprep.mubr.bf16.mxu0 0
        %1888 = vmatmul.mubr.bf16.gmra.mrb[0].mxu0 %v1494
        %v1889 = vpop.f32.mrb[0].mxu0
        %v1890 = vadd.f32 0.0, %v1889
        %v1891 = vpop.f32.mrb[0].mxu0
        %v1892 = vpop.f32.mrb[0].mxu0
        %v1893 = vadd.f32 0.0, %v1892
        %v1894 = vpop.f32.mrb[0].mxu0
        %1895 = vmatprep.mubr.bf16.mxu0 0
        %1896 = vmatmul.mubr.bf16.gmra.mrb[0].mxu0 %v1496
        %v1897 = vpop.f32.mrb[0].mxu0
        %v1898 = vadd.f32 0.0, %v1897
        %v1899 = vpop.f32.mrb[0].mxu0
        %v1900 = vpop.f32.mrb[0].mxu0
        %v1901 = vadd.f32 0.0, %v1900
        %v1902 = vpop.f32.mrb[0].mxu0
        %1903 = vmatprep.mubr.bf16.mxu0 0
        %1904 = vmatmul.mubr.bf16.gmra.mrb[0].mxu0 %v1498
        %v1905 = vpop.f32.mrb[0].mxu0
        %v1906 = vadd.f32 0.0, %v1905
        %v1907 = vpop.f32.mrb[0].mxu0
        %v1908 = vpop.f32.mrb[0].mxu0
        %v1909 = vadd.f32 0.0, %v1908
        %v1910 = vpop.f32.mrb[0].mxu0
        %1911 = vmatprep.mubr.bf16.mxu0 0
        %1912 = vmatmul.mubr.bf16.gmra.mrb[0].mxu0 %v1500
        %v1913 = vpop.f32.mrb[0].mxu0
        %v1914 = vadd.f32 0.0, %v1913
        %v1915 = vpop.f32.mrb[0].mxu0
        %v1916 = vpop.f32.mrb[0].mxu0
        %v1917 = vadd.f32 0.0, %v1916
        %v1918 = vpop.f32.mrb[0].mxu0
        %1919 = vmatprep.mubr.bf16.mxu0 0
        %1920 = vmatmul.mubr.bf16.gmra.mrb[0].mxu0 %v1754
        %v1921 = vpop.f32.mrb[0].mxu0
        %v1922 = vadd.f32 0.0, %v1921
        %v1923 = vpop.f32.mrb[0].mxu0
        %v1924 = vpop.f32.mrb[0].mxu0
        %v1925 = vadd.f32 0.0, %v1924
        %v1926 = vpop.f32.mrb[0].mxu0
        %1927 = vdwg.mxu0
        %v1928 = vadd.f32 %v1681, %v1794
        %v1929 = vadd.f32 %v1682, %v1797
        %v1930 = vadd.f32 %v1683, %v1802
        %v1931 = vadd.f32 %v1684, %v1805
        %v1932 = vadd.f32 %v1685, %v1810
        %v1933 = vadd.f32 %v1686, %v1813
        %v1934 = vadd.f32 %v1687, %v1818
        %v1935 = vadd.f32 %v1688, %v1821
        %v1936 = vadd.f32 %v1689, %v1826
        %v1937 = vadd.f32 %v1690, %v1829
        %v1938 = vadd.f32 %v1691, %v1834
        %v1939 = vadd.f32 %v1692, %v1837
        %v1940 = vadd.f32 %v1693, %v1842
        %v1941 = vadd.f32 %v1694, %v1845
        %v1942 = vadd.f32 %v1695, %v1850
        %v1943 = vadd.f32 %v1696, %v1853
        %v1944 = vadd.f32 %v1697, %v1858
        %v1945 = vadd.f32 %v1698, %v1861
        %v1946 = vadd.f32 %v1699, %v1866
        %v1947 = vadd.f32 %v1700, %v1869
        %v1948 = vadd.f32 %v1701, %v1874
        %v1949 = vadd.f32 %v1702, %v1877
        %v1950 = vadd.f32 %v1703, %v1882
        %v1951 = vadd.f32 %v1704, %v1885
        %v1952 = vadd.f32 %v1705, %v1890
        %v1953 = vadd.f32 %v1706, %v1893
        %v1954 = vadd.f32 %v1707, %v1898
        %v1955 = vadd.f32 %v1708, %v1901
        %v1956 = vadd.f32 %v1709, %v1906
        %v1957 = vadd.f32 %v1710, %v1909
        %v1958 = vadd.f32 %v1711, %v1914
        %v1959 = vadd.f32 %v1712, %v1917
        %v1960 = vadd.f32 %v1713, %v1922
        %v1961 = vadd.f32 %v1714, %v1925
        %v1964 = vunpack.c.l.b16 %v925
        %v1965 = vunpack.c.l.b16 %v926
        %v1966 = vpack.c.b16 %v1965, %v1964
        %v1968 = vunpack.c.l.b16 %v927
        %v1969 = vpack.c.b16 %v1968, %v1968
        %v1971 = vshrl.u32 %v1966, 16
        %v1973 = vshll.u32 %v1966, 16
        %v1975 = vrot.slane %v1973, 1
        %v1976 = vor.u32 %v1971, %v1975
        %v1978 = vshll.u32 %v1969, 16
        %v1980 = vrot.slane %v1978, 1
        %v1981 = vsel %vm1065, %v1976, %v1980
        %1982 = vrot.lane.b32.xlu0 %v1981, 4
        %v1983 = vpop.permute.xlu0 %1982
        %v1984 = vrot.slane %v1966, 1
        %v1985 = vrot.slane %v1969, 1
        %v1986 = vsel %vm1304, %v1984, %v1985
        %1987 = vrot.lane.b32.xlu0 %v1986, 8
        %v1988 = vpop.permute.xlu0 %1987
        %v1990 = vsel %vm1390, %v1966, %v1983
        %v1992 = vsel %vm1425, %v1990, %v1988
        %s1993 = scalar_lea.vmem [#allocation8], 16
        %v1994 = vld [vmem:[%s1993] sm:$0xf]
        %v1995 = vld [vmem:[%s1993 + $0x4] sm:$0x3]
        %v1998 = vunpack.c.l.b16 %v1994
        %v1999 = vunpack.c.l.b16 %v1995
        %v2000 = vpack.c.b16 %v1999, %v1998
        %v2001 = vsel %vm1467, %v1992, 0
        %v2004 = vsel %vm1502, %v2000, 0
        %2006 = vmatprep.subr.bf16.mxu0 0
        %2007 = vmatpush1.bf16.msra.mxu0 %v2004
        %2008 = vmatprep.subr.bf16.mxu0 0
        %2009 = vmatpush1.bf16.msra.mxu0 0
        %2010 = vmatprep.subr.bf16.mxu0 0
        %2011 = vmatpush1.bf16.msra.mxu0 0
        %2012 = vmatprep.subr.bf16.mxu0 0
        %2013 = vmatpush1.bf16.msra.mxu0 0
        %2014 = vmatprep.subr.bf16.mxu0 0
        %2015 = vmatpush1.bf16.msra.mxu0 0
        %2016 = vmatprep.subr.bf16.mxu0 0
        %2017 = vmatpush1.bf16.msra.mxu0 0
        %2018 = vmatprep.subr.bf16.mxu0 0
        %2019 = vmatpush1.bf16.msra.mxu0 0
        %2020 = vmatprep.subr.bf16.mxu0 0
        %2021 = vmatpush1.bf16.msra.mxu0 0
        %2022 = vmatprep.subr.bf16.mxu0 0
        %2023 = vmatpush1.bf16.msra.mxu0 0
        %2024 = vmatprep.subr.bf16.mxu0 0
        %2025 = vmatpush1.bf16.msra.mxu0 0
        %2026 = vmatprep.subr.bf16.mxu0 0
        %2027 = vmatpush1.bf16.msra.mxu0 0
        %2028 = vmatprep.subr.bf16.mxu0 0
        %2029 = vmatpush1.bf16.msra.mxu0 0
        %2030 = vmatprep.subr.bf16.mxu0 0
        %2031 = vmatpush1.bf16.msra.mxu0 0
        %2032 = vmatprep.subr.bf16.mxu0 0
        %2033 = vmatpush1.bf16.msra.mxu0 0
        %2034 = vmatprep.subr.bf16.mxu0 0
        %2035 = vmatpush1.bf16.msra.mxu0 0
        %2036 = vmatprep.subr.bf16.mxu0 0
        %2037 = vmatpush1.bf16.msra.mxu0 0
        %2038 = vmatprep.mubr.bf16.mxu0 0
        %2039 = vmatmul.mubr.bf16.gmra.mrb[0].mxu0 %v1472
        %v2040 = vpop.f32.mrb[0].mxu0
        %v2041 = vadd.f32 0.0, %v2040
        %v2042 = vpop.f32.mrb[0].mxu0
        %v2043 = vpop.f32.mrb[0].mxu0
        %v2044 = vadd.f32 0.0, %v2043
        %v2045 = vpop.f32.mrb[0].mxu0
        %2046 = vmatprep.mubr.bf16.mxu0 0
        %2047 = vmatmul.mubr.bf16.gmra.mrb[0].mxu0 %v1474
        %v2048 = vpop.f32.mrb[0].mxu0
        %v2049 = vadd.f32 0.0, %v2048
        %v2050 = vpop.f32.mrb[0].mxu0
        %v2051 = vpop.f32.mrb[0].mxu0
        %v2052 = vadd.f32 0.0, %v2051
        %v2053 = vpop.f32.mrb[0].mxu0
        %2054 = vmatprep.mubr.bf16.mxu0 0
        %2055 = vmatmul.mubr.bf16.gmra.mrb[0].mxu0 %v1476
        %v2056 = vpop.f32.mrb[0].mxu0
        %v2057 = vadd.f32 0.0, %v2056
        %v2058 = vpop.f32.mrb[0].mxu0
        %v2059 = vpop.f32.mrb[0].mxu0
        %v2060 = vadd.f32 0.0, %v2059
        %v2061 = vpop.f32.mrb[0].mxu0
        %2062 = vmatprep.mubr.bf16.mxu0 0
        %2063 = vmatmul.mubr.bf16.gmra.mrb[0].mxu0 %v1478
        %v2064 = vpop.f32.mrb[0].mxu0
        %v2065 = vadd.f32 0.0, %v2064
        %v2066 = vpop.f32.mrb[0].mxu0
        %v2067 = vpop.f32.mrb[0].mxu0
        %v2068 = vadd.f32 0.0, %v2067
        %v2069 = vpop.f32.mrb[0].mxu0
        %2070 = vmatprep.mubr.bf16.mxu0 0
        %2071 = vmatmul.mubr.bf16.gmra.mrb[0].mxu0 %v1480
        %v2072 = vpop.f32.mrb[0].mxu0
        %v2073 = vadd.f32 0.0, %v2072
        %v2074 = vpop.f32.mrb[0].mxu0
        %v2075 = vpop.f32.mrb[0].mxu0
        %v2076 = vadd.f32 0.0, %v2075
        %v2077 = vpop.f32.mrb[0].mxu0
        %2078 = vmatprep.mubr.bf16.mxu0 0
        %2079 = vmatmul.mubr.bf16.gmra.mrb[0].mxu0 %v1482
        %v2080 = vpop.f32.mrb[0].mxu0
        %v2081 = vadd.f32 0.0, %v2080
        %v2082 = vpop.f32.mrb[0].mxu0
        %v2083 = vpop.f32.mrb[0].mxu0
        %v2084 = vadd.f32 0.0, %v2083
        %v2085 = vpop.f32.mrb[0].mxu0
        %2086 = vmatprep.mubr.bf16.mxu0 0
        %2087 = vmatmul.mubr.bf16.gmra.mrb[0].mxu0 %v1484
        %v2088 = vpop.f32.mrb[0].mxu0
        %v2089 = vadd.f32 0.0, %v2088
        %v2090 = vpop.f32.mrb[0].mxu0
        %v2091 = vpop.f32.mrb[0].mxu0
        %v2092 = vadd.f32 0.0, %v2091
        %v2093 = vpop.f32.mrb[0].mxu0
        %2094 = vmatprep.mubr.bf16.mxu0 0
        %2095 = vmatmul.mubr.bf16.gmra.mrb[0].mxu0 %v1486
        %v2096 = vpop.f32.mrb[0].mxu0
        %v2097 = vadd.f32 0.0, %v2096
        %v2098 = vpop.f32.mrb[0].mxu0
        %v2099 = vpop.f32.mrb[0].mxu0
        %v2100 = vadd.f32 0.0, %v2099
        %v2101 = vpop.f32.mrb[0].mxu0
        %2102 = vmatprep.mubr.bf16.mxu0 0
        %2103 = vmatmul.mubr.bf16.gmra.mrb[0].mxu0 %v1488
        %v2104 = vpop.f32.mrb[0].mxu0
        %v2105 = vadd.f32 0.0, %v2104
        %v2106 = vpop.f32.mrb[0].mxu0
        %v2107 = vpop.f32.mrb[0].mxu0
        %v2108 = vadd.f32 0.0, %v2107
        %v2109 = vpop.f32.mrb[0].mxu0
        %2110 = vmatprep.mubr.bf16.mxu0 0
        %2111 = vmatmul.mubr.bf16.gmra.mrb[0].mxu0 %v1490
        %v2112 = vpop.f32.mrb[0].mxu0
        %v2113 = vadd.f32 0.0, %v2112
        %v2114 = vpop.f32.mrb[0].mxu0
        %v2115 = vpop.f32.mrb[0].mxu0
        %v2116 = vadd.f32 0.0, %v2115
        %v2117 = vpop.f32.mrb[0].mxu0
        %2118 = vmatprep.mubr.bf16.mxu0 0
        %2119 = vmatmul.mubr.bf16.gmra.mrb[0].mxu0 %v1492
        %v2120 = vpop.f32.mrb[0].mxu0
        %v2121 = vadd.f32 0.0, %v2120
        %v2122 = vpop.f32.mrb[0].mxu0
        %v2123 = vpop.f32.mrb[0].mxu0
        %v2124 = vadd.f32 0.0, %v2123
        %v2125 = vpop.f32.mrb[0].mxu0
        %2126 = vmatprep.mubr.bf16.mxu0 0
        %2127 = vmatmul.mubr.bf16.gmra.mrb[0].mxu0 %v1494
        %v2128 = vpop.f32.mrb[0].mxu0
        %v2129 = vadd.f32 0.0, %v2128
        %v2130 = vpop.f32.mrb[0].mxu0
        %v2131 = vpop.f32.mrb[0].mxu0
        %v2132 = vadd.f32 0.0, %v2131
        %v2133 = vpop.f32.mrb[0].mxu0
        %2134 = vmatprep.mubr.bf16.mxu0 0
        %2135 = vmatmul.mubr.bf16.gmra.mrb[0].mxu0 %v1496
        %v2136 = vpop.f32.mrb[0].mxu0
        %v2137 = vadd.f32 0.0, %v2136
        %v2138 = vpop.f32.mrb[0].mxu0
        %v2139 = vpop.f32.mrb[0].mxu0
        %v2140 = vadd.f32 0.0, %v2139
        %v2141 = vpop.f32.mrb[0].mxu0
        %2142 = vmatprep.mubr.bf16.mxu0 0
        %2143 = vmatmul.mubr.bf16.gmra.mrb[0].mxu0 %v1498
        %v2144 = vpop.f32.mrb[0].mxu0
        %v2145 = vadd.f32 0.0, %v2144
        %v2146 = vpop.f32.mrb[0].mxu0
        %v2147 = vpop.f32.mrb[0].mxu0
        %v2148 = vadd.f32 0.0, %v2147
        %v2149 = vpop.f32.mrb[0].mxu0
        %2150 = vmatprep.mubr.bf16.mxu0 0
        %2151 = vmatmul.mubr.bf16.gmra.mrb[0].mxu0 %v1500
        %v2152 = vpop.f32.mrb[0].mxu0
        %v2153 = vadd.f32 0.0, %v2152
        %v2154 = vpop.f32.mrb[0].mxu0
        %v2155 = vpop.f32.mrb[0].mxu0
        %v2156 = vadd.f32 0.0, %v2155
        %v2157 = vpop.f32.mrb[0].mxu0
        %2158 = vmatprep.mubr.bf16.mxu0 0
        %2159 = vmatmul.mubr.bf16.gmra.mrb[0].mxu0 %v1754
        %v2160 = vpop.f32.mrb[0].mxu0
        %v2161 = vadd.f32 0.0, %v2160
        %v2162 = vpop.f32.mrb[0].mxu0
        %v2163 = vpop.f32.mrb[0].mxu0
        %v2164 = vadd.f32 0.0, %v2163
        %v2165 = vpop.f32.mrb[0].mxu0
        %2166 = vmatprep.mubr.bf16.mxu0 0
        %2167 = vmatmul.mubr.bf16.gmra.mrb[0].mxu0 %v2001
        %v2168 = vpop.f32.mrb[0].mxu0
        %v2169 = vadd.f32 0.0, %v2168
        %v2170 = vpop.f32.mrb[0].mxu0
        %v2171 = vpop.f32.mrb[0].mxu0
        %v2172 = vadd.f32 0.0, %v2171
        %v2173 = vpop.f32.mrb[0].mxu0
        %2174 = vdwg.mxu0
        %v2175 = vadd.f32 %v1928, %v2041
        %v2176 = vadd.f32 %v1929, %v2044
        %v2177 = vadd.f32 %v1930, %v2049
        %v2178 = vadd.f32 %v1931, %v2052
        %v2179 = vadd.f32 %v1932, %v2057
        %v2180 = vadd.f32 %v1933, %v2060
        %v2181 = vadd.f32 %v1934, %v2065
        %v2182 = vadd.f32 %v1935, %v2068
        %v2183 = vadd.f32 %v1936, %v2073
        %v2184 = vadd.f32 %v1937, %v2076
        %v2185 = vadd.f32 %v1938, %v2081
        %v2186 = vadd.f32 %v1939, %v2084
        %v2187 = vadd.f32 %v1940, %v2089
        %v2188 = vadd.f32 %v1941, %v2092
        %v2189 = vadd.f32 %v1942, %v2097
        %v2190 = vadd.f32 %v1943, %v2100
        %v2191 = vadd.f32 %v1944, %v2105
        %v2192 = vadd.f32 %v1945, %v2108
        %v2193 = vadd.f32 %v1946, %v2113
        %v2194 = vadd.f32 %v1947, %v2116
        %v2195 = vadd.f32 %v1948, %v2121
        %v2196 = vadd.f32 %v1949, %v2124
        %v2197 = vadd.f32 %v1950, %v2129
        %v2198 = vadd.f32 %v1951, %v2132
        %v2199 = vadd.f32 %v1952, %v2137
        %v2200 = vadd.f32 %v1953, %v2140
        %v2201 = vadd.f32 %v1954, %v2145
        %v2202 = vadd.f32 %v1955, %v2148
        %v2203 = vadd.f32 %v1956, %v2153
        %v2204 = vadd.f32 %v1957, %v2156
        %v2205 = vadd.f32 %v1958, %v2161
        %v2206 = vadd.f32 %v1959, %v2164
        %v2207 = vadd.f32 %v1960, %v2169
        %v2208 = vadd.f32 %v1961, %v2172
        %s2209 = ssub.s32 %s867, 1
        %v2210 = vstv %s2209
        %v2211 = vadd.s32 %v2210, 1
        %v2212 = vadd.s32 %v2210, 2
        %v2213 = vadd.s32 %v2210, 3
        %v2214 = vadd.s32 %v2210, 4
        %v2215 = vadd.s32 %v2210, 5
        %v2216 = vadd.s32 %v2210, 6
        %v2217 = vadd.s32 %v2210, 7
        %v2218 = vadd.s32 %v2210, 8
        %v2219 = vadd.s32 %v2210, 9
        %v2220 = vadd.s32 %v2210, 10
        %v2221 = vadd.s32 %v2210, 11
        %v2222 = vadd.s32 %v2210, 12
        %v2223 = vadd.s32 %v2210, 13
        %v2224 = vadd.s32 %v2210, 14
        %v2225 = vadd.s32 %v2210, 15
        %v2226 = vadd.s32 %v2210, 16
        %vm2227 = vcmp.ge.s32.totalorder %v2210, 0
        %vm2228 = vcmp.ge.s32.totalorder %v2211, 0
        %vm2229 = vcmp.ge.s32.totalorder %v2212, 0
        %vm2230 = vcmp.ge.s32.totalorder %v2213, 0
        %vm2231 = vcmp.ge.s32.totalorder %v2214, 0
        %vm2232 = vcmp.ge.s32.totalorder %v2215, 0
        %vm2233 = vcmp.ge.s32.totalorder %v2216, 0
        %vm2234 = vcmp.ge.s32.totalorder %v2217, 0
        %vm2235 = vcmp.ge.s32.totalorder %v2218, 0
        %vm2236 = vcmp.ge.s32.totalorder %v2219, 0
        %vm2237 = vcmp.ge.s32.totalorder %v2220, 0
        %vm2238 = vcmp.ge.s32.totalorder %v2221, 0
        %vm2239 = vcmp.ge.s32.totalorder %v2222, 0
        %vm2240 = vcmp.ge.s32.totalorder %v2223, 0
        %vm2241 = vcmp.ge.s32.totalorder %v2224, 0
        %vm2242 = vcmp.ge.s32.totalorder %v2225, 0
        %vm2243 = vcmp.ge.s32.totalorder %v2226, 0
        %v2244 = vsel %vm2227, 1, 0
        %v2245 = vsel %vm2228, 1, 0
        %v2246 = vsel %vm2229, 1, 0
        %v2247 = vsel %vm2230, 1, 0
        %v2248 = vsel %vm2231, 1, 0
        %v2249 = vsel %vm2232, 1, 0
        %v2250 = vsel %vm2233, 1, 0
        %v2251 = vsel %vm2234, 1, 0
        %v2252 = vsel %vm2235, 1, 0
        %v2253 = vsel %vm2236, 1, 0
        %v2254 = vsel %vm2237, 1, 0
        %v2255 = vsel %vm2238, 1, 0
        %v2256 = vsel %vm2239, 1, 0
        %v2257 = vsel %vm2240, 1, 0
        %v2258 = vsel %vm2241, 1, 0
        %v2259 = vsel %vm2242, 1, 0
        %v2260 = vsel %vm2243, 1, 0
        %vm2261 = vcmp.eq.s32.totalorder %v2244, 1
        %vm2262 = vcmp.eq.s32.totalorder %v2245, 1
        %vm2263 = vcmp.eq.s32.totalorder %v2246, 1
        %vm2264 = vcmp.eq.s32.totalorder %v2247, 1
        %vm2265 = vcmp.eq.s32.totalorder %v2248, 1
        %vm2266 = vcmp.eq.s32.totalorder %v2249, 1
        %vm2267 = vcmp.eq.s32.totalorder %v2250, 1
        %vm2268 = vcmp.eq.s32.totalorder %v2251, 1
        %vm2269 = vcmp.eq.s32.totalorder %v2252, 1
        %vm2270 = vcmp.eq.s32.totalorder %v2253, 1
        %vm2271 = vcmp.eq.s32.totalorder %v2254, 1
        %vm2272 = vcmp.eq.s32.totalorder %v2255, 1
        %vm2273 = vcmp.eq.s32.totalorder %v2256, 1
        %vm2274 = vcmp.eq.s32.totalorder %v2257, 1
        %vm2275 = vcmp.eq.s32.totalorder %v2258, 1
        %vm2276 = vcmp.eq.s32.totalorder %v2259, 1
        %vm2277 = vcmp.eq.s32.totalorder %v2260, 1
        %v2278 = vsel %vm2261, %v2175, -3e+38
        %v2279 = vsel %vm2261, %v2176, -3e+38
        %v2280 = vsel %vm2262, %v2177, -3e+38
        %v2281 = vsel %vm2262, %v2178, -3e+38
        %v2282 = vsel %vm2263, %v2179, -3e+38
        %v2283 = vsel %vm2263, %v2180, -3e+38
        %v2284 = vsel %vm2264, %v2181, -3e+38
        %v2285 = vsel %vm2264, %v2182, -3e+38
        %v2286 = vsel %vm2265, %v2183, -3e+38
        %v2287 = vsel %vm2265, %v2184, -3e+38
        %v2288 = vsel %vm2266, %v2185, -3e+38
        %v2289 = vsel %vm2266, %v2186, -3e+38
        %v2290 = vsel %vm2267, %v2187, -3e+38
        %v2291 = vsel %vm2267, %v2188, -3e+38
        %v2292 = vsel %vm2268, %v2189, -3e+38
        %v2293 = vsel %vm2268, %v2190, -3e+38
        %v2294 = vsel %vm2269, %v2191, -3e+38
        %v2295 = vsel %vm2269, %v2192, -3e+38
        %v2296 = vsel %vm2270, %v2193, -3e+38
        %v2297 = vsel %vm2270, %v2194, -3e+38
        %v2298 = vsel %vm2271, %v2195, -3e+38
        %v2299 = vsel %vm2271, %v2196, -3e+38
        %v2300 = vsel %vm2272, %v2197, -3e+38
        %v2301 = vsel %vm2272, %v2198, -3e+38
        %v2302 = vsel %vm2273, %v2199, -3e+38
        %v2303 = vsel %vm2273, %v2200, -3e+38
        %v2304 = vsel %vm2274, %v2201, -3e+38
        %v2305 = vsel %vm2274, %v2202, -3e+38
        %v2306 = vsel %vm2275, %v2203, -3e+38
        %v2307 = vsel %vm2275, %v2204, -3e+38
        %v2308 = vsel %vm2276, %v2205, -3e+38
        %v2309 = vsel %vm2276, %v2206, -3e+38
        %v2310 = vsel %vm2277, %v2207, -3e+38
        %v2311 = vsel %vm2277, %v2208, -3e+38
        %vm2312 = vcmask 57344
        %2313 = vst.msk [vmem:[#allocation3] sm:$0x1] %vm2312, -3e+38
        %2314 = vst.msk [vmem:[#allocation3 + $0x18] sm:$0x1] %vm2312, -3e+38
        %2315 = vst.msk [vmem:[#allocation3 + $0x30] sm:$0x1] %vm2312, -3e+38
        %2316 = vst.msk [vmem:[#allocation3 + $0x48] sm:$0x1] %vm2312, -3e+38
        %2317 = vst.msk [vmem:[#allocation3 + $0x60] sm:$0x1] %vm2312, -3e+38
        %2318 = vst.msk [vmem:[#allocation3 + $0x78] sm:$0x1] %vm2312, -3e+38
        %2319 = vst.msk [vmem:[#allocation3 + $0x90] sm:$0x1] %vm2312, -3e+38
        %2320 = vst.msk [vmem:[#allocation3 + $0xa8] sm:$0x1] %vm2312, -3e+38
        %2321 = vst.msk [vmem:[#allocation3 + $0xc0] sm:$0x1] %vm2312, -3e+38
        %2322 = vst.msk [vmem:[#allocation3 + $0xd8] sm:$0x1] %vm2312, -3e+38
        %2323 = vst.msk [vmem:[#allocation3 + $0xf0] sm:$0x1] %vm2312, -3e+38
        %2324 = vst.msk [vmem:[#allocation3 + $0x108] sm:$0x1] %vm2312, -3e+38
        %2325 = vst.msk [vmem:[#allocation3 + $0x120] sm:$0x1] %vm2312, -3e+38
        %2326 = vst.msk [vmem:[#allocation3 + $0x138] sm:$0x1] %vm2312, -3e+38
        %2327 = vst.msk [vmem:[#allocation3 + $0x150] sm:$0x1] %vm2312, -3e+38
        %2328 = vst.msk [vmem:[#allocation3 + $0x168] sm:$0x1] %vm2312, -3e+38
        %2329 = vst.msk [vmem:[#allocation3 + $0x180] sm:$0x1] %vm2312, -3e+38
        %2330 = vst.msk [vmem:[#allocation3 + $0x11] sm:$0x1] %vm2312, -3e+38
        %2331 = vst.msk [vmem:[#allocation3 + $0x29] sm:$0x1] %vm2312, -3e+38
        %2332 = vst.msk [vmem:[#allocation3 + $0x41] sm:$0x1] %vm2312, -3e+38
        %2333 = vst.msk [vmem:[#allocation3 + $0x59] sm:$0x1] %vm2312, -3e+38
        %2334 = vst.msk [vmem:[#allocation3 + $0x71] sm:$0x1] %vm2312, -3e+38
        %2335 = vst.msk [vmem:[#allocation3 + $0x89] sm:$0x1] %vm2312, -3e+38
        %2336 = vst.msk [vmem:[#allocation3 + $0xa1] sm:$0x1] %vm2312, -3e+38
        %2337 = vst.msk [vmem:[#allocation3 + $0xb9] sm:$0x1] %vm2312, -3e+38
        %2338 = vst.msk [vmem:[#allocation3 + $0xd1] sm:$0x1] %vm2312, -3e+38
        %2339 = vst.msk [vmem:[#allocation3 + $0xe9] sm:$0x1] %vm2312, -3e+38
        %2340 = vst.msk [vmem:[#allocation3 + $0x101] sm:$0x1] %vm2312, -3e+38
        %2341 = vst.msk [vmem:[#allocation3 + $0x119] sm:$0x1] %vm2312, -3e+38
        %2342 = vst.msk [vmem:[#allocation3 + $0x131] sm:$0x1] %vm2312, -3e+38
        %2343 = vst.msk [vmem:[#allocation3 + $0x149] sm:$0x1] %vm2312, -3e+38
        %2344 = vst.msk [vmem:[#allocation3 + $0x161] sm:$0x1] %vm2312, -3e+38
        %2345 = vst.msk [vmem:[#allocation3 + $0x179] sm:$0x1] %vm2312, -3e+38
        %2346 = vst.msk [vmem:[#allocation3 + $0x191] sm:$0x1] %vm2312, -3e+38
        %2347 = vst.msk [vmem:[#allocation3 + $0x1] sm:$0xff] %vm1425, %v2278
        %2348 = vst.msk [vmem:[#allocation3 + $0x9] sm:$0xff] %vm1425, %v2279
        %2349 = vst.msk [vmem:[#allocation3 + $0x19] sm:$0xff] %vm1425, %v2280
        %2350 = vst.msk [vmem:[#allocation3 + $0x21] sm:$0xff] %vm1425, %v2281
        %2351 = vst.msk [vmem:[#allocation3 + $0x31] sm:$0xff] %vm1425, %v2282
        %2352 = vst.msk [vmem:[#allocation3 + $0x39] sm:$0xff] %vm1425, %v2283
        %2353 = vst.msk [vmem:[#allocation3 + $0x49] sm:$0xff] %vm1425, %v2284
        %2354 = vst.msk [vmem:[#allocation3 + $0x51] sm:$0xff] %vm1425, %v2285
        %2355 = vst.msk [vmem:[#allocation3 + $0x61] sm:$0xff] %vm1425, %v2286
        %2356 = vst.msk [vmem:[#allocation3 + $0x69] sm:$0xff] %vm1425, %v2287
        %2357 = vst.msk [vmem:[#allocation3 + $0x79] sm:$0xff] %vm1425, %v2288
        %2358 = vst.msk [vmem:[#allocation3 + $0x81] sm:$0xff] %vm1425, %v2289
        %2359 = vst.msk [vmem:[#allocation3 + $0x91] sm:$0xff] %vm1425, %v2290
        %2360 = vst.msk [vmem:[#allocation3 + $0x99] sm:$0xff] %vm1425, %v2291
        %2361 = vst.msk [vmem:[#allocation3 + $0xa9] sm:$0xff] %vm1425, %v2292
        %2362 = vst.msk [vmem:[#allocation3 + $0xb1] sm:$0xff] %vm1425, %v2293
        %2363 = vst.msk [vmem:[#allocation3 + $0xc1] sm:$0xff] %vm1425, %v2294
        %2364 = vst.msk [vmem:[#allocation3 + $0xc9] sm:$0xff] %vm1425, %v2295
        %2365 = vst.msk [vmem:[#allocation3 + $0xd9] sm:$0xff] %vm1425, %v2296
        %2366 = vst.msk [vmem:[#allocation3 + $0xe1] sm:$0xff] %vm1425, %v2297
        %2367 = vst.msk [vmem:[#allocation3 + $0xf1] sm:$0xff] %vm1425, %v2298
        %2368 = vst.msk [vmem:[#allocation3 + $0xf9] sm:$0xff] %vm1425, %v2299
        %2369 = vst.msk [vmem:[#allocation3 + $0x109] sm:$0xff] %vm1425, %v2300
        %2370 = vst.msk [vmem:[#allocation3 + $0x111] sm:$0xff] %vm1425, %v2301
        %2371 = vst.msk [vmem:[#allocation3 + $0x121] sm:$0xff] %vm1425, %v2302
        %2372 = vst.msk [vmem:[#allocation3 + $0x129] sm:$0xff] %vm1425, %v2303
        %2373 = vst.msk [vmem:[#allocation3 + $0x139] sm:$0xff] %vm1425, %v2304
        %2374 = vst.msk [vmem:[#allocation3 + $0x141] sm:$0xff] %vm1425, %v2305
        %2375 = vst.msk [vmem:[#allocation3 + $0x151] sm:$0xff] %vm1425, %v2306
        %2376 = vst.msk [vmem:[#allocation3 + $0x159] sm:$0xff] %vm1425, %v2307
        %2377 = vst.msk [vmem:[#allocation3 + $0x169] sm:$0xff] %vm1425, %v2308
        %2378 = vst.msk [vmem:[#allocation3 + $0x171] sm:$0xff] %vm1425, %v2309
        %2379 = vst.msk [vmem:[#allocation3 + $0x181] sm:$0xff] %vm1425, %v2310
        %2380 = vst.msk [vmem:[#allocation3 + $0x189] sm:$0xff] %vm1425, %v2311
        %v2381 = vld [vmem:[#allocation3] ss:$2 sm:$0xff]
        %s2382 = scalar_lea.vmem [#allocation3], 24
        %v2383 = vld [vmem:[%s2382] ss:$2 sm:$0xff]
        %s2384 = scalar_lea.vmem [#allocation3], 48
        %v2385 = vld [vmem:[%s2384] ss:$2 sm:$0xff]
        %s2386 = scalar_lea.vmem [#allocation3], 72
        %v2387 = vld [vmem:[%s2386] ss:$2 sm:$0xff]
        %s2388 = scalar_lea.vmem [#allocation3], 96
        %v2389 = vld [vmem:[%s2388] ss:$2 sm:$0xff]
        %s2390 = scalar_lea.vmem [#allocation3], 120
        %v2391 = vld [vmem:[%s2390] ss:$2 sm:$0xff]
        %s2392 = scalar_lea.vmem [#allocation3], 144
        %v2393 = vld [vmem:[%s2392] ss:$2 sm:$0xff]
        %s2394 = scalar_lea.vmem [#allocation3], 168
        %v2395 = vld [vmem:[%s2394] ss:$2 sm:$0xff]
        %s2396 = scalar_lea.vmem [#allocation3], 192
        %v2397 = vld [vmem:[%s2396] ss:$2 sm:$0xff]
        %s2398 = scalar_lea.vmem [#allocation3], 216
        %v2399 = vld [vmem:[%s2398] ss:$2 sm:$0xff]
        %s2400 = scalar_lea.vmem [#allocation3], 240
        %v2401 = vld [vmem:[%s2400] ss:$2 sm:$0xff]
        %s2402 = scalar_lea.vmem [#allocation3], 264
        %v2403 = vld [vmem:[%s2402] ss:$2 sm:$0xff]
        %s2404 = scalar_lea.vmem [#allocation3], 288
        %v2405 = vld [vmem:[%s2404] ss:$2 sm:$0xff]
        %s2406 = scalar_lea.vmem [#allocation3], 312
        %v2407 = vld [vmem:[%s2406] ss:$2 sm:$0xff]
        %s2408 = scalar_lea.vmem [#allocation3], 336
        %v2409 = vld [vmem:[%s2408] ss:$2 sm:$0xff]
        %s2410 = scalar_lea.vmem [#allocation3], 360
        %v2411 = vld [vmem:[%s2410] ss:$2 sm:$0xff]
        %s2412 = scalar_lea.vmem [#allocation3], 384
        %v2413 = vld [vmem:[%s2412] ss:$2 sm:$0xff]
        %s2414 = scalar_lea.vmem [#allocation3], 1
        %v2415 = vld [vmem:[%s2414] ss:$2 sm:$0xff]
        %s2416 = scalar_lea.vmem [#allocation3], 25
        %v2417 = vld [vmem:[%s2416] ss:$2 sm:$0xff]
        %s2418 = scalar_lea.vmem [#allocation3], 49
        %v2419 = vld [vmem:[%s2418] ss:$2 sm:$0xff]
        %s2420 = scalar_lea.vmem [#allocation3], 73
        %v2421 = vld [vmem:[%s2420] ss:$2 sm:$0xff]
        %s2422 = scalar_lea.vmem [#allocation3], 97
        %v2423 = vld [vmem:[%s2422] ss:$2 sm:$0xff]
        %s2424 = scalar_lea.vmem [#allocation3], 121
        %v2425 = vld [vmem:[%s2424] ss:$2 sm:$0xff]
        %s2426 = scalar_lea.vmem [#allocation3], 145
        %v2427 = vld [vmem:[%s2426] ss:$2 sm:$0xff]
        %s2428 = scalar_lea.vmem [#allocation3], 169
        %v2429 = vld [vmem:[%s2428] ss:$2 sm:$0xff]
        %s2430 = scalar_lea.vmem [#allocation3], 193
        %v2431 = vld [vmem:[%s2430] ss:$2 sm:$0xff]
        %s2432 = scalar_lea.vmem [#allocation3], 217
        %v2433 = vld [vmem:[%s2432] ss:$2 sm:$0xff]
        %s2434 = scalar_lea.vmem [#allocation3], 241
        %v2435 = vld [vmem:[%s2434] ss:$2 sm:$0xff]
        %s2436 = scalar_lea.vmem [#allocation3], 265
        %v2437 = vld [vmem:[%s2436] ss:$2 sm:$0xff]
        %s2438 = scalar_lea.vmem [#allocation3], 289
        %v2439 = vld [vmem:[%s2438] ss:$2 sm:$0xff]
        %s2440 = scalar_lea.vmem [#allocation3], 313
        %v2441 = vld [vmem:[%s2440] ss:$2 sm:$0xff]
        %s2442 = scalar_lea.vmem [#allocation3], 337
        %v2443 = vld [vmem:[%s2442] ss:$2 sm:$0xff]
        %s2444 = scalar_lea.vmem [#allocation3], 361
        %v2445 = vld [vmem:[%s2444] ss:$2 sm:$0xff]
        %s2446 = scalar_lea.vmem [#allocation3], 385
        %v2447 = vld [vmem:[%s2446] ss:$2 sm:$0xff]
        %s2448 = scalar_lea.vmem [#allocation3], 2
        %v2449 = vld [vmem:[%s2448] ss:$2 sm:$0xff]
        %s2450 = scalar_lea.vmem [#allocation3], 26
        %v2451 = vld [vmem:[%s2450] ss:$2 sm:$0xff]
        %s2452 = scalar_lea.vmem [#allocation3], 50
        %v2453 = vld [vmem:[%s2452] ss:$2 sm:$0xff]
        %s2454 = scalar_lea.vmem [#allocation3], 74
        %v2455 = vld [vmem:[%s2454] ss:$2 sm:$0xff]
        %s2456 = scalar_lea.vmem [#allocation3], 98
        %v2457 = vld [vmem:[%s2456] ss:$2 sm:$0xff]
        %s2458 = scalar_lea.vmem [#allocation3], 122
        %v2459 = vld [vmem:[%s2458] ss:$2 sm:$0xff]
        %s2460 = scalar_lea.vmem [#allocation3], 146
        %v2461 = vld [vmem:[%s2460] ss:$2 sm:$0xff]
        %s2462 = scalar_lea.vmem [#allocation3], 170
        %v2463 = vld [vmem:[%s2462] ss:$2 sm:$0xff]
        %s2464 = scalar_lea.vmem [#allocation3], 194
        %v2465 = vld [vmem:[%s2464] ss:$2 sm:$0xff]
        %s2466 = scalar_lea.vmem [#allocation3], 218
        %v2467 = vld [vmem:[%s2466] ss:$2 sm:$0xff]
        %s2468 = scalar_lea.vmem [#allocation3], 242
        %v2469 = vld [vmem:[%s2468] ss:$2 sm:$0xff]
        %s2470 = scalar_lea.vmem [#allocation3], 266
        %v2471 = vld [vmem:[%s2470] ss:$2 sm:$0xff]
        %s2472 = scalar_lea.vmem [#allocation3], 290
        %v2473 = vld [vmem:[%s2472] ss:$2 sm:$0xff]
        %s2474 = scalar_lea.vmem [#allocation3], 314
        %v2475 = vld [vmem:[%s2474] ss:$2 sm:$0xff]
        %s2476 = scalar_lea.vmem [#allocation3], 338
        %v2477 = vld [vmem:[%s2476] ss:$2 sm:$0xff]
        %s2478 = scalar_lea.vmem [#allocation3], 362
        %v2479 = vld [vmem:[%s2478] ss:$2 sm:$0xff]
        %s2480 = scalar_lea.vmem [#allocation3], 386
        %v2481 = vld [vmem:[%s2480] ss:$2 sm:$0xff]
        %v2482 = vmax.f32 %v2381, %v2415
        %v2483 = vmax.f32 %v2383, %v2417
        %v2484 = vmax.f32 %v2385, %v2419
        %v2485 = vmax.f32 %v2387, %v2421
        %v2486 = vmax.f32 %v2389, %v2423
        %v2487 = vmax.f32 %v2391, %v2425
        %v2488 = vmax.f32 %v2393, %v2427
        %v2489 = vmax.f32 %v2395, %v2429
        %v2490 = vmax.f32 %v2397, %v2431
        %v2491 = vmax.f32 %v2399, %v2433
        %v2492 = vmax.f32 %v2401, %v2435
        %v2493 = vmax.f32 %v2403, %v2437
        %v2494 = vmax.f32 %v2405, %v2439
        %v2495 = vmax.f32 %v2407, %v2441
        %v2496 = vmax.f32 %v2409, %v2443
        %v2497 = vmax.f32 %v2411, %v2445
        %v2498 = vmax.f32 %v2413, %v2447
        %v2499 = vmax.f32 %v2482, %v2449
        %v2500 = vmax.f32 %v2483, %v2451
        %v2501 = vmax.f32 %v2484, %v2453
        %v2502 = vmax.f32 %v2485, %v2455
        %v2503 = vmax.f32 %v2486, %v2457
        %v2504 = vmax.f32 %v2487, %v2459
        %v2505 = vmax.f32 %v2488, %v2461
        %v2506 = vmax.f32 %v2489, %v2463
        %v2507 = vmax.f32 %v2490, %v2465
        %v2508 = vmax.f32 %v2491, %v2467
        %v2509 = vmax.f32 %v2492, %v2469
        %v2510 = vmax.f32 %v2493, %v2471
        %v2511 = vmax.f32 %v2494, %v2473
        %v2512 = vmax.f32 %v2495, %v2475
        %v2513 = vmax.f32 %v2496, %v2477
        %v2514 = vmax.f32 %v2497, %v2479
        %v2515 = vmax.f32 %v2498, %v2481
        %2516 = vst.msk [vmem:[#allocation4] sm:$0xff] %vm1425, %v2499
        %2517 = vst.msk [vmem:[#allocation4 + $0x8] sm:$0xff] %vm1425, %v2500
        %2518 = vst.msk [vmem:[#allocation4 + $0x10] sm:$0xff] %vm1425, %v2501
        %2519 = vst.msk [vmem:[#allocation4 + $0x18] sm:$0xff] %vm1425, %v2502
        %2520 = vst.msk [vmem:[#allocation4 + $0x20] sm:$0xff] %vm1425, %v2503
        %2521 = vst.msk [vmem:[#allocation4 + $0x28] sm:$0xff] %vm1425, %v2504
        %2522 = vst.msk [vmem:[#allocation4 + $0x30] sm:$0xff] %vm1425, %v2505
        %2523 = vst.msk [vmem:[#allocation4 + $0x38] sm:$0xff] %vm1425, %v2506
        %2524 = vst.msk [vmem:[#allocation4 + $0x40] sm:$0xff] %vm1425, %v2507
        %2525 = vst.msk [vmem:[#allocation4 + $0x48] sm:$0xff] %vm1425, %v2508
        %2526 = vst.msk [vmem:[#allocation4 + $0x50] sm:$0xff] %vm1425, %v2509
        %2527 = vst.msk [vmem:[#allocation4 + $0x58] sm:$0xff] %vm1425, %v2510
        %2528 = vst.msk [vmem:[#allocation4 + $0x60] sm:$0xff] %vm1425, %v2511
        %2529 = vst.msk [vmem:[#allocation4 + $0x68] sm:$0xff] %vm1425, %v2512
        %2530 = vst.msk [vmem:[#allocation4 + $0x70] sm:$0xff] %vm1425, %v2513
        %2531 = vst.msk [vmem:[#allocation4 + $0x78] sm:$0xff] %vm1425, %v2514
        %2532 = vst.msk [vmem:[#allocation4 + $0x80] sm:$0xff] %vm1425, %v2515
        %v2533 = vld [vmem:[#allocation4] sm:$0xff]
        %v2534 = vld [vmem:[#allocation4 + $0x10] sm:$0xff]
        %v2535 = vld [vmem:[#allocation4 + $0x20] sm:$0xff]
        %v2536 = vld [vmem:[#allocation4 + $0x30] sm:$0xff]
        %v2537 = vld [vmem:[#allocation4 + $0x40] sm:$0xff]
        %v2538 = vld [vmem:[#allocation4 + $0x50] sm:$0xff]
        %v2539 = vld [vmem:[#allocation4 + $0x60] sm:$0xff]
        %v2540 = vld [vmem:[#allocation4 + $0x70] sm:$0xff]
        %s2541 = scalar_lea.vmem [#allocation4], 8
        %v2542 = vld [vmem:[%s2541] sm:$0xff]
        %v2543 = vld [vmem:[%s2541 + $0x10] sm:$0xff]
        %v2544 = vld [vmem:[%s2541 + $0x20] sm:$0xff]
        %v2545 = vld [vmem:[%s2541 + $0x30] sm:$0xff]
        %v2546 = vld [vmem:[%s2541 + $0x40] sm:$0xff]
        %v2547 = vld [vmem:[%s2541 + $0x50] sm:$0xff]
        %v2548 = vld [vmem:[%s2541 + $0x60] sm:$0xff]
        %v2549 = vld [vmem:[%s2541 + $0x70] sm:$0xff]
        %s2550 = scalar_lea.vmem [#allocation4], 16
        %v2551 = vld [vmem:[%s2550] sm:$0xff]
        %v2552 = vld [vmem:[%s2550 + $0x10] sm:$0xff]
        %v2553 = vld [vmem:[%s2550 + $0x20] sm:$0xff]
        %v2554 = vld [vmem:[%s2550 + $0x30] sm:$0xff]
        %v2555 = vld [vmem:[%s2550 + $0x40] sm:$0xff]
        %v2556 = vld [vmem:[%s2550 + $0x50] sm:$0xff]
        %v2557 = vld [vmem:[%s2550 + $0x60] sm:$0xff]
        %v2558 = vld [vmem:[%s2550 + $0x70] sm:$0xff]
        %v2559 = vmax.f32 %v2533, %v2542
        %v2560 = vmax.f32 %v2534, %v2543
        %v2561 = vmax.f32 %v2535, %v2544
        %v2562 = vmax.f32 %v2536, %v2545
        %v2563 = vmax.f32 %v2537, %v2546
        %v2564 = vmax.f32 %v2538, %v2547
        %v2565 = vmax.f32 %v2539, %v2548
        %v2566 = vmax.f32 %v2540, %v2549
        %v2567 = vmax.f32 %v2559, %v2551
        %v2568 = vmax.f32 %v2560, %v2552
        %v2569 = vmax.f32 %v2561, %v2553
        %v2570 = vmax.f32 %v2562, %v2554
        %v2571 = vmax.f32 %v2563, %v2555
        %v2572 = vmax.f32 %v2564, %v2556
        %v2573 = vmax.f32 %v2565, %v2557
        %v2574 = vmax.f32 %v2566, %v2558
        %v2575 = vpack.c.bf16 %v2567, %v2567
        %v2576 = vpack.c.bf16 %v2568, %v2568
        %v2577 = vpack.c.bf16 %v2569, %v2569
        %v2578 = vpack.c.bf16 %v2570, %v2570
        %v2579 = vpack.c.bf16 %v2571, %v2571
        %v2580 = vpack.c.bf16 %v2572, %v2572
        %v2581 = vpack.c.bf16 %v2573, %v2573
        %v2582 = vpack.c.bf16 %v2574, %v2574
        %vm2583 = vcmask 60416
        %2584 = vst.msk [vmem:[%s229] sm:$0xf] %vm2583, %v2575
        %2585 = vst.msk [vmem:[%s229 + $0x4] sm:$0xf] %vm2583, %v2576
        %2586 = vst.msk [vmem:[%s229 + $0x8] sm:$0xf] %vm2583, %v2577
        %2587 = vst.msk [vmem:[%s229 + $0xc] sm:$0xf] %vm2583, %v2578
        %2588 = vst.msk [vmem:[%s229 + $0x10] sm:$0xf] %vm2583, %v2579
        %2589 = vst.msk [vmem:[%s229 + $0x14] sm:$0xf] %vm2583, %v2580
        %2590 = vst.msk [vmem:[%s229 + $0x18] sm:$0xf] %vm2583, %v2581
        %2591 = vst.msk [vmem:[%s229 + $0x1c] sm:$0xf] %vm2583, %v2582
        %s2592 = sand.u32 %s111, 1
        %s2593 = scalar_lea.sflag [#allocation7], %s2592
        %s2594 = sand.u32 %s111, 1
        %s2595 = smul.addr %s2594, 32
        %s2596 = scalar_lea.vmem [#allocation11], %s2595
        // Predicated region
        $region49: #{impala_cnn_block.5} parent=31 // pred_check
          %p2597 = pneg %p121
        $region50: #{impala_cnn_block.5} parent=31 // pred_check_branch
          %2599 = sbr.rel (%p2597) target = $region52
        $region51: #{impala_cnn_block.5} parent=31 // pred_region
          %s2600 = smul.u32 8, %s26
          %s2602 = ssub.s32 512, 512
          %2603 = vsyncadd %s2593, %s2602
          %s2604 = smul.addr %s25, 8
          %s2605 = sadd.s32 %s2600, %s2604
          %s2606 = smul.addr %s2605, 64
          %s2607 = scalar_lea.hbm %s3, %s2606
          %s2608 = sshll.u32 %s2596, 4
          %s2609 = int_to_ptr.vmem [resolvable:$true] %s2608
          %2614 = dma.vmem_to_hbm [thread:$0]  %s2609, 512, %s2607, %s2593, 64, 64, 4
        $region52: #{impala_cnn_block.5} parent=31 // pred_fallthru
          _
      $region32: #{impala_cnn_block.5} parent=5 // pred_fallthru
        _
      %p2615 = scmp.le.s32.totalorder 2, %s16
      // Predicated region
      $region53: #{impala_cnn_block.5} parent=5 // pred_check
        %p2616 = pneg %p2615
      $region54: #{impala_cnn_block.5} parent=5 // pred_check_branch
        %2618 = sbr.rel (%p2616) target = $region56
      $region55: #{impala_cnn_block.5} parent=5 // pred_region
        %s2619 = ssub.s32 %s16, 2
        // Predicated region
        $region57: #{impala_cnn_block.5} parent=55 // pred_check
          %p2620 = pneg %p127
        $region58: #{impala_cnn_block.5} parent=55 // pred_check_branch
          %2622 = sbr.rel (%p2620) target = $region60
        $region59: #{impala_cnn_block.5} parent=55 // pred_region
          %s2623 = sand.u32 %s112, 1
          %s2624 = scalar_lea.sflag [#allocation7], %s2623
          %s2625 = sand.u32 %s112, 1
          %s2626 = smul.addr %s2625, 32
          %s2627 = scalar_lea.vmem [#allocation11], %s2626
          %2628 = dma.done %s2624, 512
        $region60: #{impala_cnn_block.5} parent=55 // pred_fallthru
          _
      $region56: #{impala_cnn_block.5} parent=5 // pred_fallthru
        _
    $region6: #{impala_cnn_block.5} parent=1 // loop_footer
      %s20 = sadd.s32 1, %s16
    $region7: #{impala_cnn_block.5} parent=1 // loop_footer_branch
      %15 = sbr.rel target = $region3
    $region8: #{impala_cnn_block.5} parent=1 // loop_exit
      _
    %2629 = vsyncpa [#allocation6], 1
    %s2630 = scalar_lea.sflag [#allocation6], 1
    %2631 = vsyncpa %s2630, 1
    %2632 = vsyncpa [#allocation9], 1
    %2633 = vsyncpa [#allocation7], 1
    %s2634 = scalar_lea.sflag [#allocation7], 1
    %2635 = vsyncpa %s2634, 1

</llo_original>
